<compile_context>
chip_gen: v5e
topology: v5e:2x2
jax: 0.10.0
libtpu: 0.0.40
codegen_flags: <defaults>
</compile_context>

<pallas_src>
import functools

import jax
import jax.numpy as jnp
from jax.experimental import pallas as pl
from jax.experimental.pallas import tpu as pltpu

# ------------- small synthetic config (stands in for bert_size=768, embed_size=512) ----------
VOCAB = 64
BATCH = 2
SEQ = 8
HIDDEN = 128          # "bert_size"
EMBED = 256           # "embed_size"
N_HEADS = 4
HEAD_DIM = HIDDEN // N_HEADS
FFN = 256
N_LAYERS = 2
DROP_P = 0.1
LN_EPS = 1e-12
_DROP_THRESH = int(DROP_P * (1 << 32))   # uint32 threshold: keep iff bits >= thresh


# ---------------- the fused Pallas kernel ----------------

def _encoder_kernel(x_ref, bits_ref,
                    emb_ln_g_ref, emb_ln_b_ref,
                    wqkv_ref, bqkv_ref, wo_ref, bo_ref,
                    ln1_g_ref, ln1_b_ref,
                    w1_ref, b1_ref, w2_ref, b2_ref,
                    ln2_g_ref, ln2_b_ref,
                    fcw_ref, fcb_ref,
                    o_ref, *, train):
    """One grid step == one batch element's full forward on a [S, H] slab."""

    def layer_norm(h, g, b):
        mu = jnp.mean(h, axis=-1, keepdims=True)
        var = jnp.mean((h - mu) ** 2, axis=-1, keepdims=True)
        return (h - mu) * jax.lax.rsqrt(var + LN_EPS) * g + b

    x = x_ref[0]                                              # [S, H] = [8, 128]
    x = layer_norm(x, emb_ln_g_ref[...], emb_ln_b_ref[...])

    scale = 1.0 / (HEAD_DIM ** 0.5)
    for l in range(N_LAYERS):                                 # static unroll (2 layers)
        # ---- fused QKV projection: one [S,H] x [H,3H] matmul ----
        qkv = jnp.dot(x, wqkv_ref[l], preferred_element_type=jnp.float32) + bqkv_ref[l]

        # ---- multi-head attention, all heads in this grid step ----
        ctx_heads = []
        for h in range(N_HEADS):                              # static unroll (4 heads)
            q = qkv[:, h * HEAD_DIM:(h + 1) * HEAD_DIM]                       # [S, Dh]
            k = qkv[:, HIDDEN + h * HEAD_DIM:HIDDEN + (h + 1) * HEAD_DIM]     # [S, Dh]
            v = qkv[:, 2 * HIDDEN + h * HEAD_DIM:2 * HIDDEN + (h + 1) * HEAD_DIM]
            # contract last dims of q and k (no explicit transpose materialization)
            s = jax.lax.dot_general(q, k, (((1,), (1,)), ((), ())),
                                    preferred_element_type=jnp.float32) * scale
            m = jnp.max(s, axis=-1, keepdims=True)
            p = jnp.exp(s - m)
            p = p / jnp.sum(p, axis=-1, keepdims=True)
            ctx_heads.append(jnp.dot(p, v, preferred_element_type=jnp.float32))
        ctx = jnp.concatenate(ctx_heads, axis=-1)             # [S, H], lane-dense

        # ---- out-projection + residual + LayerNorm (fused epilogue) ----
        attn_out = jnp.dot(ctx, wo_ref[l], preferred_element_type=jnp.float32) + bo_ref[l]
        x = layer_norm(x + attn_out, ln1_g_ref[l], ln1_b_ref[l])

        # ---- feed-forward + residual + LayerNorm ----
        h1 = jnp.dot(x, w1_ref[l], preferred_element_type=jnp.float32) + b1_ref[l]
        h1 = jax.nn.gelu(h1, approximate=True)
        h2 = jnp.dot(h1, w2_ref[l], preferred_element_type=jnp.float32) + b2_ref[l]
        x = layer_norm(x + h2, ln2_g_ref[l], ln2_b_ref[l])

    # ---- TextEncoder.fc : Linear(bert_size, embed_size) -> ReLU -> Dropout(0.1) ----
    y = jnp.dot(x, fcw_ref[...], preferred_element_type=jnp.float32) + fcb_ref[...]
    y = jnp.maximum(y, 0.0)                                   # ReLU
    if train:
        # integer threshold compare on externally generated uint32 bits
        keep = bits_ref[0] >= jnp.uint32(_DROP_THRESH)
        y = jnp.where(keep, y * (1.0 / (1.0 - DROP_P)), 0.0)
    o_ref[0] = y                                              # [S, EMBED], lane-dense


# ---------------- wrapper: one pallas_call for the whole forward ----------------

def _full_spec(arr):
    """Whole array resident in VMEM, same block for every grid step."""
    nd = arr.ndim
    return pl.BlockSpec(arr.shape, lambda b, nd=nd: (0,) * nd)


def text_encoder_forward(params, captions, dropout_key, *, train=True):
    # --- embedding gather kept in plain JAX glue ---
    emb = jnp.take(params["word_emb"], captions, axis=0)        # [B, S, H]
    emb = emb + params["pos_emb"][None, :, :]
    emb = emb.astype(jnp.float32)

    # dropout randomness generated outside the kernel (works on TPU and in interpret mode)
    bits = jax.random.bits(dropout_key, (BATCH, SEQ, EMBED), dtype=jnp.uint32)

    weights = [params["emb_ln_g"], params["emb_ln_b"],
               params["wqkv"], params["bqkv"], params["wo"], params["bo"],
               params["ln1_g"], params["ln1_b"],
               params["w1"], params["b1"], params["w2"], params["b2"],
               params["ln2_g"], params["ln2_b"],
               params["fc_w"], params["fc_b"]]

    in_specs = [pl.BlockSpec((1, SEQ, HIDDEN), lambda b: (b, 0, 0)),    # activations
                pl.BlockSpec((1, SEQ, EMBED), lambda b: (b, 0, 0))]     # dropout bits
    in_specs += [_full_spec(w) for w in weights]

    out = pl.pallas_call(
        functools.partial(_encoder_kernel, train=train),
        out_shape=jax.ShapeDtypeStruct((BATCH, SEQ, EMBED), jnp.float32),
        grid=(BATCH,),
        in_specs=in_specs,
        out_specs=pl.BlockSpec((1, SEQ, EMBED), lambda b: (b, 0, 0)),
        compiler_params=pltpu.CompilerParams(
            dimension_semantics=("parallel",)),        # shards batch across TCs on v7x
    )(emb, bits, *weights)
    return out


# ---------------- deterministic parameter init ----------------
# TODO(synk): real BertModel.from_pretrained checkpoint cannot be loaded here;
#             synthetic deterministic weights stand in for the frozen BERT.

def init_params(key):
    ks = iter(jax.random.split(key, 16))

    def w(k, *shape):
        return 0.02 * jax.random.normal(k, shape, jnp.float32)

    return dict(
        word_emb=w(next(ks), VOCAB, HIDDEN),
        pos_emb=w(next(ks), SEQ, HIDDEN),
        emb_ln_g=jnp.ones((1, HIDDEN), jnp.float32),
        emb_ln_b=jnp.zeros((1, HIDDEN), jnp.float32),
        # fused QKV weight: wq | wk | wv concatenated along N -> [L, H, 3H]
        wqkv=w(next(ks), N_LAYERS, HIDDEN, 3 * HIDDEN),
        bqkv=jnp.zeros((N_LAYERS, 1, 3 * HIDDEN), jnp.float32),
        wo=w(next(ks), N_LAYERS, HIDDEN, HIDDEN),
        bo=jnp.zeros((N_LAYERS, 1, HIDDEN), jnp.float32),
        ln1_g=jnp.ones((N_LAYERS, 1, HIDDEN), jnp.float32),
        ln1_b=jnp.zeros((N_LAYERS, 1, HIDDEN), jnp.float32),
        w1=w(next(ks), N_LAYERS, HIDDEN, FFN),
        b1=jnp.zeros((N_LAYERS, 1, FFN), jnp.float32),
        w2=w(next(ks), N_LAYERS, FFN, HIDDEN),
        b2=jnp.zeros((N_LAYERS, 1, HIDDEN), jnp.float32),
        ln2_g=jnp.ones((N_LAYERS, 1, HIDDEN), jnp.float32),
        ln2_b=jnp.zeros((N_LAYERS, 1, HIDDEN), jnp.float32),
        fc_w=w(next(ks), HIDDEN, EMBED),
        fc_b=jnp.zeros((1, EMBED), jnp.float32),
    )


if __name__ == "__main__":
    key = jax.random.PRNGKey(0)
    k_param, k_tok, k_drop = jax.random.split(key, 3)
    params = init_params(k_param)
    captions = jax.random.randint(k_tok, (BATCH, SEQ), 0, VOCAB, dtype=jnp.int32)

    fwd = jax.jit(text_encoder_forward, static_argnames=("train",))
    out = fwd(params, captions, k_drop)
    out = jax.block_until_ready(out)
    assert out.shape == (BATCH, SEQ, EMBED) and out.dtype == jnp.float32
    assert bool(jnp.all(jnp.isfinite(out)))
    print("KERNEL_OK")
</pallas_src>

<mosaic_0001>
module attributes {stable_mosaic.version = 11 : i64} {
  func.func @_encoder_kernel(%arg0: i32, %arg1: memref<1x8x128xf32, #tpu.memory_space<vmem>>, %arg2: memref<1x8x256xi32, #tpu.memory_space<vmem>>, %arg3: memref<1x128xf32, #tpu.memory_space<vmem>>, %arg4: memref<1x128xf32, #tpu.memory_space<vmem>>, %arg5: memref<2x128x384xf32, #tpu.memory_space<vmem>>, %arg6: memref<2x1x384xf32, #tpu.memory_space<vmem>>, %arg7: memref<2x128x128xf32, #tpu.memory_space<vmem>>, %arg8: memref<2x1x128xf32, #tpu.memory_space<vmem>>, %arg9: memref<2x1x128xf32, #tpu.memory_space<vmem>>, %arg10: memref<2x1x128xf32, #tpu.memory_space<vmem>>, %arg11: memref<2x128x256xf32, #tpu.memory_space<vmem>>, %arg12: memref<2x1x256xf32, #tpu.memory_space<vmem>>, %arg13: memref<2x256x128xf32, #tpu.memory_space<vmem>>, %arg14: memref<2x1x128xf32, #tpu.memory_space<vmem>>, %arg15: memref<2x1x128xf32, #tpu.memory_space<vmem>>, %arg16: memref<2x1x128xf32, #tpu.memory_space<vmem>>, %arg17: memref<128x256xf32, #tpu.memory_space<vmem>>, %arg18: memref<1x256xf32, #tpu.memory_space<vmem>>, %arg19: memref<1x8x256xf32, #tpu.memory_space<vmem>>) attributes {dimension_semantics = [#tpu.dimension_semantics<parallel>], iteration_bounds = array<i64: 2>, scalar_prefetch = 0 : i64, scratch_operands = 0 : i64, tpu.core_type = #tpu.core_type<tc>, window_params = [{transform_indices = @transform_0, window_bounds = array<i64: 1, 8, 128>}, {transform_indices = @transform_1, window_bounds = array<i64: 1, 8, 256>}, {pipeline_mode = #tpu.pipeline_mode<synchronous>, transform_indices = @transform_2, window_bounds = array<i64: 1, 128>}, {pipeline_mode = #tpu.pipeline_mode<synchronous>, transform_indices = @transform_3, window_bounds = array<i64: 1, 128>}, {pipeline_mode = #tpu.pipeline_mode<synchronous>, transform_indices = @transform_4, window_bounds = array<i64: 2, 128, 384>}, {pipeline_mode = #tpu.pipeline_mode<synchronous>, transform_indices = @transform_5, window_bounds = array<i64: 2, 1, 384>}, {pipeline_mode = #tpu.pipeline_mode<synchronous>, transform_indices = @transform_6, window_bounds = array<i64: 2, 128, 128>}, {pipeline_mode = #tpu.pipeline_mode<synchronous>, transform_indices = @transform_7, window_bounds = array<i64: 2, 1, 128>}, {pipeline_mode = #tpu.pipeline_mode<synchronous>, transform_indices = @transform_8, window_bounds = array<i64: 2, 1, 128>}, {pipeline_mode = #tpu.pipeline_mode<synchronous>, transform_indices = @transform_9, window_bounds = array<i64: 2, 1, 128>}, {pipeline_mode = #tpu.pipeline_mode<synchronous>, transform_indices = @transform_10, window_bounds = array<i64: 2, 128, 256>}, {pipeline_mode = #tpu.pipeline_mode<synchronous>, transform_indices = @transform_11, window_bounds = array<i64: 2, 1, 256>}, {pipeline_mode = #tpu.pipeline_mode<synchronous>, transform_indices = @transform_12, window_bounds = array<i64: 2, 256, 128>}, {pipeline_mode = #tpu.pipeline_mode<synchronous>, transform_indices = @transform_13, window_bounds = array<i64: 2, 1, 128>}, {pipeline_mode = #tpu.pipeline_mode<synchronous>, transform_indices = @transform_14, window_bounds = array<i64: 2, 1, 128>}, {pipeline_mode = #tpu.pipeline_mode<synchronous>, transform_indices = @transform_15, window_bounds = array<i64: 2, 1, 128>}, {pipeline_mode = #tpu.pipeline_mode<synchronous>, transform_indices = @transform_16, window_bounds = array<i64: 128, 256>}, {pipeline_mode = #tpu.pipeline_mode<synchronous>, transform_indices = @transform_17, window_bounds = array<i64: 1, 256>}, {transform_indices = @transform_18, window_bounds = array<i64: 1, 8, 256>}]} {
    %c0 = arith.constant 0 : index
    %c0_0 = arith.constant 0 : index
    %c0_1 = arith.constant 0 : index
    %0 = vector.load %arg1[%c0, %c0_0, %c0_1] : memref<1x8x128xf32, #tpu.memory_space<vmem>>, vector<1x8x128xf32>
    %1 = vector.shape_cast %0 : vector<1x8x128xf32> to vector<8x128xf32>
    %c0_2 = arith.constant 0 : index
    %c0_3 = arith.constant 0 : index
    %2 = vector.load %arg3[%c0_2, %c0_3] : memref<1x128xf32, #tpu.memory_space<vmem>>, vector<1x128xf32>
    %c0_4 = arith.constant 0 : index
    %c0_5 = arith.constant 0 : index
    %3 = vector.load %arg4[%c0_4, %c0_5] : memref<1x128xf32, #tpu.memory_space<vmem>>, vector<1x128xf32>
    %cst = arith.constant dense<0.000000e+00> : vector<8xf32>
    %4 = vector.multi_reduction <add>, %1, %cst [1] : vector<8x128xf32> to vector<8xf32>
    %5 = vector.shape_cast %4 : vector<8xf32> to vector<8x1xf32>
    %cst_6 = arith.constant 1.280000e+02 : f32
    %6 = vector.broadcast %cst_6 : f32 to vector<8x1xf32>
    %7 = arith.divf %5, %6 : vector<8x1xf32>
    %8 = vector.broadcast %7 : vector<8x1xf32> to vector<8x128xf32>
    %9 = arith.subf %1, %8 : vector<8x128xf32>
    %10 = arith.mulf %9, %9 : vector<8x128xf32>
    %cst_7 = arith.constant dense<0.000000e+00> : vector<8xf32>
    %11 = vector.multi_reduction <add>, %10, %cst_7 [1] : vector<8x128xf32> to vector<8xf32>
    %12 = vector.shape_cast %11 : vector<8xf32> to vector<8x1xf32>
    %cst_8 = arith.constant 1.280000e+02 : f32
    %13 = vector.broadcast %cst_8 : f32 to vector<8x1xf32>
    %14 = arith.divf %12, %13 : vector<8x1xf32>
    %15 = vector.broadcast %7 : vector<8x1xf32> to vector<8x128xf32>
    %16 = arith.subf %1, %15 : vector<8x128xf32>
    %cst_9 = arith.constant 9.99999996E-13 : f32
    %17 = vector.broadcast %cst_9 : f32 to vector<8x1xf32>
    %18 = arith.addf %14, %17 : vector<8x1xf32>
    %19 = math.rsqrt %18 : vector<8x1xf32>
    %20 = vector.broadcast %19 : vector<8x1xf32> to vector<8x128xf32>
    %21 = arith.mulf %16, %20 : vector<8x128xf32>
    %22 = vector.broadcast %2 : vector<1x128xf32> to vector<8x128xf32>
    %23 = arith.mulf %21, %22 : vector<8x128xf32>
    %24 = vector.broadcast %3 : vector<1x128xf32> to vector<8x128xf32>
    %25 = arith.addf %23, %24 : vector<8x128xf32>
    %c0_10 = arith.constant 0 : index
    %c0_11 = arith.constant 0 : index
    %c0_12 = arith.constant 0 : index
    %26 = vector.load %arg5[%c0_10, %c0_11, %c0_12] : memref<2x128x384xf32, #tpu.memory_space<vmem>>, vector<1x128x384xf32>
    %27 = vector.shape_cast %26 : vector<1x128x384xf32> to vector<128x384xf32>
    %cst_13 = arith.constant dense<0.000000e+00> : vector<8x384xf32>
    %28 = tpu.matmul %25, %27, %cst_13 {dimension_numbers = #tpu.dot_dimension_numbers<[1], [0], [0], [1], [0, 0, 1, 1], [], []>} : vector<8x128xf32>, vector<128x384xf32>, vector<8x384xf32> -> vector<8x384xf32>
    %c0_14 = arith.constant 0 : index
    %c0_15 = arith.constant 0 : index
    %c0_16 = arith.constant 0 : index
    %29 = vector.load %arg6[%c0_14, %c0_15, %c0_16] : memref<2x1x384xf32, #tpu.memory_space<vmem>>, vector<1x1x384xf32>
    %30 = vector.shape_cast %29 : vector<1x1x384xf32> to vector<1x384xf32>
    %31 = vector.broadcast %30 : vector<1x384xf32> to vector<8x384xf32>
    %32 = arith.addf %28, %31 : vector<8x384xf32>
    %33 = vector.extract_strided_slice %32 {offsets = [0, 0], sizes = [8, 32], strides = [1, 1]} : vector<8x384xf32> to vector<8x32xf32>
    %34 = vector.extract_strided_slice %32 {offsets = [0, 128], sizes = [8, 32], strides = [1, 1]} : vector<8x384xf32> to vector<8x32xf32>
    %35 = vector.extract_strided_slice %32 {offsets = [0, 256], sizes = [8, 32], strides = [1, 1]} : vector<8x384xf32> to vector<8x32xf32>
    %cst_17 = arith.constant dense<0.000000e+00> : vector<8x8xf32>
    %36 = tpu.matmul %33, %34, %cst_17 {dimension_numbers = #tpu.dot_dimension_numbers<[1], [1], [0], [0], [0, 0, 1, 0], [], []>} : vector<8x32xf32>, vector<8x32xf32>, vector<8x8xf32> -> vector<8x8xf32>
    %cst_18 = arith.constant 0.176776692 : f32
    %37 = vector.broadcast %cst_18 : f32 to vector<8x8xf32>
    %38 = arith.mulf %36, %37 : vector<8x8xf32>
    %cst_19 = arith.constant dense<0xFF800000> : vector<8xf32>
    %39 = vector.multi_reduction <maximumf>, %38, %cst_19 [1] : vector<8x8xf32> to vector<8xf32>
    %40 = vector.shape_cast %39 : vector<8xf32> to vector<8x1xf32>
    %41 = vector.broadcast %40 : vector<8x1xf32> to vector<8x8xf32>
    %42 = arith.subf %38, %41 : vector<8x8xf32>
    %43 = math.exp %42 : vector<8x8xf32>
    %cst_20 = arith.constant dense<0.000000e+00> : vector<8xf32>
    %44 = vector.multi_reduction <add>, %43, %cst_20 [1] : vector<8x8xf32> to vector<8xf32>
    %45 = vector.shape_cast %44 : vector<8xf32> to vector<8x1xf32>
    %46 = vector.broadcast %45 : vector<8x1xf32> to vector<8x8xf32>
    %47 = arith.divf %43, %46 : vector<8x8xf32>
    %cst_21 = arith.constant dense<0.000000e+00> : vector<8x32xf32>
    %48 = tpu.matmul %47, %35, %cst_21 {dimension_numbers = #tpu.dot_dimension_numbers<[1], [0], [0], [1], [0, 0, 1, 1], [], []>} : vector<8x8xf32>, vector<8x32xf32>, vector<8x32xf32> -> vector<8x32xf32>
    %49 = vector.extract_strided_slice %32 {offsets = [0, 32], sizes = [8, 32], strides = [1, 1]} : vector<8x384xf32> to vector<8x32xf32>
    %50 = vector.extract_strided_slice %32 {offsets = [0, 160], sizes = [8, 32], strides = [1, 1]} : vector<8x384xf32> to vector<8x32xf32>
    %51 = vector.extract_strided_slice %32 {offsets = [0, 288], sizes = [8, 32], strides = [1, 1]} : vector<8x384xf32> to vector<8x32xf32>
    %cst_22 = arith.constant dense<0.000000e+00> : vector<8x8xf32>
    %52 = tpu.matmul %49, %50, %cst_22 {dimension_numbers = #tpu.dot_dimension_numbers<[1], [1], [0], [0], [0, 0, 1, 0], [], []>} : vector<8x32xf32>, vector<8x32xf32>, vector<8x8xf32> -> vector<8x8xf32>
    %cst_23 = arith.constant 0.176776692 : f32
    %53 = vector.broadcast %cst_23 : f32 to vector<8x8xf32>
    %54 = arith.mulf %52, %53 : vector<8x8xf32>
    %cst_24 = arith.constant dense<0xFF800000> : vector<8xf32>
    %55 = vector.multi_reduction <maximumf>, %54, %cst_24 [1] : vector<8x8xf32> to vector<8xf32>
    %56 = vector.shape_cast %55 : vector<8xf32> to vector<8x1xf32>
    %57 = vector.broadcast %56 : vector<8x1xf32> to vector<8x8xf32>
    %58 = arith.subf %54, %57 : vector<8x8xf32>
    %59 = math.exp %58 : vector<8x8xf32>
    %cst_25 = arith.constant dense<0.000000e+00> : vector<8xf32>
    %60 = vector.multi_reduction <add>, %59, %cst_25 [1] : vector<8x8xf32> to vector<8xf32>
    %61 = vector.shape_cast %60 : vector<8xf32> to vector<8x1xf32>
    %62 = vector.broadcast %61 : vector<8x1xf32> to vector<8x8xf32>
    %63 = arith.divf %59, %62 : vector<8x8xf32>
    %cst_26 = arith.constant dense<0.000000e+00> : vector<8x32xf32>
    %64 = tpu.matmul %63, %51, %cst_26 {dimension_numbers = #tpu.dot_dimension_numbers<[1], [0], [0], [1], [0, 0, 1, 1], [], []>} : vector<8x8xf32>, vector<8x32xf32>, vector<8x32xf32> -> vector<8x32xf32>
    %65 = vector.extract_strided_slice %32 {offsets = [0, 64], sizes = [8, 32], strides = [1, 1]} : vector<8x384xf32> to vector<8x32xf32>
    %66 = vector.extract_strided_slice %32 {offsets = [0, 192], sizes = [8, 32], strides = [1, 1]} : vector<8x384xf32> to vector<8x32xf32>
    %67 = vector.extract_strided_slice %32 {offsets = [0, 320], sizes = [8, 32], strides = [1, 1]} : vector<8x384xf32> to vector<8x32xf32>
    %cst_27 = arith.constant dense<0.000000e+00> : vector<8x8xf32>
    %68 = tpu.matmul %65, %66, %cst_27 {dimension_numbers = #tpu.dot_dimension_numbers<[1], [1], [0], [0], [0, 0, 1, 0], [], []>} : vector<8x32xf32>, vector<8x32xf32>, vector<8x8xf32> -> vector<8x8xf32>
    %cst_28 = arith.constant 0.176776692 : f32
    %69 = vector.broadcast %cst_28 : f32 to vector<8x8xf32>
    %70 = arith.mulf %68, %69 : vector<8x8xf32>
    %cst_29 = arith.constant dense<0xFF800000> : vector<8xf32>
    %71 = vector.multi_reduction <maximumf>, %70, %cst_29 [1] : vector<8x8xf32> to vector<8xf32>
    %72 = vector.shape_cast %71 : vector<8xf32> to vector<8x1xf32>
    %73 = vector.broadcast %72 : vector<8x1xf32> to vector<8x8xf32>
    %74 = arith.subf %70, %73 : vector<8x8xf32>
    %75 = math.exp %74 : vector<8x8xf32>
    %cst_30 = arith.constant dense<0.000000e+00> : vector<8xf32>
    %76 = vector.multi_reduction <add>, %75, %cst_30 [1] : vector<8x8xf32> to vector<8xf32>
    %77 = vector.shape_cast %76 : vector<8xf32> to vector<8x1xf32>
    %78 = vector.broadcast %77 : vector<8x1xf32> to vector<8x8xf32>
    %79 = arith.divf %75, %78 : vector<8x8xf32>
    %cst_31 = arith.constant dense<0.000000e+00> : vector<8x32xf32>
    %80 = tpu.matmul %79, %67, %cst_31 {dimension_numbers = #tpu.dot_dimension_numbers<[1], [0], [0], [1], [0, 0, 1, 1], [], []>} : vector<8x8xf32>, vector<8x32xf32>, vector<8x32xf32> -> vector<8x32xf32>
    %81 = vector.extract_strided_slice %32 {offsets = [0, 96], sizes = [8, 32], strides = [1, 1]} : vector<8x384xf32> to vector<8x32xf32>
    %82 = vector.extract_strided_slice %32 {offsets = [0, 224], sizes = [8, 32], strides = [1, 1]} : vector<8x384xf32> to vector<8x32xf32>
    %83 = vector.extract_strided_slice %32 {offsets = [0, 352], sizes = [8, 32], strides = [1, 1]} : vector<8x384xf32> to vector<8x32xf32>
    %cst_32 = arith.constant dense<0.000000e+00> : vector<8x8xf32>
    %84 = tpu.matmul %81, %82, %cst_32 {dimension_numbers = #tpu.dot_dimension_numbers<[1], [1], [0], [0], [0, 0, 1, 0], [], []>} : vector<8x32xf32>, vector<8x32xf32>, vector<8x8xf32> -> vector<8x8xf32>
    %cst_33 = arith.constant 0.176776692 : f32
    %85 = vector.broadcast %cst_33 : f32 to vector<8x8xf32>
    %86 = arith.mulf %84, %85 : vector<8x8xf32>
    %cst_34 = arith.constant dense<0xFF800000> : vector<8xf32>
    %87 = vector.multi_reduction <maximumf>, %86, %cst_34 [1] : vector<8x8xf32> to vector<8xf32>
    %88 = vector.shape_cast %87 : vector<8xf32> to vector<8x1xf32>
    %89 = vector.broadcast %88 : vector<8x1xf32> to vector<8x8xf32>
    %90 = arith.subf %86, %89 : vector<8x8xf32>
    %91 = math.exp %90 : vector<8x8xf32>
    %cst_35 = arith.constant dense<0.000000e+00> : vector<8xf32>
    %92 = vector.multi_reduction <add>, %91, %cst_35 [1] : vector<8x8xf32> to vector<8xf32>
    %93 = vector.shape_cast %92 : vector<8xf32> to vector<8x1xf32>
    %94 = vector.broadcast %93 : vector<8x1xf32> to vector<8x8xf32>
    %95 = arith.divf %91, %94 : vector<8x8xf32>
    %cst_36 = arith.constant dense<0.000000e+00> : vector<8x32xf32>
    %96 = tpu.matmul %95, %83, %cst_36 {dimension_numbers = #tpu.dot_dimension_numbers<[1], [0], [0], [1], [0, 0, 1, 1], [], []>} : vector<8x8xf32>, vector<8x32xf32>, vector<8x32xf32> -> vector<8x32xf32>
    %97 = tpu.concatenate %48, %64, %80, %96 in 1 : vector<8x32xf32>, vector<8x32xf32>, vector<8x32xf32>, vector<8x32xf32> -> vector<8x128xf32>
    %c0_37 = arith.constant 0 : index
    %c0_38 = arith.constant 0 : index
    %c0_39 = arith.constant 0 : index
    %98 = vector.load %arg7[%c0_37, %c0_38, %c0_39] : memref<2x128x128xf32, #tpu.memory_space<vmem>>, vector<1x128x128xf32>
    %99 = vector.shape_cast %98 : vector<1x128x128xf32> to vector<128x128xf32>
    %cst_40 = arith.constant dense<0.000000e+00> : vector<8x128xf32>
    %100 = tpu.matmul %97, %99, %cst_40 {dimension_numbers = #tpu.dot_dimension_numbers<[1], [0], [0], [1], [0, 0, 1, 1], [], []>} : vector<8x128xf32>, vector<128x128xf32>, vector<8x128xf32> -> vector<8x128xf32>
    %c0_41 = arith.constant 0 : index
    %c0_42 = arith.constant 0 : index
    %c0_43 = arith.constant 0 : index
    %101 = vector.load %arg8[%c0_41, %c0_42, %c0_43] : memref<2x1x128xf32, #tpu.memory_space<vmem>>, vector<1x1x128xf32>
    %102 = vector.shape_cast %101 : vector<1x1x128xf32> to vector<1x128xf32>
    %103 = vector.broadcast %102 : vector<1x128xf32> to vector<8x128xf32>
    %104 = arith.addf %100, %103 : vector<8x128xf32>
    %105 = arith.addf %25, %104 : vector<8x128xf32>
    %c0_44 = arith.constant 0 : index
    %c0_45 = arith.constant 0 : index
    %c0_46 = arith.constant 0 : index
    %106 = vector.load %arg9[%c0_44, %c0_45, %c0_46] : memref<2x1x128xf32, #tpu.memory_space<vmem>>, vector<1x1x128xf32>
    %107 = vector.shape_cast %106 : vector<1x1x128xf32> to vector<1x128xf32>
    %c0_47 = arith.constant 0 : index
    %c0_48 = arith.constant 0 : index
    %c0_49 = arith.constant 0 : index
    %108 = vector.load %arg10[%c0_47, %c0_48, %c0_49] : memref<2x1x128xf32, #tpu.memory_space<vmem>>, vector<1x1x128xf32>
    %109 = vector.shape_cast %108 : vector<1x1x128xf32> to vector<1x128xf32>
    %cst_50 = arith.constant dense<0.000000e+00> : vector<8xf32>
    %110 = vector.multi_reduction <add>, %105, %cst_50 [1] : vector<8x128xf32> to vector<8xf32>
    %111 = vector.shape_cast %110 : vector<8xf32> to vector<8x1xf32>
    %cst_51 = arith.constant 1.280000e+02 : f32
    %112 = vector.broadcast %cst_51 : f32 to vector<8x1xf32>
    %113 = arith.divf %111, %112 : vector<8x1xf32>
    %114 = vector.broadcast %113 : vector<8x1xf32> to vector<8x128xf32>
    %115 = arith.subf %105, %114 : vector<8x128xf32>
    %116 = arith.mulf %115, %115 : vector<8x128xf32>
    %cst_52 = arith.constant dense<0.000000e+00> : vector<8xf32>
    %117 = vector.multi_reduction <add>, %116, %cst_52 [1] : vector<8x128xf32> to vector<8xf32>
    %118 = vector.shape_cast %117 : vector<8xf32> to vector<8x1xf32>
    %cst_53 = arith.constant 1.280000e+02 : f32
    %119 = vector.broadcast %cst_53 : f32 to vector<8x1xf32>
    %120 = arith.divf %118, %119 : vector<8x1xf32>
    %121 = vector.broadcast %113 : vector<8x1xf32> to vector<8x128xf32>
    %122 = arith.subf %105, %121 : vector<8x128xf32>
    %cst_54 = arith.constant 9.99999996E-13 : f32
    %123 = vector.broadcast %cst_54 : f32 to vector<8x1xf32>
    %124 = arith.addf %120, %123 : vector<8x1xf32>
    %125 = math.rsqrt %124 : vector<8x1xf32>
    %126 = vector.broadcast %125 : vector<8x1xf32> to vector<8x128xf32>
    %127 = arith.mulf %122, %126 : vector<8x128xf32>
    %128 = vector.broadcast %107 : vector<1x128xf32> to vector<8x128xf32>
    %129 = arith.mulf %127, %128 : vector<8x128xf32>
    %130 = vector.broadcast %109 : vector<1x128xf32> to vector<8x128xf32>
    %131 = arith.addf %129, %130 : vector<8x128xf32>
    %c0_55 = arith.constant 0 : index
    %c0_56 = arith.constant 0 : index
    %c0_57 = arith.constant 0 : index
    %132 = vector.load %arg11[%c0_55, %c0_56, %c0_57] : memref<2x128x256xf32, #tpu.memory_space<vmem>>, vector<1x128x256xf32>
    %133 = vector.shape_cast %132 : vector<1x128x256xf32> to vector<128x256xf32>
    %cst_58 = arith.constant dense<0.000000e+00> : vector<8x256xf32>
    %134 = tpu.matmul %131, %133, %cst_58 {dimension_numbers = #tpu.dot_dimension_numbers<[1], [0], [0], [1], [0, 0, 1, 1], [], []>} : vector<8x128xf32>, vector<128x256xf32>, vector<8x256xf32> -> vector<8x256xf32>
    %c0_59 = arith.constant 0 : index
    %c0_60 = arith.constant 0 : index
    %c0_61 = arith.constant 0 : index
    %135 = vector.load %arg12[%c0_59, %c0_60, %c0_61] : memref<2x1x256xf32, #tpu.memory_space<vmem>>, vector<1x1x256xf32>
    %136 = vector.shape_cast %135 : vector<1x1x256xf32> to vector<1x256xf32>
    %137 = vector.broadcast %136 : vector<1x256xf32> to vector<8x256xf32>
    %138 = arith.addf %134, %137 : vector<8x256xf32>
    %139 = arith.mulf %138, %138 : vector<8x256xf32>
    %140 = arith.mulf %138, %139 : vector<8x256xf32>
    %cst_62 = arith.constant 4.471500e-02 : f32
    %141 = vector.broadcast %cst_62 : f32 to vector<8x256xf32>
    %142 = arith.mulf %141, %140 : vector<8x256xf32>
    %143 = arith.addf %138, %142 : vector<8x256xf32>
    %cst_63 = arith.constant 0.797884583 : f32
    %144 = vector.broadcast %cst_63 : f32 to vector<8x256xf32>
    %145 = arith.mulf %144, %143 : vector<8x256xf32>
    %146 = math.tanh %145 : vector<8x256xf32>
    %cst_64 = arith.constant 1.000000e+00 : f32
    %147 = vector.broadcast %cst_64 : f32 to vector<8x256xf32>
    %148 = arith.addf %147, %146 : vector<8x256xf32>
    %cst_65 = arith.constant 5.000000e-01 : f32
    %149 = vector.broadcast %cst_65 : f32 to vector<8x256xf32>
    %150 = arith.mulf %149, %148 : vector<8x256xf32>
    %151 = arith.mulf %138, %150 : vector<8x256xf32>
    %c0_66 = arith.constant 0 : index
    %c0_67 = arith.constant 0 : index
    %c0_68 = arith.constant 0 : index
    %152 = vector.load %arg13[%c0_66, %c0_67, %c0_68] : memref<2x256x128xf32, #tpu.memory_space<vmem>>, vector<1x256x128xf32>
    %153 = vector.shape_cast %152 : vector<1x256x128xf32> to vector<256x128xf32>
    %cst_69 = arith.constant dense<0.000000e+00> : vector<8x128xf32>
    %154 = tpu.matmul %151, %153, %cst_69 {dimension_numbers = #tpu.dot_dimension_numbers<[1], [0], [0], [1], [0, 0, 1, 1], [], []>} : vector<8x256xf32>, vector<256x128xf32>, vector<8x128xf32> -> vector<8x128xf32>
    %c0_70 = arith.constant 0 : index
    %c0_71 = arith.constant 0 : index
    %c0_72 = arith.constant 0 : index
    %155 = vector.load %arg14[%c0_70, %c0_71, %c0_72] : memref<2x1x128xf32, #tpu.memory_space<vmem>>, vector<1x1x128xf32>
    %156 = vector.shape_cast %155 : vector<1x1x128xf32> to vector<1x128xf32>
    %157 = vector.broadcast %156 : vector<1x128xf32> to vector<8x128xf32>
    %158 = arith.addf %154, %157 : vector<8x128xf32>
    %159 = arith.addf %131, %158 : vector<8x128xf32>
    %c0_73 = arith.constant 0 : index
    %c0_74 = arith.constant 0 : index
    %c0_75 = arith.constant 0 : index
    %160 = vector.load %arg15[%c0_73, %c0_74, %c0_75] : memref<2x1x128xf32, #tpu.memory_space<vmem>>, vector<1x1x128xf32>
    %161 = vector.shape_cast %160 : vector<1x1x128xf32> to vector<1x128xf32>
    %c0_76 = arith.constant 0 : index
    %c0_77 = arith.constant 0 : index
    %c0_78 = arith.constant 0 : index
    %162 = vector.load %arg16[%c0_76, %c0_77, %c0_78] : memref<2x1x128xf32, #tpu.memory_space<vmem>>, vector<1x1x128xf32>
    %163 = vector.shape_cast %162 : vector<1x1x128xf32> to vector<1x128xf32>
    %cst_79 = arith.constant dense<0.000000e+00> : vector<8xf32>
    %164 = vector.multi_reduction <add>, %159, %cst_79 [1] : vector<8x128xf32> to vector<8xf32>
    %165 = vector.shape_cast %164 : vector<8xf32> to vector<8x1xf32>
    %cst_80 = arith.constant 1.280000e+02 : f32
    %166 = vector.broadcast %cst_80 : f32 to vector<8x1xf32>
    %167 = arith.divf %165, %166 : vector<8x1xf32>
    %168 = vector.broadcast %167 : vector<8x1xf32> to vector<8x128xf32>
    %169 = arith.subf %159, %168 : vector<8x128xf32>
    %170 = arith.mulf %169, %169 : vector<8x128xf32>
    %cst_81 = arith.constant dense<0.000000e+00> : vector<8xf32>
    %171 = vector.multi_reduction <add>, %170, %cst_81 [1] : vector<8x128xf32> to vector<8xf32>
    %172 = vector.shape_cast %171 : vector<8xf32> to vector<8x1xf32>
    %cst_82 = arith.constant 1.280000e+02 : f32
    %173 = vector.broadcast %cst_82 : f32 to vector<8x1xf32>
    %174 = arith.divf %172, %173 : vector<8x1xf32>
    %175 = vector.broadcast %167 : vector<8x1xf32> to vector<8x128xf32>
    %176 = arith.subf %159, %175 : vector<8x128xf32>
    %cst_83 = arith.constant 9.99999996E-13 : f32
    %177 = vector.broadcast %cst_83 : f32 to vector<8x1xf32>
    %178 = arith.addf %174, %177 : vector<8x1xf32>
    %179 = math.rsqrt %178 : vector<8x1xf32>
    %180 = vector.broadcast %179 : vector<8x1xf32> to vector<8x128xf32>
    %181 = arith.mulf %176, %180 : vector<8x128xf32>
    %182 = vector.broadcast %161 : vector<1x128xf32> to vector<8x128xf32>
    %183 = arith.mulf %181, %182 : vector<8x128xf32>
    %184 = vector.broadcast %163 : vector<1x128xf32> to vector<8x128xf32>
    %185 = arith.addf %183, %184 : vector<8x128xf32>
    %c1 = arith.constant 1 : index
    %c0_84 = arith.constant 0 : index
    %c0_85 = arith.constant 0 : index
    %186 = vector.load %arg5[%c1, %c0_84, %c0_85] : memref<2x128x384xf32, #tpu.memory_space<vmem>>, vector<1x128x384xf32>
    %187 = vector.shape_cast %186 : vector<1x128x384xf32> to vector<128x384xf32>
    %cst_86 = arith.constant dense<0.000000e+00> : vector<8x384xf32>
    %188 = tpu.matmul %185, %187, %cst_86 {dimension_numbers = #tpu.dot_dimension_numbers<[1], [0], [0], [1], [0, 0, 1, 1], [], []>} : vector<8x128xf32>, vector<128x384xf32>, vector<8x384xf32> -> vector<8x384xf32>
    %c1_87 = arith.constant 1 : index
    %c0_88 = arith.constant 0 : index
    %c0_89 = arith.constant 0 : index
    %189 = vector.load %arg6[%c1_87, %c0_88, %c0_89] : memref<2x1x384xf32, #tpu.memory_space<vmem>>, vector<1x1x384xf32>
    %190 = vector.shape_cast %189 : vector<1x1x384xf32> to vector<1x384xf32>
    %191 = vector.broadcast %190 : vector<1x384xf32> to vector<8x384xf32>
    %192 = arith.addf %188, %191 : vector<8x384xf32>
    %193 = vector.extract_strided_slice %192 {offsets = [0, 0], sizes = [8, 32], strides = [1, 1]} : vector<8x384xf32> to vector<8x32xf32>
    %194 = vector.extract_strided_slice %192 {offsets = [0, 128], sizes = [8, 32], strides = [1, 1]} : vector<8x384xf32> to vector<8x32xf32>
    %195 = vector.extract_strided_slice %192 {offsets = [0, 256], sizes = [8, 32], strides = [1, 1]} : vector<8x384xf32> to vector<8x32xf32>
    %cst_90 = arith.constant dense<0.000000e+00> : vector<8x8xf32>
    %196 = tpu.matmul %193, %194, %cst_90 {dimension_numbers = #tpu.dot_dimension_numbers<[1], [1], [0], [0], [0, 0, 1, 0], [], []>} : vector<8x32xf32>, vector<8x32xf32>, vector<8x8xf32> -> vector<8x8xf32>
    %cst_91 = arith.constant 0.176776692 : f32
    %197 = vector.broadcast %cst_91 : f32 to vector<8x8xf32>
    %198 = arith.mulf %196, %197 : vector<8x8xf32>
    %cst_92 = arith.constant dense<0xFF800000> : vector<8xf32>
    %199 = vector.multi_reduction <maximumf>, %198, %cst_92 [1] : vector<8x8xf32> to vector<8xf32>
    %200 = vector.shape_cast %199 : vector<8xf32> to vector<8x1xf32>
    %201 = vector.broadcast %200 : vector<8x1xf32> to vector<8x8xf32>
    %202 = arith.subf %198, %201 : vector<8x8xf32>
    %203 = math.exp %202 : vector<8x8xf32>
    %cst_93 = arith.constant dense<0.000000e+00> : vector<8xf32>
    %204 = vector.multi_reduction <add>, %203, %cst_93 [1] : vector<8x8xf32> to vector<8xf32>
    %205 = vector.shape_cast %204 : vector<8xf32> to vector<8x1xf32>
    %206 = vector.broadcast %205 : vector<8x1xf32> to vector<8x8xf32>
    %207 = arith.divf %203, %206 : vector<8x8xf32>
    %cst_94 = arith.constant dense<0.000000e+00> : vector<8x32xf32>
    %208 = tpu.matmul %207, %195, %cst_94 {dimension_numbers = #tpu.dot_dimension_numbers<[1], [0], [0], [1], [0, 0, 1, 1], [], []>} : vector<8x8xf32>, vector<8x32xf32>, vector<8x32xf32> -> vector<8x32xf32>
    %209 = vector.extract_strided_slice %192 {offsets = [0, 32], sizes = [8, 32], strides = [1, 1]} : vector<8x384xf32> to vector<8x32xf32>
    %210 = vector.extract_strided_slice %192 {offsets = [0, 160], sizes = [8, 32], strides = [1, 1]} : vector<8x384xf32> to vector<8x32xf32>
    %211 = vector.extract_strided_slice %192 {offsets = [0, 288], sizes = [8, 32], strides = [1, 1]} : vector<8x384xf32> to vector<8x32xf32>
    %cst_95 = arith.constant dense<0.000000e+00> : vector<8x8xf32>
    %212 = tpu.matmul %209, %210, %cst_95 {dimension_numbers = #tpu.dot_dimension_numbers<[1], [1], [0], [0], [0, 0, 1, 0], [], []>} : vector<8x32xf32>, vector<8x32xf32>, vector<8x8xf32> -> vector<8x8xf32>
    %cst_96 = arith.constant 0.176776692 : f32
    %213 = vector.broadcast %cst_96 : f32 to vector<8x8xf32>
    %214 = arith.mulf %212, %213 : vector<8x8xf32>
    %cst_97 = arith.constant dense<0xFF800000> : vector<8xf32>
    %215 = vector.multi_reduction <maximumf>, %214, %cst_97 [1] : vector<8x8xf32> to vector<8xf32>
    %216 = vector.shape_cast %215 : vector<8xf32> to vector<8x1xf32>
    %217 = vector.broadcast %216 : vector<8x1xf32> to vector<8x8xf32>
    %218 = arith.subf %214, %217 : vector<8x8xf32>
    %219 = math.exp %218 : vector<8x8xf32>
    %cst_98 = arith.constant dense<0.000000e+00> : vector<8xf32>
    %220 = vector.multi_reduction <add>, %219, %cst_98 [1] : vector<8x8xf32> to vector<8xf32>
    %221 = vector.shape_cast %220 : vector<8xf32> to vector<8x1xf32>
    %222 = vector.broadcast %221 : vector<8x1xf32> to vector<8x8xf32>
    %223 = arith.divf %219, %222 : vector<8x8xf32>
    %cst_99 = arith.constant dense<0.000000e+00> : vector<8x32xf32>
    %224 = tpu.matmul %223, %211, %cst_99 {dimension_numbers = #tpu.dot_dimension_numbers<[1], [0], [0], [1], [0, 0, 1, 1], [], []>} : vector<8x8xf32>, vector<8x32xf32>, vector<8x32xf32> -> vector<8x32xf32>
    %225 = vector.extract_strided_slice %192 {offsets = [0, 64], sizes = [8, 32], strides = [1, 1]} : vector<8x384xf32> to vector<8x32xf32>
    %226 = vector.extract_strided_slice %192 {offsets = [0, 192], sizes = [8, 32], strides = [1, 1]} : vector<8x384xf32> to vector<8x32xf32>
    %227 = vector.extract_strided_slice %192 {offsets = [0, 320], sizes = [8, 32], strides = [1, 1]} : vector<8x384xf32> to vector<8x32xf32>
    %cst_100 = arith.constant dense<0.000000e+00> : vector<8x8xf32>
    %228 = tpu.matmul %225, %226, %cst_100 {dimension_numbers = #tpu.dot_dimension_numbers<[1], [1], [0], [0], [0, 0, 1, 0], [], []>} : vector<8x32xf32>, vector<8x32xf32>, vector<8x8xf32> -> vector<8x8xf32>
    %cst_101 = arith.constant 0.176776692 : f32
    %229 = vector.broadcast %cst_101 : f32 to vector<8x8xf32>
    %230 = arith.mulf %228, %229 : vector<8x8xf32>
    %cst_102 = arith.constant dense<0xFF800000> : vector<8xf32>
    %231 = vector.multi_reduction <maximumf>, %230, %cst_102 [1] : vector<8x8xf32> to vector<8xf32>
    %232 = vector.shape_cast %231 : vector<8xf32> to vector<8x1xf32>
    %233 = vector.broadcast %232 : vector<8x1xf32> to vector<8x8xf32>
    %234 = arith.subf %230, %233 : vector<8x8xf32>
    %235 = math.exp %234 : vector<8x8xf32>
    %cst_103 = arith.constant dense<0.000000e+00> : vector<8xf32>
    %236 = vector.multi_reduction <add>, %235, %cst_103 [1] : vector<8x8xf32> to vector<8xf32>
    %237 = vector.shape_cast %236 : vector<8xf32> to vector<8x1xf32>
    %238 = vector.broadcast %237 : vector<8x1xf32> to vector<8x8xf32>
    %239 = arith.divf %235, %238 : vector<8x8xf32>
    %cst_104 = arith.constant dense<0.000000e+00> : vector<8x32xf32>
    %240 = tpu.matmul %239, %227, %cst_104 {dimension_numbers = #tpu.dot_dimension_numbers<[1], [0], [0], [1], [0, 0, 1, 1], [], []>} : vector<8x8xf32>, vector<8x32xf32>, vector<8x32xf32> -> vector<8x32xf32>
    %241 = vector.extract_strided_slice %192 {offsets = [0, 96], sizes = [8, 32], strides = [1, 1]} : vector<8x384xf32> to vector<8x32xf32>
    %242 = vector.extract_strided_slice %192 {offsets = [0, 224], sizes = [8, 32], strides = [1, 1]} : vector<8x384xf32> to vector<8x32xf32>
    %243 = vector.extract_strided_slice %192 {offsets = [0, 352], sizes = [8, 32], strides = [1, 1]} : vector<8x384xf32> to vector<8x32xf32>
    %cst_105 = arith.constant dense<0.000000e+00> : vector<8x8xf32>
    %244 = tpu.matmul %241, %242, %cst_105 {dimension_numbers = #tpu.dot_dimension_numbers<[1], [1], [0], [0], [0, 0, 1, 0], [], []>} : vector<8x32xf32>, vector<8x32xf32>, vector<8x8xf32> -> vector<8x8xf32>
    %cst_106 = arith.constant 0.176776692 : f32
    %245 = vector.broadcast %cst_106 : f32 to vector<8x8xf32>
    %246 = arith.mulf %244, %245 : vector<8x8xf32>
    %cst_107 = arith.constant dense<0xFF800000> : vector<8xf32>
    %247 = vector.multi_reduction <maximumf>, %246, %cst_107 [1] : vector<8x8xf32> to vector<8xf32>
    %248 = vector.shape_cast %247 : vector<8xf32> to vector<8x1xf32>
    %249 = vector.broadcast %248 : vector<8x1xf32> to vector<8x8xf32>
    %250 = arith.subf %246, %249 : vector<8x8xf32>
    %251 = math.exp %250 : vector<8x8xf32>
    %cst_108 = arith.constant dense<0.000000e+00> : vector<8xf32>
    %252 = vector.multi_reduction <add>, %251, %cst_108 [1] : vector<8x8xf32> to vector<8xf32>
    %253 = vector.shape_cast %252 : vector<8xf32> to vector<8x1xf32>
    %254 = vector.broadcast %253 : vector<8x1xf32> to vector<8x8xf32>
    %255 = arith.divf %251, %254 : vector<8x8xf32>
    %cst_109 = arith.constant dense<0.000000e+00> : vector<8x32xf32>
    %256 = tpu.matmul %255, %243, %cst_109 {dimension_numbers = #tpu.dot_dimension_numbers<[1], [0], [0], [1], [0, 0, 1, 1], [], []>} : vector<8x8xf32>, vector<8x32xf32>, vector<8x32xf32> -> vector<8x32xf32>
    %257 = tpu.concatenate %208, %224, %240, %256 in 1 : vector<8x32xf32>, vector<8x32xf32>, vector<8x32xf32>, vector<8x32xf32> -> vector<8x128xf32>
    %c1_110 = arith.constant 1 : index
    %c0_111 = arith.constant 0 : index
    %c0_112 = arith.constant 0 : index
    %258 = vector.load %arg7[%c1_110, %c0_111, %c0_112] : memref<2x128x128xf32, #tpu.memory_space<vmem>>, vector<1x128x128xf32>
    %259 = vector.shape_cast %258 : vector<1x128x128xf32> to vector<128x128xf32>
    %cst_113 = arith.constant dense<0.000000e+00> : vector<8x128xf32>
    %260 = tpu.matmul %257, %259, %cst_113 {dimension_numbers = #tpu.dot_dimension_numbers<[1], [0], [0], [1], [0, 0, 1, 1], [], []>} : vector<8x128xf32>, vector<128x128xf32>, vector<8x128xf32> -> vector<8x128xf32>
    %c1_114 = arith.constant 1 : index
    %c0_115 = arith.constant 0 : index
    %c0_116 = arith.constant 0 : index
    %261 = vector.load %arg8[%c1_114, %c0_115, %c0_116] : memref<2x1x128xf32, #tpu.memory_space<vmem>>, vector<1x1x128xf32>
    %262 = vector.shape_cast %261 : vector<1x1x128xf32> to vector<1x128xf32>
    %263 = vector.broadcast %262 : vector<1x128xf32> to vector<8x128xf32>
    %264 = arith.addf %260, %263 : vector<8x128xf32>
    %265 = arith.addf %185, %264 : vector<8x128xf32>
    %c1_117 = arith.constant 1 : index
    %c0_118 = arith.constant 0 : index
    %c0_119 = arith.constant 0 : index
    %266 = vector.load %arg9[%c1_117, %c0_118, %c0_119] : memref<2x1x128xf32, #tpu.memory_space<vmem>>, vector<1x1x128xf32>
    %267 = vector.shape_cast %266 : vector<1x1x128xf32> to vector<1x128xf32>
    %c1_120 = arith.constant 1 : index
    %c0_121 = arith.constant 0 : index
    %c0_122 = arith.constant 0 : index
    %268 = vector.load %arg10[%c1_120, %c0_121, %c0_122] : memref<2x1x128xf32, #tpu.memory_space<vmem>>, vector<1x1x128xf32>
    %269 = vector.shape_cast %268 : vector<1x1x128xf32> to vector<1x128xf32>
    %cst_123 = arith.constant dense<0.000000e+00> : vector<8xf32>
    %270 = vector.multi_reduction <add>, %265, %cst_123 [1] : vector<8x128xf32> to vector<8xf32>
    %271 = vector.shape_cast %270 : vector<8xf32> to vector<8x1xf32>
    %cst_124 = arith.constant 1.280000e+02 : f32
    %272 = vector.broadcast %cst_124 : f32 to vector<8x1xf32>
    %273 = arith.divf %271, %272 : vector<8x1xf32>
    %274 = vector.broadcast %273 : vector<8x1xf32> to vector<8x128xf32>
    %275 = arith.subf %265, %274 : vector<8x128xf32>
    %276 = arith.mulf %275, %275 : vector<8x128xf32>
    %cst_125 = arith.constant dense<0.000000e+00> : vector<8xf32>
    %277 = vector.multi_reduction <add>, %276, %cst_125 [1] : vector<8x128xf32> to vector<8xf32>
    %278 = vector.shape_cast %277 : vector<8xf32> to vector<8x1xf32>
    %cst_126 = arith.constant 1.280000e+02 : f32
    %279 = vector.broadcast %cst_126 : f32 to vector<8x1xf32>
    %280 = arith.divf %278, %279 : vector<8x1xf32>
    %281 = vector.broadcast %273 : vector<8x1xf32> to vector<8x128xf32>
    %282 = arith.subf %265, %281 : vector<8x128xf32>
    %cst_127 = arith.constant 9.99999996E-13 : f32
    %283 = vector.broadcast %cst_127 : f32 to vector<8x1xf32>
    %284 = arith.addf %280, %283 : vector<8x1xf32>
    %285 = math.rsqrt %284 : vector<8x1xf32>
    %286 = vector.broadcast %285 : vector<8x1xf32> to vector<8x128xf32>
    %287 = arith.mulf %282, %286 : vector<8x128xf32>
    %288 = vector.broadcast %267 : vector<1x128xf32> to vector<8x128xf32>
    %289 = arith.mulf %287, %288 : vector<8x128xf32>
    %290 = vector.broadcast %269 : vector<1x128xf32> to vector<8x128xf32>
    %291 = arith.addf %289, %290 : vector<8x128xf32>
    %c1_128 = arith.constant 1 : index
    %c0_129 = arith.constant 0 : index
    %c0_130 = arith.constant 0 : index
    %292 = vector.load %arg11[%c1_128, %c0_129, %c0_130] : memref<2x128x256xf32, #tpu.memory_space<vmem>>, vector<1x128x256xf32>
    %293 = vector.shape_cast %292 : vector<1x128x256xf32> to vector<128x256xf32>
    %cst_131 = arith.constant dense<0.000000e+00> : vector<8x256xf32>
    %294 = tpu.matmul %291, %293, %cst_131 {dimension_numbers = #tpu.dot_dimension_numbers<[1], [0], [0], [1], [0, 0, 1, 1], [], []>} : vector<8x128xf32>, vector<128x256xf32>, vector<8x256xf32> -> vector<8x256xf32>
    %c1_132 = arith.constant 1 : index
    %c0_133 = arith.constant 0 : index
    %c0_134 = arith.constant 0 : index
    %295 = vector.load %arg12[%c1_132, %c0_133, %c0_134] : memref<2x1x256xf32, #tpu.memory_space<vmem>>, vector<1x1x256xf32>
    %296 = vector.shape_cast %295 : vector<1x1x256xf32> to vector<1x256xf32>
    %297 = vector.broadcast %296 : vector<1x256xf32> to vector<8x256xf32>
    %298 = arith.addf %294, %297 : vector<8x256xf32>
    %299 = arith.mulf %298, %298 : vector<8x256xf32>
    %300 = arith.mulf %298, %299 : vector<8x256xf32>
    %cst_135 = arith.constant 4.471500e-02 : f32
    %301 = vector.broadcast %cst_135 : f32 to vector<8x256xf32>
    %302 = arith.mulf %301, %300 : vector<8x256xf32>
    %303 = arith.addf %298, %302 : vector<8x256xf32>
    %cst_136 = arith.constant 0.797884583 : f32
    %304 = vector.broadcast %cst_136 : f32 to vector<8x256xf32>
    %305 = arith.mulf %304, %303 : vector<8x256xf32>
    %306 = math.tanh %305 : vector<8x256xf32>
    %cst_137 = arith.constant 1.000000e+00 : f32
    %307 = vector.broadcast %cst_137 : f32 to vector<8x256xf32>
    %308 = arith.addf %307, %306 : vector<8x256xf32>
    %cst_138 = arith.constant 5.000000e-01 : f32
    %309 = vector.broadcast %cst_138 : f32 to vector<8x256xf32>
    %310 = arith.mulf %309, %308 : vector<8x256xf32>
    %311 = arith.mulf %298, %310 : vector<8x256xf32>
    %c1_139 = arith.constant 1 : index
    %c0_140 = arith.constant 0 : index
    %c0_141 = arith.constant 0 : index
    %312 = vector.load %arg13[%c1_139, %c0_140, %c0_141] : memref<2x256x128xf32, #tpu.memory_space<vmem>>, vector<1x256x128xf32>
    %313 = vector.shape_cast %312 : vector<1x256x128xf32> to vector<256x128xf32>
    %cst_142 = arith.constant dense<0.000000e+00> : vector<8x128xf32>
    %314 = tpu.matmul %311, %313, %cst_142 {dimension_numbers = #tpu.dot_dimension_numbers<[1], [0], [0], [1], [0, 0, 1, 1], [], []>} : vector<8x256xf32>, vector<256x128xf32>, vector<8x128xf32> -> vector<8x128xf32>
    %c1_143 = arith.constant 1 : index
    %c0_144 = arith.constant 0 : index
    %c0_145 = arith.constant 0 : index
    %315 = vector.load %arg14[%c1_143, %c0_144, %c0_145] : memref<2x1x128xf32, #tpu.memory_space<vmem>>, vector<1x1x128xf32>
    %316 = vector.shape_cast %315 : vector<1x1x128xf32> to vector<1x128xf32>
    %317 = vector.broadcast %316 : vector<1x128xf32> to vector<8x128xf32>
    %318 = arith.addf %314, %317 : vector<8x128xf32>
    %319 = arith.addf %291, %318 : vector<8x128xf32>
    %c1_146 = arith.constant 1 : index
    %c0_147 = arith.constant 0 : index
    %c0_148 = arith.constant 0 : index
    %320 = vector.load %arg15[%c1_146, %c0_147, %c0_148] : memref<2x1x128xf32, #tpu.memory_space<vmem>>, vector<1x1x128xf32>
    %321 = vector.shape_cast %320 : vector<1x1x128xf32> to vector<1x128xf32>
    %c1_149 = arith.constant 1 : index
    %c0_150 = arith.constant 0 : index
    %c0_151 = arith.constant 0 : index
    %322 = vector.load %arg16[%c1_149, %c0_150, %c0_151] : memref<2x1x128xf32, #tpu.memory_space<vmem>>, vector<1x1x128xf32>
    %323 = vector.shape_cast %322 : vector<1x1x128xf32> to vector<1x128xf32>
    %cst_152 = arith.constant dense<0.000000e+00> : vector<8xf32>
    %324 = vector.multi_reduction <add>, %319, %cst_152 [1] : vector<8x128xf32> to vector<8xf32>
    %325 = vector.shape_cast %324 : vector<8xf32> to vector<8x1xf32>
    %cst_153 = arith.constant 1.280000e+02 : f32
    %326 = vector.broadcast %cst_153 : f32 to vector<8x1xf32>
    %327 = arith.divf %325, %326 : vector<8x1xf32>
    %328 = vector.broadcast %327 : vector<8x1xf32> to vector<8x128xf32>
    %329 = arith.subf %319, %328 : vector<8x128xf32>
    %330 = arith.mulf %329, %329 : vector<8x128xf32>
    %cst_154 = arith.constant dense<0.000000e+00> : vector<8xf32>
    %331 = vector.multi_reduction <add>, %330, %cst_154 [1] : vector<8x128xf32> to vector<8xf32>
    %332 = vector.shape_cast %331 : vector<8xf32> to vector<8x1xf32>
    %cst_155 = arith.constant 1.280000e+02 : f32
    %333 = vector.broadcast %cst_155 : f32 to vector<8x1xf32>
    %334 = arith.divf %332, %333 : vector<8x1xf32>
    %335 = vector.broadcast %327 : vector<8x1xf32> to vector<8x128xf32>
    %336 = arith.subf %319, %335 : vector<8x128xf32>
    %cst_156 = arith.constant 9.99999996E-13 : f32
    %337 = vector.broadcast %cst_156 : f32 to vector<8x1xf32>
    %338 = arith.addf %334, %337 : vector<8x1xf32>
    %339 = math.rsqrt %338 : vector<8x1xf32>
    %340 = vector.broadcast %339 : vector<8x1xf32> to vector<8x128xf32>
    %341 = arith.mulf %336, %340 : vector<8x128xf32>
    %342 = vector.broadcast %321 : vector<1x128xf32> to vector<8x128xf32>
    %343 = arith.mulf %341, %342 : vector<8x128xf32>
    %344 = vector.broadcast %323 : vector<1x128xf32> to vector<8x128xf32>
    %345 = arith.addf %343, %344 : vector<8x128xf32>
    %c0_157 = arith.constant 0 : index
    %c0_158 = arith.constant 0 : index
    %346 = vector.load %arg17[%c0_157, %c0_158] : memref<128x256xf32, #tpu.memory_space<vmem>>, vector<128x256xf32>
    %cst_159 = arith.constant dense<0.000000e+00> : vector<8x256xf32>
    %347 = tpu.matmul %345, %346, %cst_159 {dimension_numbers = #tpu.dot_dimension_numbers<[1], [0], [0], [1], [0, 0, 1, 1], [], []>} : vector<8x128xf32>, vector<128x256xf32>, vector<8x256xf32> -> vector<8x256xf32>
    %c0_160 = arith.constant 0 : index
    %c0_161 = arith.constant 0 : index
    %348 = vector.load %arg18[%c0_160, %c0_161] : memref<1x256xf32, #tpu.memory_space<vmem>>, vector<1x256xf32>
    %349 = vector.broadcast %348 : vector<1x256xf32> to vector<8x256xf32>
    %350 = arith.addf %347, %349 : vector<8x256xf32>
    %cst_162 = arith.constant 0.000000e+00 : f32
    %351 = vector.broadcast %cst_162 : f32 to vector<8x256xf32>
    %352 = arith.maximumf %350, %351 : vector<8x256xf32>
    %c0_163 = arith.constant 0 : index
    %c0_164 = arith.constant 0 : index
    %c0_165 = arith.constant 0 : index
    %353 = vector.load %arg2[%c0_163, %c0_164, %c0_165] : memref<1x8x256xi32, #tpu.memory_space<vmem>>, vector<1x8x256xi32>
    %354 = vector.shape_cast %353 : vector<1x8x256xi32> to vector<8x256xi32>
    %c429496729_i32 = arith.constant 429496729 : i32
    %355 = vector.broadcast %c429496729_i32 : i32 to vector<8x256xi32>
    %356 = arith.cmpi uge, %354, %355 : vector<8x256xi32>
    %cst_166 = arith.constant 1.11111116 : f32
    %357 = vector.broadcast %cst_166 : f32 to vector<8x256xf32>
    %358 = arith.mulf %352, %357 : vector<8x256xf32>
    %cst_167 = arith.constant 0.000000e+00 : f32
    %359 = vector.broadcast %cst_167 : f32 to vector<8x256xf32>
    %360 = arith.select %356, %358, %359 : vector<8x256xi1>, vector<8x256xf32>
    %c0_168 = arith.constant 0 : index
    %c0_169 = arith.constant 0 : index
    %c0_170 = arith.constant 0 : index
    %361 = vector.load %arg19[%c0_168, %c0_169, %c0_170] : memref<1x8x256xf32, #tpu.memory_space<vmem>>, vector<1x8x256xf32>
    %362 = vector.shape_cast %361 : vector<1x8x256xf32> to vector<8x256xf32>
    %363 = vector.shape_cast %360 : vector<8x256xf32> to vector<1x8x256xf32>
    tpu.vector_store %arg19[%c0_168, %c0_169, %c0_170], %363 {strides = array<i32>} : memref<1x8x256xf32, #tpu.memory_space<vmem>>, vector<1x8x256xf32>,
    return
  }
  func.func @transform_0(%arg0: i32) -> (i32, i32, i32) {
    %c0_i32 = arith.constant 0 : i32
    %c0_i32_0 = arith.constant 0 : i32
    %c0_i32_1 = arith.constant 0 : i32
    return %arg0, %c0_i32, %c0_i32_0 : i32, i32, i32
  }
  func.func @transform_1(%arg0: i32) -> (i32, i32, i32) {
    %c0_i32 = arith.constant 0 : i32
    %c0_i32_0 = arith.constant 0 : i32
    %c0_i32_1 = arith.constant 0 : i32
    return %arg0, %c0_i32, %c0_i32_0 : i32, i32, i32
  }
  func.func @transform_2(%arg0: i32) -> (i32, i32) {
    %c0_i32 = arith.constant 0 : i32
    %c0_i32_0 = arith.constant 0 : i32
    %c0_i32_1 = arith.constant 0 : i32
    return %c0_i32, %c0_i32_0 : i32, i32
  }
  func.func @transform_3(%arg0: i32) -> (i32, i32) {
    %c0_i32 = arith.constant 0 : i32
    %c0_i32_0 = arith.constant 0 : i32
    %c0_i32_1 = arith.constant 0 : i32
    return %c0_i32, %c0_i32_0 : i32, i32
  }
  func.func @transform_4(%arg0: i32) -> (i32, i32, i32) {
    %c0_i32 = arith.constant 0 : i32
    %c0_i32_0 = arith.constant 0 : i32
    %c0_i32_1 = arith.constant 0 : i32
    %c0_i32_2 = arith.constant 0 : i32
    return %c0_i32, %c0_i32_0, %c0_i32_1 : i32, i32, i32
  }
  func.func @transform_5(%arg0: i32) -> (i32, i32, i32) {
    %c0_i32 = arith.constant 0 : i32
    %c0_i32_0 = arith.constant 0 : i32
    %c0_i32_1 = arith.constant 0 : i32
    %c0_i32_2 = arith.constant 0 : i32
    return %c0_i32, %c0_i32_0, %c0_i32_1 : i32, i32, i32
  }
  func.func @transform_6(%arg0: i32) -> (i32, i32, i32) {
    %c0_i32 = arith.constant 0 : i32
    %c0_i32_0 = arith.constant 0 : i32
    %c0_i32_1 = arith.constant 0 : i32
    %c0_i32_2 = arith.constant 0 : i32
    return %c0_i32, %c0_i32_0, %c0_i32_1 : i32, i32, i32
  }
  func.func @transform_7(%arg0: i32) -> (i32, i32, i32) {
    %c0_i32 = arith.constant 0 : i32
    %c0_i32_0 = arith.constant 0 : i32
    %c0_i32_1 = arith.constant 0 : i32
    %c0_i32_2 = arith.constant 0 : i32
    return %c0_i32, %c0_i32_0, %c0_i32_1 : i32, i32, i32
  }
  func.func @transform_8(%arg0: i32) -> (i32, i32, i32) {
    %c0_i32 = arith.constant 0 : i32
    %c0_i32_0 = arith.constant 0 : i32
    %c0_i32_1 = arith.constant 0 : i32
    %c0_i32_2 = arith.constant 0 : i32
    return %c0_i32, %c0_i32_0, %c0_i32_1 : i32, i32, i32
  }
  func.func @transform_9(%arg0: i32) -> (i32, i32, i32) {
    %c0_i32 = arith.constant 0 : i32
    %c0_i32_0 = arith.constant 0 : i32
    %c0_i32_1 = arith.constant 0 : i32
    %c0_i32_2 = arith.constant 0 : i32
    return %c0_i32, %c0_i32_0, %c0_i32_1 : i32, i32, i32
  }
  func.func @transform_10(%arg0: i32) -> (i32, i32, i32) {
    %c0_i32 = arith.constant 0 : i32
    %c0_i32_0 = arith.constant 0 : i32
    %c0_i32_1 = arith.constant 0 : i32
    %c0_i32_2 = arith.constant 0 : i32
    return %c0_i32, %c0_i32_0, %c0_i32_1 : i32, i32, i32
  }
  func.func @transform_11(%arg0: i32) -> (i32, i32, i32) {
    %c0_i32 = arith.constant 0 : i32
    %c0_i32_0 = arith.constant 0 : i32
    %c0_i32_1 = arith.constant 0 : i32
    %c0_i32_2 = arith.constant 0 : i32
    return %c0_i32, %c0_i32_0, %c0_i32_1 : i32, i32, i32
  }
  func.func @transform_12(%arg0: i32) -> (i32, i32, i32) {
    %c0_i32 = arith.constant 0 : i32
    %c0_i32_0 = arith.constant 0 : i32
    %c0_i32_1 = arith.constant 0 : i32
    %c0_i32_2 = arith.constant 0 : i32
    return %c0_i32, %c0_i32_0, %c0_i32_1 : i32, i32, i32
  }
  func.func @transform_13(%arg0: i32) -> (i32, i32, i32) {
    %c0_i32 = arith.constant 0 : i32
    %c0_i32_0 = arith.constant 0 : i32
    %c0_i32_1 = arith.constant 0 : i32
    %c0_i32_2 = arith.constant 0 : i32
    return %c0_i32, %c0_i32_0, %c0_i32_1 : i32, i32, i32
  }
  func.func @transform_14(%arg0: i32) -> (i32, i32, i32) {
    %c0_i32 = arith.constant 0 : i32
    %c0_i32_0 = arith.constant 0 : i32
    %c0_i32_1 = arith.constant 0 : i32
    %c0_i32_2 = arith.constant 0 : i32
    return %c0_i32, %c0_i32_0, %c0_i32_1 : i32, i32, i32
  }
  func.func @transform_15(%arg0: i32) -> (i32, i32, i32) {
    %c0_i32 = arith.constant 0 : i32
    %c0_i32_0 = arith.constant 0 : i32
    %c0_i32_1 = arith.constant 0 : i32
    %c0_i32_2 = arith.constant 0 : i32
    return %c0_i32, %c0_i32_0, %c0_i32_1 : i32, i32, i32
  }
  func.func @transform_16(%arg0: i32) -> (i32, i32) {
    %c0_i32 = arith.constant 0 : i32
    %c0_i32_0 = arith.constant 0 : i32
    %c0_i32_1 = arith.constant 0 : i32
    return %c0_i32, %c0_i32_0 : i32, i32
  }
  func.func @transform_17(%arg0: i32) -> (i32, i32) {
    %c0_i32 = arith.constant 0 : i32
    %c0_i32_0 = arith.constant 0 : i32
    %c0_i32_1 = arith.constant 0 : i32
    return %c0_i32, %c0_i32_0 : i32, i32
  }
  func.func @transform_18(%arg0: i32) -> (i32, i32, i32) {
    %c0_i32 = arith.constant 0 : i32
    %c0_i32_0 = arith.constant 0 : i32
    %c0_i32_1 = arith.constant 0 : i32
    return %arg0, %c0_i32, %c0_i32_0 : i32, i32, i32
  }
}

</mosaic_0001>

<llo_original>
// kernel: text_encoder_forward.1
$region0: #{text_encoder_forward.1}
  #allocation0 [shape = 'u32[]', space=smem, size = 0x4, offset = 0x4, fixed_abs, tag = 'smem constant byte address 0x4 - core index']
  #allocation1 [shape = 'u32[72,128]{1,0:T(1,128)}', space=vmem, size = 0x9000, scoped, tag = 'internal scratch']
  %s0 = inlined_call_operand.vmem [shape: f32[2,8,128], index: 0, kind: input, shape index: {}]
  %s1 = inlined_call_operand.vmem [shape: u32[2,8,256], index: 1, kind: input, shape index: {}]
  %s2 = inlined_call_operand.vmem [shape: f32[1,128], index: 2, kind: input, shape index: {}]
  %s3 = inlined_call_operand.vmem [shape: f32[1,128], index: 3, kind: input, shape index: {}]
  %s4 = inlined_call_operand.hbm [shape: f32[2,128,384], index: 4, kind: input, shape index: {}]
  %s5 = inlined_call_operand.vmem [shape: f32[2,1,384], index: 5, kind: input, shape index: {}]
  %s6 = inlined_call_operand.hbm [shape: f32[2,128,128], index: 6, kind: input, shape index: {}]
  %s7 = inlined_call_operand.vmem [shape: f32[2,1,128], index: 7, kind: input, shape index: {}]
  %s8 = inlined_call_operand.vmem [shape: f32[2,1,128], index: 8, kind: input, shape index: {}]
  %s9 = inlined_call_operand.vmem [shape: f32[2,1,128], index: 9, kind: input, shape index: {}]
  %s10 = inlined_call_operand.hbm [shape: f32[2,128,256], index: 10, kind: input, shape index: {}]
  %s11 = inlined_call_operand.vmem [shape: f32[2,1,256], index: 11, kind: input, shape index: {}]
  %s12 = inlined_call_operand.hbm [shape: f32[2,256,128], index: 12, kind: input, shape index: {}]
  %s13 = inlined_call_operand.vmem [shape: f32[2,1,128], index: 13, kind: input, shape index: {}]
  %s14 = inlined_call_operand.vmem [shape: f32[2,1,128], index: 14, kind: input, shape index: {}]
  %s15 = inlined_call_operand.vmem [shape: f32[2,1,128], index: 15, kind: input, shape index: {}]
  %s16 = inlined_call_operand.hbm [shape: f32[128,256], index: 16, kind: input, shape index: {}]
  %s17 = inlined_call_operand.vmem [shape: f32[1,256], index: 17, kind: input, shape index: {}]
  %s18 = inlined_call_operand.hbm [shape: f32[2,8,256], index: 18, kind: output, shape index: {}]
  %s19 = sld [smem:[#allocation0]]
  $region125: #{text_encoder_forward.1} parent=0
    _
  %s21 = ssub.s32 1, %s19
  %s22 = scalar_select 0, %s21, %s19
  $region1: #{text_encoder_forward.1} parent=0
    #allocation2 [shape = 'u8[393216]{0}', space=vmem, size = 0x60000, scoped, tag = 'input window, operand 4, single buffered']
    #allocation3 [shape = 's32[2]{0}', space=sflag, size = 0x8, scoped, tag = 'scoped memory for text_encoder_forward.1']
    #allocation4 [shape = 's32[2]{0}', space=sflag, size = 0x8, scoped, tag = 'scoped memory for text_encoder_forward.1']
    #allocation5 [shape = 'u8[131072]{0}', space=vmem, size = 0x20000, scoped, tag = 'input window, operand 6, single buffered']
    #allocation6 [shape = 's32[1]{0}', space=sflag, size = 0x4, scoped, tag = 'scoped memory for text_encoder_forward.1']
    #allocation7 [shape = 'u8[262144]{0}', space=vmem, size = 0x40000, scoped, tag = 'input window, operand 10, single buffered']
    #allocation8 [shape = 'u8[262144]{0}', space=vmem, size = 0x40000, scoped, tag = 'input window, operand 12, single buffered']
    #allocation9 [shape = 's32[1]{0}', space=sflag, size = 0x4, scoped, tag = 'scoped memory for text_encoder_forward.1']
    #allocation10 [shape = 'u8[131072]{0}', space=vmem, size = 0x20000, scoped, tag = 'input window, operand 16, single buffered']
    #allocation11 [shape = 'u8[16384]{0}', space=vmem, size = 0x4000, scoped, tag = 'output window, operand 0']
    %23 = vsyncpa [#allocation3], 0
    %24 = vsyncpa [#allocation6], 0
    %25 = vsyncpa [#allocation9], 0
    %26 = vsyncpa [#allocation4], 0
    %s27 = scalar_lea.sflag [#allocation4], 1
    %28 = vsyncpa %s27, 0
    loop: start=0, step=1, limit=4
    $region2: #{text_encoder_forward.1} parent=1 // loop_pre_header
      _
    $region3: #{text_encoder_forward.1} parent=1 // loop_header
      %s30 = sphi 0, %s34
      %p31 = scmp.ge.s32.totalorder %s30, 4
      %s40 = sphi 0, %s42
      %s43 = sphi 0, %s40
      %s44 = sphi 0, %s43
      %s60 = sphi 0, %s44
      %s66 = sphi 0, %s68
      %s69 = sphi 0, %s66
      %s70 = sphi 0, %s69
      %s86 = sphi 0, %s70
      %s90 = sphi 0, %s90
      %s92 = sphi 0, %s90
      %s93 = sphi 0, %s92
      %s107 = sphi 0, %s93
      %s111 = sphi 0, %s111
      %s113 = sphi 0, %s111
      %s114 = sphi 0, %s113
      %s128 = sphi 0, %s114
      %s132 = sphi 0, %s132
      %s134 = sphi 0, %s132
      %s135 = sphi 0, %s134
      %s149 = sphi 0, %s135
      %s153 = sphi 0, %s153
      %s155 = sphi 0, %s153
      %s156 = sphi 0, %s155
      %s170 = sphi 0, %s156
      %s174 = sphi 0, %s174
      %s176 = sphi 0, %s174
      %s177 = sphi 0, %s176
      %s191 = sphi 0, %s177
      %s195 = sphi 0, %s195
      %s197 = sphi 0, %s195
      %s198 = sphi 0, %s197
      %s212 = sphi 0, %s198
      %s216 = sphi 0, %s216
      %s218 = sphi 0, %s216
      %s219 = sphi 0, %s218
      %s233 = sphi 0, %s219
      %s237 = sphi 0, %s237
      %s239 = sphi 0, %s237
      %s240 = sphi 0, %s239
      %s254 = sphi 0, %s240
      %s258 = sphi 0, %s258
      %s260 = sphi 0, %s258
      %s261 = sphi 0, %s260
      %s275 = sphi 0, %s261
      %s279 = sphi 0, %s279
      %s281 = sphi 0, %s279
      %s282 = sphi 0, %s281
      %s296 = sphi 0, %s282
      %s300 = sphi 0, %s300
      %s302 = sphi 0, %s300
      %s303 = sphi 0, %s302
      %s317 = sphi 0, %s303
      %s321 = sphi 0, %s321
      %s323 = sphi 0, %s321
      %s324 = sphi 0, %s323
      %s338 = sphi 0, %s324
      %s342 = sphi 0, %s342
      %s344 = sphi 0, %s342
      %s345 = sphi 0, %s344
      %s359 = sphi 0, %s345
      %s363 = sphi 0, %s363
      %s365 = sphi 0, %s363
      %s366 = sphi 0, %s365
      %s380 = sphi 0, %s366
      %s384 = sphi 0, %s384
      %s386 = sphi 0, %s384
      %s387 = sphi 0, %s386
      %s401 = sphi 0, %s387
      %s405 = sphi 0, %s405
      %s407 = sphi 0, %s405
      %s408 = sphi 0, %s407
      %s422 = sphi 0, %s408
      %s428 = sphi 0, %s430
      %s431 = sphi 0, %s428
      %s432 = sphi 0, %s431
      %s448 = sphi 0, %s432
    $region4: #{text_encoder_forward.1} parent=1 // loop_header_branch
      %33 = sbr.rel (%p31) target = $region8
    $region5: #{text_encoder_forward.1} parent=1 // loop_body
      %s35 = ssub.s32 %s30, 1
      %s36 = ssub.s32 %s30, 2
      %s37 = sadd.s32 %s30, 1
      %s38 = ssub.s32 %s30, %s37
      %p39 = scmp.eq.s32.totalorder %s38, 0
      %s41 = sadd.s32 %s40, 1
      %s42 = scalar_select %p39, %s40, %s41
      %p45 = pneg %p39
      %p46 = scmp.eq.s32.totalorder %s30, 1
      %p47 = por %p45, %p46
      %p48 = scmp.ne.s32.totalorder %s40, %s43
      %p49 = scmp.eq.s32.totalorder %s30, 0
      %p50 = por %p48, %p49
      %p51 = scmp.ne.s32.totalorder %s40, %s43
      %p52 = scmp.eq.s32.totalorder %s35, 1
      %p53 = por %p51, %p52
      %p54 = scmp.ne.s32.totalorder %s43, %s44
      %p55 = scmp.eq.s32.totalorder %s35, 0
      %p56 = por %p54, %p55
      %p57 = scmp.ne.s32.totalorder %s43, %s44
      %p58 = scmp.eq.s32.totalorder %s36, 1
      %p59 = por %p57, %p58
      %p61 = scmp.ne.s32.totalorder %s44, %s60
      %p62 = scmp.eq.s32.totalorder %s36, 0
      %p63 = por %p61, %p62
      %s64 = ssub.s32 %s30, %s37
      %p65 = scmp.eq.s32.totalorder %s64, 0
      %s67 = sadd.s32 %s66, 1
      %s68 = scalar_select %p65, %s66, %s67
      %p71 = pneg %p65
      %p72 = scmp.eq.s32.totalorder %s30, 1
      %p73 = por %p71, %p72
      %p74 = scmp.ne.s32.totalorder %s66, %s69
      %p75 = scmp.eq.s32.totalorder %s30, 0
      %p76 = por %p74, %p75
      %p77 = scmp.ne.s32.totalorder %s66, %s69
      %p78 = scmp.eq.s32.totalorder %s35, 1
      %p79 = por %p77, %p78
      %p80 = scmp.ne.s32.totalorder %s69, %s70
      %p81 = scmp.eq.s32.totalorder %s35, 0
      %p82 = por %p80, %p81
      %p83 = scmp.ne.s32.totalorder %s69, %s70
      %p84 = scmp.eq.s32.totalorder %s36, 1
      %p85 = por %p83, %p84
      %p87 = scmp.ne.s32.totalorder %s70, %s86
      %p88 = scmp.eq.s32.totalorder %s36, 0
      %p89 = por %p87, %p88
      %s91 = sadd.s32 %s90, 1
      %p94 = scmp.eq.s32.totalorder %s30, 1
      %p95 = scmp.ne.s32.totalorder %s90, %s92
      %p96 = scmp.eq.s32.totalorder %s30, 0
      %p97 = por %p95, %p96
      %p98 = scmp.ne.s32.totalorder %s90, %s92
      %p99 = scmp.eq.s32.totalorder %s35, 1
      %p100 = por %p98, %p99
      %p101 = scmp.ne.s32.totalorder %s92, %s93
      %p102 = scmp.eq.s32.totalorder %s35, 0
      %p103 = por %p101, %p102
      %p104 = scmp.ne.s32.totalorder %s92, %s93
      %p105 = scmp.eq.s32.totalorder %s36, 1
      %p106 = por %p104, %p105
      %p108 = scmp.ne.s32.totalorder %s93, %s107
      %p109 = scmp.eq.s32.totalorder %s36, 0
      %p110 = por %p108, %p109
      %s112 = sadd.s32 %s111, 1
      %p115 = scmp.eq.s32.totalorder %s30, 1
      %p116 = scmp.ne.s32.totalorder %s111, %s113
      %p117 = scmp.eq.s32.totalorder %s30, 0
      %p118 = por %p116, %p117
      %p119 = scmp.ne.s32.totalorder %s111, %s113
      %p120 = scmp.eq.s32.totalorder %s35, 1
      %p121 = por %p119, %p120
      %p122 = scmp.ne.s32.totalorder %s113, %s114
      %p123 = scmp.eq.s32.totalorder %s35, 0
      %p124 = por %p122, %p123
      %p125 = scmp.ne.s32.totalorder %s113, %s114
      %p126 = scmp.eq.s32.totalorder %s36, 1
      %p127 = por %p125, %p126
      %p129 = scmp.ne.s32.totalorder %s114, %s128
      %p130 = scmp.eq.s32.totalorder %s36, 0
      %p131 = por %p129, %p130
      %s133 = sadd.s32 %s132, 1
      %p136 = scmp.eq.s32.totalorder %s30, 1
      %p137 = scmp.ne.s32.totalorder %s132, %s134
      %p138 = scmp.eq.s32.totalorder %s30, 0
      %p139 = por %p137, %p138
      %p140 = scmp.ne.s32.totalorder %s132, %s134
      %p141 = scmp.eq.s32.totalorder %s35, 1
      %p142 = por %p140, %p141
      %p143 = scmp.ne.s32.totalorder %s134, %s135
      %p144 = scmp.eq.s32.totalorder %s35, 0
      %p145 = por %p143, %p144
      %p146 = scmp.ne.s32.totalorder %s134, %s135
      %p147 = scmp.eq.s32.totalorder %s36, 1
      %p148 = por %p146, %p147
      %p150 = scmp.ne.s32.totalorder %s135, %s149
      %p151 = scmp.eq.s32.totalorder %s36, 0
      %p152 = por %p150, %p151
      %s154 = sadd.s32 %s153, 1
      %p157 = scmp.eq.s32.totalorder %s30, 1
      %p158 = scmp.ne.s32.totalorder %s153, %s155
      %p159 = scmp.eq.s32.totalorder %s30, 0
      %p160 = por %p158, %p159
      %p161 = scmp.ne.s32.totalorder %s153, %s155
      %p162 = scmp.eq.s32.totalorder %s35, 1
      %p163 = por %p161, %p162
      %p164 = scmp.ne.s32.totalorder %s155, %s156
      %p165 = scmp.eq.s32.totalorder %s35, 0
      %p166 = por %p164, %p165
      %p167 = scmp.ne.s32.totalorder %s155, %s156
      %p168 = scmp.eq.s32.totalorder %s36, 1
      %p169 = por %p167, %p168
      %p171 = scmp.ne.s32.totalorder %s156, %s170
      %p172 = scmp.eq.s32.totalorder %s36, 0
      %p173 = por %p171, %p172
      %s175 = sadd.s32 %s174, 1
      %p178 = scmp.eq.s32.totalorder %s30, 1
      %p179 = scmp.ne.s32.totalorder %s174, %s176
      %p180 = scmp.eq.s32.totalorder %s30, 0
      %p181 = por %p179, %p180
      %p182 = scmp.ne.s32.totalorder %s174, %s176
      %p183 = scmp.eq.s32.totalorder %s35, 1
      %p184 = por %p182, %p183
      %p185 = scmp.ne.s32.totalorder %s176, %s177
      %p186 = scmp.eq.s32.totalorder %s35, 0
      %p187 = por %p185, %p186
      %p188 = scmp.ne.s32.totalorder %s176, %s177
      %p189 = scmp.eq.s32.totalorder %s36, 1
      %p190 = por %p188, %p189
      %p192 = scmp.ne.s32.totalorder %s177, %s191
      %p193 = scmp.eq.s32.totalorder %s36, 0
      %p194 = por %p192, %p193
      %s196 = sadd.s32 %s195, 1
      %p199 = scmp.eq.s32.totalorder %s30, 1
      %p200 = scmp.ne.s32.totalorder %s195, %s197
      %p201 = scmp.eq.s32.totalorder %s30, 0
      %p202 = por %p200, %p201
      %p203 = scmp.ne.s32.totalorder %s195, %s197
      %p204 = scmp.eq.s32.totalorder %s35, 1
      %p205 = por %p203, %p204
      %p206 = scmp.ne.s32.totalorder %s197, %s198
      %p207 = scmp.eq.s32.totalorder %s35, 0
      %p208 = por %p206, %p207
      %p209 = scmp.ne.s32.totalorder %s197, %s198
      %p210 = scmp.eq.s32.totalorder %s36, 1
      %p211 = por %p209, %p210
      %p213 = scmp.ne.s32.totalorder %s198, %s212
      %p214 = scmp.eq.s32.totalorder %s36, 0
      %p215 = por %p213, %p214
      %s217 = sadd.s32 %s216, 1
      %p220 = scmp.eq.s32.totalorder %s30, 1
      %p221 = scmp.ne.s32.totalorder %s216, %s218
      %p222 = scmp.eq.s32.totalorder %s30, 0
      %p223 = por %p221, %p222
      %p224 = scmp.ne.s32.totalorder %s216, %s218
      %p225 = scmp.eq.s32.totalorder %s35, 1
      %p226 = por %p224, %p225
      %p227 = scmp.ne.s32.totalorder %s218, %s219
      %p228 = scmp.eq.s32.totalorder %s35, 0
      %p229 = por %p227, %p228
      %p230 = scmp.ne.s32.totalorder %s218, %s219
      %p231 = scmp.eq.s32.totalorder %s36, 1
      %p232 = por %p230, %p231
      %p234 = scmp.ne.s32.totalorder %s219, %s233
      %p235 = scmp.eq.s32.totalorder %s36, 0
      %p236 = por %p234, %p235
      %s238 = sadd.s32 %s237, 1
      %p241 = scmp.eq.s32.totalorder %s30, 1
      %p242 = scmp.ne.s32.totalorder %s237, %s239
      %p243 = scmp.eq.s32.totalorder %s30, 0
      %p244 = por %p242, %p243
      %p245 = scmp.ne.s32.totalorder %s237, %s239
      %p246 = scmp.eq.s32.totalorder %s35, 1
      %p247 = por %p245, %p246
      %p248 = scmp.ne.s32.totalorder %s239, %s240
      %p249 = scmp.eq.s32.totalorder %s35, 0
      %p250 = por %p248, %p249
      %p251 = scmp.ne.s32.totalorder %s239, %s240
      %p252 = scmp.eq.s32.totalorder %s36, 1
      %p253 = por %p251, %p252
      %p255 = scmp.ne.s32.totalorder %s240, %s254
      %p256 = scmp.eq.s32.totalorder %s36, 0
      %p257 = por %p255, %p256
      %s259 = sadd.s32 %s258, 1
      %p262 = scmp.eq.s32.totalorder %s30, 1
      %p263 = scmp.ne.s32.totalorder %s258, %s260
      %p264 = scmp.eq.s32.totalorder %s30, 0
      %p265 = por %p263, %p264
      %p266 = scmp.ne.s32.totalorder %s258, %s260
      %p267 = scmp.eq.s32.totalorder %s35, 1
      %p268 = por %p266, %p267
      %p269 = scmp.ne.s32.totalorder %s260, %s261
      %p270 = scmp.eq.s32.totalorder %s35, 0
      %p271 = por %p269, %p270
      %p272 = scmp.ne.s32.totalorder %s260, %s261
      %p273 = scmp.eq.s32.totalorder %s36, 1
      %p274 = por %p272, %p273
      %p276 = scmp.ne.s32.totalorder %s261, %s275
      %p277 = scmp.eq.s32.totalorder %s36, 0
      %p278 = por %p276, %p277
      %s280 = sadd.s32 %s279, 1
      %p283 = scmp.eq.s32.totalorder %s30, 1
      %p284 = scmp.ne.s32.totalorder %s279, %s281
      %p285 = scmp.eq.s32.totalorder %s30, 0
      %p286 = por %p284, %p285
      %p287 = scmp.ne.s32.totalorder %s279, %s281
      %p288 = scmp.eq.s32.totalorder %s35, 1
      %p289 = por %p287, %p288
      %p290 = scmp.ne.s32.totalorder %s281, %s282
      %p291 = scmp.eq.s32.totalorder %s35, 0
      %p292 = por %p290, %p291
      %p293 = scmp.ne.s32.totalorder %s281, %s282
      %p294 = scmp.eq.s32.totalorder %s36, 1
      %p295 = por %p293, %p294
      %p297 = scmp.ne.s32.totalorder %s282, %s296
      %p298 = scmp.eq.s32.totalorder %s36, 0
      %p299 = por %p297, %p298
      %s301 = sadd.s32 %s300, 1
      %p304 = scmp.eq.s32.totalorder %s30, 1
      %p305 = scmp.ne.s32.totalorder %s300, %s302
      %p306 = scmp.eq.s32.totalorder %s30, 0
      %p307 = por %p305, %p306
      %p308 = scmp.ne.s32.totalorder %s300, %s302
      %p309 = scmp.eq.s32.totalorder %s35, 1
      %p310 = por %p308, %p309
      %p311 = scmp.ne.s32.totalorder %s302, %s303
      %p312 = scmp.eq.s32.totalorder %s35, 0
      %p313 = por %p311, %p312
      %p314 = scmp.ne.s32.totalorder %s302, %s303
      %p315 = scmp.eq.s32.totalorder %s36, 1
      %p316 = por %p314, %p315
      %p318 = scmp.ne.s32.totalorder %s303, %s317
      %p319 = scmp.eq.s32.totalorder %s36, 0
      %p320 = por %p318, %p319
      %s322 = sadd.s32 %s321, 1
      %p325 = scmp.eq.s32.totalorder %s30, 1
      %p326 = scmp.ne.s32.totalorder %s321, %s323
      %p327 = scmp.eq.s32.totalorder %s30, 0
      %p328 = por %p326, %p327
      %p329 = scmp.ne.s32.totalorder %s321, %s323
      %p330 = scmp.eq.s32.totalorder %s35, 1
      %p331 = por %p329, %p330
      %p332 = scmp.ne.s32.totalorder %s323, %s324
      %p333 = scmp.eq.s32.totalorder %s35, 0
      %p334 = por %p332, %p333
      %p335 = scmp.ne.s32.totalorder %s323, %s324
      %p336 = scmp.eq.s32.totalorder %s36, 1
      %p337 = por %p335, %p336
      %p339 = scmp.ne.s32.totalorder %s324, %s338
      %p340 = scmp.eq.s32.totalorder %s36, 0
      %p341 = por %p339, %p340
      %s343 = sadd.s32 %s342, 1
      %p346 = scmp.eq.s32.totalorder %s30, 1
      %p347 = scmp.ne.s32.totalorder %s342, %s344
      %p348 = scmp.eq.s32.totalorder %s30, 0
      %p349 = por %p347, %p348
      %p350 = scmp.ne.s32.totalorder %s342, %s344
      %p351 = scmp.eq.s32.totalorder %s35, 1
      %p352 = por %p350, %p351
      %p353 = scmp.ne.s32.totalorder %s344, %s345
      %p354 = scmp.eq.s32.totalorder %s35, 0
      %p355 = por %p353, %p354
      %p356 = scmp.ne.s32.totalorder %s344, %s345
      %p357 = scmp.eq.s32.totalorder %s36, 1
      %p358 = por %p356, %p357
      %p360 = scmp.ne.s32.totalorder %s345, %s359
      %p361 = scmp.eq.s32.totalorder %s36, 0
      %p362 = por %p360, %p361
      %s364 = sadd.s32 %s363, 1
      %p367 = scmp.eq.s32.totalorder %s30, 1
      %p368 = scmp.ne.s32.totalorder %s363, %s365
      %p369 = scmp.eq.s32.totalorder %s30, 0
      %p370 = por %p368, %p369
      %p371 = scmp.ne.s32.totalorder %s363, %s365
      %p372 = scmp.eq.s32.totalorder %s35, 1
      %p373 = por %p371, %p372
      %p374 = scmp.ne.s32.totalorder %s365, %s366
      %p375 = scmp.eq.s32.totalorder %s35, 0
      %p376 = por %p374, %p375
      %p377 = scmp.ne.s32.totalorder %s365, %s366
      %p378 = scmp.eq.s32.totalorder %s36, 1
      %p379 = por %p377, %p378
      %p381 = scmp.ne.s32.totalorder %s366, %s380
      %p382 = scmp.eq.s32.totalorder %s36, 0
      %p383 = por %p381, %p382
      %s385 = sadd.s32 %s384, 1
      %p388 = scmp.eq.s32.totalorder %s30, 1
      %p389 = scmp.ne.s32.totalorder %s384, %s386
      %p390 = scmp.eq.s32.totalorder %s30, 0
      %p391 = por %p389, %p390
      %p392 = scmp.ne.s32.totalorder %s384, %s386
      %p393 = scmp.eq.s32.totalorder %s35, 1
      %p394 = por %p392, %p393
      %p395 = scmp.ne.s32.totalorder %s386, %s387
      %p396 = scmp.eq.s32.totalorder %s35, 0
      %p397 = por %p395, %p396
      %p398 = scmp.ne.s32.totalorder %s386, %s387
      %p399 = scmp.eq.s32.totalorder %s36, 1
      %p400 = por %p398, %p399
      %p402 = scmp.ne.s32.totalorder %s387, %s401
      %p403 = scmp.eq.s32.totalorder %s36, 0
      %p404 = por %p402, %p403
      %s406 = sadd.s32 %s405, 1
      %p409 = scmp.eq.s32.totalorder %s30, 1
      %p410 = scmp.ne.s32.totalorder %s405, %s407
      %p411 = scmp.eq.s32.totalorder %s30, 0
      %p412 = por %p410, %p411
      %p413 = scmp.ne.s32.totalorder %s405, %s407
      %p414 = scmp.eq.s32.totalorder %s35, 1
      %p415 = por %p413, %p414
      %p416 = scmp.ne.s32.totalorder %s407, %s408
      %p417 = scmp.eq.s32.totalorder %s35, 0
      %p418 = por %p416, %p417
      %p419 = scmp.ne.s32.totalorder %s407, %s408
      %p420 = scmp.eq.s32.totalorder %s36, 1
      %p421 = por %p419, %p420
      %p423 = scmp.ne.s32.totalorder %s408, %s422
      %p424 = scmp.eq.s32.totalorder %s36, 0
      %p425 = por %p423, %p424
      %s426 = ssub.s32 %s30, %s37
      %p427 = scmp.eq.s32.totalorder %s426, 0
      %s429 = sadd.s32 %s428, 1
      %s430 = scalar_select %p427, %s428, %s429
      %p433 = pneg %p427
      %p434 = scmp.eq.s32.totalorder %s30, 1
      %p435 = por %p433, %p434
      %p436 = scmp.ne.s32.totalorder %s428, %s431
      %p437 = scmp.eq.s32.totalorder %s30, 0
      %p438 = por %p436, %p437
      %p439 = scmp.ne.s32.totalorder %s428, %s431
      %p440 = scmp.eq.s32.totalorder %s35, 1
      %p441 = por %p439, %p440
      %p442 = scmp.ne.s32.totalorder %s431, %s432
      %p443 = scmp.eq.s32.totalorder %s35, 0
      %p444 = por %p442, %p443
      %p445 = scmp.ne.s32.totalorder %s431, %s432
      %p446 = scmp.eq.s32.totalorder %s36, 1
      %p447 = por %p445, %p446
      %p449 = scmp.ne.s32.totalorder %s432, %s448
      %p450 = scmp.eq.s32.totalorder %s36, 0
      %p451 = por %p449, %p450
      %p452 = scmp.le.s32.totalorder 1, %s30
      %p453 = scmp.lt.s32.totalorder %s30, 3
      %p454 = pnand %p452, %p453
      %p455 = pneg %p454
      // Predicated region
      $region9: #{text_encoder_forward.1} parent=5 // pred_check
        _
      $region10: #{text_encoder_forward.1} parent=5 // pred_check_branch
        %457 = sbr.rel (%p454) target = $region12
      $region11: #{text_encoder_forward.1} parent=5 // pred_region
        %s458 = ssub.s32 %s30, 1
        // Predicated region
        $region13: #{text_encoder_forward.1} parent=11 // pred_check
          %p459 = pneg %p103
        $region14: #{text_encoder_forward.1} parent=11 // pred_check_branch
          %461 = sbr.rel (%p459) target = $region16
        $region15: #{text_encoder_forward.1} parent=11 // pred_region
          _
        $region16: #{text_encoder_forward.1} parent=11 // pred_fallthru
          _
        // Predicated region
        $region17: #{text_encoder_forward.1} parent=11 // pred_check
          %p462 = pneg %p124
        $region18: #{text_encoder_forward.1} parent=11 // pred_check_branch
          %464 = sbr.rel (%p462) target = $region20
        $region19: #{text_encoder_forward.1} parent=11 // pred_region
          _
        $region20: #{text_encoder_forward.1} parent=11 // pred_fallthru
          _
        // Predicated region
        $region21: #{text_encoder_forward.1} parent=11 // pred_check
          %p465 = pneg %p145
        $region22: #{text_encoder_forward.1} parent=11 // pred_check_branch
          %467 = sbr.rel (%p465) target = $region24
        $region23: #{text_encoder_forward.1} parent=11 // pred_region
          %469 = vsyncadd [#allocation3], 0
          %s470 = sshll.u32 %s4, 4
          %s471 = int_to_ptr.hbm [resolvable:$true] %s470
          %s472 = sshll.u32 [#allocation2], 4
          %s473 = int_to_ptr.vmem [resolvable:$true] %s472
          %478 = dma.hbm_to_vmem [thread:$0]  %s471, 12288, %s473, [#allocation3], 384, 384, 24
        $region24: #{text_encoder_forward.1} parent=11 // pred_fallthru
          _
        // Predicated region
        $region25: #{text_encoder_forward.1} parent=11 // pred_check
          %p479 = pneg %p166
        $region26: #{text_encoder_forward.1} parent=11 // pred_check_branch
          %481 = sbr.rel (%p479) target = $region28
        $region27: #{text_encoder_forward.1} parent=11 // pred_region
          _
        $region28: #{text_encoder_forward.1} parent=11 // pred_fallthru
          _
        // Predicated region
        $region29: #{text_encoder_forward.1} parent=11 // pred_check
          %p482 = pneg %p187
        $region30: #{text_encoder_forward.1} parent=11 // pred_check_branch
          %484 = sbr.rel (%p482) target = $region32
        $region31: #{text_encoder_forward.1} parent=11 // pred_region
          %486 = vsyncadd [#allocation6], 0
          %s487 = sshll.u32 %s6, 4
          %s488 = int_to_ptr.hbm [resolvable:$true] %s487
          %s489 = sshll.u32 [#allocation5], 4
          %s490 = int_to_ptr.vmem [resolvable:$true] %s489
          %495 = dma.hbm_to_vmem [thread:$0]  %s488, 4096, %s490, [#allocation6], 128, 128, 8
        $region32: #{text_encoder_forward.1} parent=11 // pred_fallthru
          _
        // Predicated region
        $region33: #{text_encoder_forward.1} parent=11 // pred_check
          %p496 = pneg %p208
        $region34: #{text_encoder_forward.1} parent=11 // pred_check_branch
          %498 = sbr.rel (%p496) target = $region36
        $region35: #{text_encoder_forward.1} parent=11 // pred_region
          _
        $region36: #{text_encoder_forward.1} parent=11 // pred_fallthru
          _
        // Predicated region
        $region37: #{text_encoder_forward.1} parent=11 // pred_check
          %p499 = pneg %p229
        $region38: #{text_encoder_forward.1} parent=11 // pred_check_branch
          %501 = sbr.rel (%p499) target = $region40
        $region39: #{text_encoder_forward.1} parent=11 // pred_region
          _
        $region40: #{text_encoder_forward.1} parent=11 // pred_fallthru
          _
        // Predicated region
        $region41: #{text_encoder_forward.1} parent=11 // pred_check
          %p502 = pneg %p250
        $region42: #{text_encoder_forward.1} parent=11 // pred_check_branch
          %504 = sbr.rel (%p502) target = $region44
        $region43: #{text_encoder_forward.1} parent=11 // pred_region
          _
        $region44: #{text_encoder_forward.1} parent=11 // pred_fallthru
          _
        // Predicated region
        $region45: #{text_encoder_forward.1} parent=11 // pred_check
          %p505 = pneg %p271
        $region46: #{text_encoder_forward.1} parent=11 // pred_check_branch
          %507 = sbr.rel (%p505) target = $region48
        $region47: #{text_encoder_forward.1} parent=11 // pred_region
          %509 = vsyncadd [#allocation6], 0
          %s510 = sshll.u32 %s10, 4
          %s511 = int_to_ptr.hbm [resolvable:$true] %s510
          %s512 = sshll.u32 [#allocation7], 4
          %s513 = int_to_ptr.vmem [resolvable:$true] %s512
          %518 = dma.hbm_to_vmem [thread:$0]  %s511, 8192, %s513, [#allocation6], 256, 256, 16
        $region48: #{text_encoder_forward.1} parent=11 // pred_fallthru
          _
        // Predicated region
        $region49: #{text_encoder_forward.1} parent=11 // pred_check
          %p519 = pneg %p292
        $region50: #{text_encoder_forward.1} parent=11 // pred_check_branch
          %521 = sbr.rel (%p519) target = $region52
        $region51: #{text_encoder_forward.1} parent=11 // pred_region
          _
        $region52: #{text_encoder_forward.1} parent=11 // pred_fallthru
          _
        // Predicated region
        $region53: #{text_encoder_forward.1} parent=11 // pred_check
          %p522 = pneg %p313
        $region54: #{text_encoder_forward.1} parent=11 // pred_check_branch
          %524 = sbr.rel (%p522) target = $region56
        $region55: #{text_encoder_forward.1} parent=11 // pred_region
          %526 = vsyncadd [#allocation9], 0
          %s527 = sshll.u32 %s12, 4
          %s528 = int_to_ptr.hbm [resolvable:$true] %s527
          %s529 = sshll.u32 [#allocation8], 4
          %s530 = int_to_ptr.vmem [resolvable:$true] %s529
          %535 = dma.hbm_to_vmem [thread:$0]  %s528, 8192, %s530, [#allocation9], 128, 128, 8
        $region56: #{text_encoder_forward.1} parent=11 // pred_fallthru
          _
        // Predicated region
        $region57: #{text_encoder_forward.1} parent=11 // pred_check
          %p536 = pneg %p334
        $region58: #{text_encoder_forward.1} parent=11 // pred_check_branch
          %538 = sbr.rel (%p536) target = $region60
        $region59: #{text_encoder_forward.1} parent=11 // pred_region
          _
        $region60: #{text_encoder_forward.1} parent=11 // pred_fallthru
          _
        // Predicated region
        $region61: #{text_encoder_forward.1} parent=11 // pred_check
          %p539 = pneg %p355
        $region62: #{text_encoder_forward.1} parent=11 // pred_check_branch
          %541 = sbr.rel (%p539) target = $region64
        $region63: #{text_encoder_forward.1} parent=11 // pred_region
          _
        $region64: #{text_encoder_forward.1} parent=11 // pred_fallthru
          _
        // Predicated region
        $region65: #{text_encoder_forward.1} parent=11 // pred_check
          %p542 = pneg %p376
        $region66: #{text_encoder_forward.1} parent=11 // pred_check_branch
          %544 = sbr.rel (%p542) target = $region68
        $region67: #{text_encoder_forward.1} parent=11 // pred_region
          _
        $region68: #{text_encoder_forward.1} parent=11 // pred_fallthru
          _
        // Predicated region
        $region69: #{text_encoder_forward.1} parent=11 // pred_check
          %p545 = pneg %p397
        $region70: #{text_encoder_forward.1} parent=11 // pred_check_branch
          %547 = sbr.rel (%p545) target = $region72
        $region71: #{text_encoder_forward.1} parent=11 // pred_region
          %549 = vsyncadd [#allocation9], 0
          %s550 = sshll.u32 %s16, 4
          %s551 = int_to_ptr.hbm [resolvable:$true] %s550
          %s552 = sshll.u32 [#allocation10], 4
          %s553 = int_to_ptr.vmem [resolvable:$true] %s552
          %558 = dma.hbm_to_vmem [thread:$0]  %s551, 4096, %s553, [#allocation9], 256, 256, 16
        $region72: #{text_encoder_forward.1} parent=11 // pred_fallthru
          _
        // Predicated region
        $region73: #{text_encoder_forward.1} parent=11 // pred_check
          %p559 = pneg %p418
        $region74: #{text_encoder_forward.1} parent=11 // pred_check_branch
          %561 = sbr.rel (%p559) target = $region76
        $region75: #{text_encoder_forward.1} parent=11 // pred_region
          _
        $region76: #{text_encoder_forward.1} parent=11 // pred_fallthru
          _
      $region12: #{text_encoder_forward.1} parent=5 // pred_fallthru
        _
      %p562 = scmp.lt.s32.totalorder %s30, 2
      // Predicated region
      $region77: #{text_encoder_forward.1} parent=5 // pred_check
        %p563 = pneg %p562
      $region78: #{text_encoder_forward.1} parent=5 // pred_check_branch
        %565 = sbr.rel (%p563) target = $region80
      $region79: #{text_encoder_forward.1} parent=5 // pred_region
        // Predicated region
        $region81: #{text_encoder_forward.1} parent=79 // pred_check
          %p566 = pneg %p50
        $region82: #{text_encoder_forward.1} parent=79 // pred_check_branch
          %568 = sbr.rel (%p566) target = $region84
        $region83: #{text_encoder_forward.1} parent=79 // pred_region
          %p569 = scmp.lt.s32.totalorder %s30, 1
          %s570 = scalar_select %p569, %s30, 1
          %s571 = smul.addr %s570, 8
          %s572 = scalar_lea.vmem %s0, %s571
        $region84: #{text_encoder_forward.1} parent=79 // pred_fallthru
          _
        // Predicated region
        $region85: #{text_encoder_forward.1} parent=79 // pred_check
          %p573 = pneg %p76
        $region86: #{text_encoder_forward.1} parent=79 // pred_check_branch
          %575 = sbr.rel (%p573) target = $region88
        $region87: #{text_encoder_forward.1} parent=79 // pred_region
          %p576 = scmp.lt.s32.totalorder %s30, 1
          %s577 = scalar_select %p576, %s30, 1
          %s578 = smul.addr %s577, 2
          %s579 = smul.addr %s578, 8
          %s580 = scalar_lea.vmem %s1, %s579
        $region88: #{text_encoder_forward.1} parent=79 // pred_fallthru
          _
      $region80: #{text_encoder_forward.1} parent=5 // pred_fallthru
        _
      %p581 = scmp.le.s32.totalorder 1, %s30
      %p582 = scmp.lt.s32.totalorder %s30, 3
      %p583 = pnand %p581, %p582
      %p584 = pneg %p583
      // Predicated region
      $region89: #{text_encoder_forward.1} parent=5 // pred_check
        _
      $region90: #{text_encoder_forward.1} parent=5 // pred_check_branch
        %586 = sbr.rel (%p583) target = $region92
      $region91: #{text_encoder_forward.1} parent=5 // pred_region
        %s587 = ssub.s32 %s30, 1
        // Predicated region
        $region93: #{text_encoder_forward.1} parent=91 // pred_check
          %p588 = pneg %p145
        $region94: #{text_encoder_forward.1} parent=91 // pred_check_branch
          %590 = sbr.rel (%p588) target = $region96
        $region95: #{text_encoder_forward.1} parent=91 // pred_region
          %592 = dma.done [#allocation3], 12288
        $region96: #{text_encoder_forward.1} parent=91 // pred_fallthru
          _
        // Predicated region
        $region97: #{text_encoder_forward.1} parent=91 // pred_check
          %p593 = pneg %p187
        $region98: #{text_encoder_forward.1} parent=91 // pred_check_branch
          %595 = sbr.rel (%p593) target = $region100
        $region99: #{text_encoder_forward.1} parent=91 // pred_region
          %597 = dma.done [#allocation6], 4096
        $region100: #{text_encoder_forward.1} parent=91 // pred_fallthru
          _
        // Predicated region
        $region101: #{text_encoder_forward.1} parent=91 // pred_check
          %p598 = pneg %p271
        $region102: #{text_encoder_forward.1} parent=91 // pred_check_branch
          %600 = sbr.rel (%p598) target = $region104
        $region103: #{text_encoder_forward.1} parent=91 // pred_region
          %602 = dma.done [#allocation6], 8192
        $region104: #{text_encoder_forward.1} parent=91 // pred_fallthru
          _
        // Predicated region
        $region105: #{text_encoder_forward.1} parent=91 // pred_check
          %p603 = pneg %p313
        $region106: #{text_encoder_forward.1} parent=91 // pred_check_branch
          %605 = sbr.rel (%p603) target = $region108
        $region107: #{text_encoder_forward.1} parent=91 // pred_region
          %607 = dma.done [#allocation9], 8192
        $region108: #{text_encoder_forward.1} parent=91 // pred_fallthru
          _
        // Predicated region
        $region109: #{text_encoder_forward.1} parent=91 // pred_check
          %p608 = pneg %p397
        $region110: #{text_encoder_forward.1} parent=91 // pred_check_branch
          %610 = sbr.rel (%p608) target = $region112
        $region111: #{text_encoder_forward.1} parent=91 // pred_region
          %612 = dma.done [#allocation9], 4096
        $region112: #{text_encoder_forward.1} parent=91 // pred_fallthru
          _
        %p613 = scmp.lt.s32.totalorder %s35, 1
        %s614 = scalar_select %p613, %s35, 1
        %s615 = smul.addr %s614, 8
        %s616 = scalar_lea.vmem %s0, %s615
        %p617 = pneg %p56
        %p618 = pneg %p53
        %p619 = scmp.lt.s32.totalorder %s35, 1
        %s620 = scalar_select %p619, %s35, 1
        %s621 = smul.addr %s620, 2
        %s622 = smul.addr %s621, 8
        %s623 = scalar_lea.vmem %s1, %s622
        %p624 = pneg %p82
        %p625 = pneg %p79
        %p626 = pneg %p103
        %p627 = pneg %p100
        %p628 = pneg %p124
        %p629 = pneg %p121
        %p630 = pneg %p145
        %p631 = pneg %p142
        %p632 = pneg %p166
        %p633 = pneg %p163
        %p634 = pneg %p187
        %p635 = pneg %p184
        %p636 = pneg %p208
        %p637 = pneg %p205
        %p638 = pneg %p229
        %p639 = pneg %p226
        %p640 = pneg %p250
        %p641 = pneg %p247
        %p642 = pneg %p271
        %p643 = pneg %p268
        %p644 = pneg %p292
        %p645 = pneg %p289
        %p646 = pneg %p313
        %p647 = pneg %p310
        %p648 = pneg %p334
        %p649 = pneg %p331
        %p650 = pneg %p355
        %p651 = pneg %p352
        %p652 = pneg %p376
        %p653 = pneg %p373
        %p654 = pneg %p397
        %p655 = pneg %p394
        %p656 = pneg %p418
        %p657 = pneg %p415
        %p658 = pneg %p444
        %p659 = pneg %p441
        %s660 = sand.u32 %s431, 1
        %s661 = scalar_lea.sflag [#allocation4], %s660
        %s662 = sand.u32 %s431, 1
        %s663 = smul.addr %s662, 16
        %s664 = scalar_lea.vmem [#allocation11], %s663
        %p665 = scmp.lt.s32.totalorder %s35, 1
        %s666 = scalar_select %p665, %s35, 1
        %s667 = smul.addr %s666, 8
        %s668 = scalar_lea.vmem %s0, %s667
        %p669 = scmp.lt.s32.totalorder %s35, 1
        %s670 = scalar_select %p669, %s35, 1
        %s671 = smul.addr %s670, 2
        %s672 = smul.addr %s671, 8
        %s673 = scalar_lea.vmem %s1, %s672
        %v674 = vld [vmem:[%s668] sm:$0xff]
        %v675 = vld [vmem:[%s2] sm:$0x1]
        %v676 = vld [vmem:[%s3] sm:$0x1]
        %677 = vadd.xlane.f32.xlu0 %v674
        %v678 = vpop.xlane.xlu0 %677
        %v679 = vrcp.pop 128.0
        %v680 = vmul.f32 128.0, %v679
        %v681 = vsub.f32 1.0, %v680
        %v682 = vmul.f32 %v679, %v681
        %v683 = vadd.f32 %v679, %v682
        %vm684 = vweird.f32 %v679
        %v685 = vsel %vm684, %v679, %v683
        %v686 = vmul.f32 %v678, %v685
        %v687 = vsub.f32 %v674, %v686
        %v688 = vmul.f32 %v687, %v687
        %689 = vadd.xlane.f32.xlu0 %v688
        %v690 = vpop.xlane.xlu0 %689
        %v691 = vmul.f32 %v690, %v685
        %v692 = vadd.f32 %v691, 1e-12
        %v693 = vrsqrt.pop %v692
        %v694 = vmul.f32 %v693, %v692
        %v695 = vmul.f32 %v694, %v693
        %v696 = vmul.f32 0.5, %v695
        %v697 = vsub.f32 1.5, %v696
        %v698 = vmul.f32 %v693, %v697
        %vm699 = vweird.f32 %v692
        %vm700 = vweird.f32 %v693
        %vm701 = vmor %vm699, %vm700
        %v702 = vsel %vm701, %v693, %v698
        %v703 = vmul.f32 %v687, %v702
        %v705 = vperm.slane %v675, 0
        %v707 = vmul.f32 %v703, %v705
        %v709 = vperm.slane %v676, 0
        %v711 = vadd.f32 %v707, %v709
        %v712 = vld [vmem:[#allocation2] sm:$0xff]
        %v713 = vld [vmem:[#allocation2 + $0x8] sm:$0xff]
        %v714 = vld [vmem:[#allocation2 + $0x10] sm:$0xff]
        %v715 = vld [vmem:[#allocation2 + $0x18] sm:$0xff]
        %v716 = vld [vmem:[#allocation2 + $0x20] sm:$0xff]
        %v717 = vld [vmem:[#allocation2 + $0x28] sm:$0xff]
        %v718 = vld [vmem:[#allocation2 + $0x30] sm:$0xff]
        %v719 = vld [vmem:[#allocation2 + $0x38] sm:$0xff]
        %v720 = vld [vmem:[#allocation2 + $0x40] sm:$0xff]
        %v721 = vld [vmem:[#allocation2 + $0x48] sm:$0xff]
        %v722 = vld [vmem:[#allocation2 + $0x50] sm:$0xff]
        %v723 = vld [vmem:[#allocation2 + $0x58] sm:$0xff]
        %v724 = vld [vmem:[#allocation2 + $0x60] sm:$0xff]
        %v725 = vld [vmem:[#allocation2 + $0x68] sm:$0xff]
        %v726 = vld [vmem:[#allocation2 + $0x70] sm:$0xff]
        %v727 = vld [vmem:[#allocation2 + $0x78] sm:$0xff]
        %v728 = vld [vmem:[#allocation2 + $0x80] sm:$0xff]
        %v729 = vld [vmem:[#allocation2 + $0x88] sm:$0xff]
        %v730 = vld [vmem:[#allocation2 + $0x90] sm:$0xff]
        %v731 = vld [vmem:[#allocation2 + $0x98] sm:$0xff]
        %v732 = vld [vmem:[#allocation2 + $0xa0] sm:$0xff]
        %v733 = vld [vmem:[#allocation2 + $0xa8] sm:$0xff]
        %v734 = vld [vmem:[#allocation2 + $0xb0] sm:$0xff]
        %v735 = vld [vmem:[#allocation2 + $0xb8] sm:$0xff]
        %v736 = vld [vmem:[#allocation2 + $0xc0] sm:$0xff]
        %v737 = vld [vmem:[#allocation2 + $0xc8] sm:$0xff]
        %v738 = vld [vmem:[#allocation2 + $0xd0] sm:$0xff]
        %v739 = vld [vmem:[#allocation2 + $0xd8] sm:$0xff]
        %v740 = vld [vmem:[#allocation2 + $0xe0] sm:$0xff]
        %v741 = vld [vmem:[#allocation2 + $0xe8] sm:$0xff]
        %v742 = vld [vmem:[#allocation2 + $0xf0] sm:$0xff]
        %v743 = vld [vmem:[#allocation2 + $0xf8] sm:$0xff]
        %v744 = vld [vmem:[#allocation2 + $0x100] sm:$0xff]
        %v745 = vld [vmem:[#allocation2 + $0x108] sm:$0xff]
        %v746 = vld [vmem:[#allocation2 + $0x110] sm:$0xff]
        %v747 = vld [vmem:[#allocation2 + $0x118] sm:$0xff]
        %v748 = vld [vmem:[#allocation2 + $0x120] sm:$0xff]
        %v749 = vld [vmem:[#allocation2 + $0x128] sm:$0xff]
        %v750 = vld [vmem:[#allocation2 + $0x130] sm:$0xff]
        %v751 = vld [vmem:[#allocation2 + $0x138] sm:$0xff]
        %v752 = vld [vmem:[#allocation2 + $0x140] sm:$0xff]
        %v753 = vld [vmem:[#allocation2 + $0x148] sm:$0xff]
        %v754 = vld [vmem:[#allocation2 + $0x150] sm:$0xff]
        %v755 = vld [vmem:[#allocation2 + $0x158] sm:$0xff]
        %v756 = vld [vmem:[#allocation2 + $0x160] sm:$0xff]
        %v757 = vld [vmem:[#allocation2 + $0x168] sm:$0xff]
        %v758 = vld [vmem:[#allocation2 + $0x170] sm:$0xff]
        %v759 = vld [vmem:[#allocation2 + $0x178] sm:$0xff]
        %v760 = vld [vmem:[%s5] sm:$0x7]
        %v762 = vperm.slane %v760, 0
        %v763 = vperm.slane %v760, 1
        %v764 = vperm.slane %v760, 2
        %768 = vmatpush.msra.mxu0 %v757
        %769 = vmatpush.msra.mxu0 %v754
        %770 = vmatpush.msra.mxu0 %v751
        %771 = vmatpush.msra.mxu0 %v748
        %772 = vmatpush.msra.mxu0 %v745
        %773 = vmatpush.msra.mxu0 %v742
        %774 = vmatpush.msra.mxu0 %v739
        %775 = vmatpush.msra.mxu0 %v736
        %776 = vmatpush.msra.mxu0 %v733
        %777 = vmatpush.msra.mxu0 %v730
        %778 = vmatpush.msra.mxu0 %v727
        %779 = vmatpush.msra.mxu0 %v724
        %780 = vmatpush.msra.mxu0 %v721
        %781 = vmatpush.msra.mxu0 %v718
        %782 = vmatpush.msra.mxu0 %v715
        %783 = vmatpush.msra.mxu0 %v712
        %784 = vmatmul.f32.gmra.mxu0 %v711
        %v785 = vpop.f32.mrf.mxu0
        %v786 = vadd.f32 %v762, %v785
        %787 = vdwg.mxu0
        %788 = vmatpush.msra.mxu0 %v758
        %789 = vmatpush.msra.mxu0 %v755
        %790 = vmatpush.msra.mxu0 %v752
        %791 = vmatpush.msra.mxu0 %v749
        %792 = vmatpush.msra.mxu0 %v746
        %793 = vmatpush.msra.mxu0 %v743
        %794 = vmatpush.msra.mxu0 %v740
        %795 = vmatpush.msra.mxu0 %v737
        %796 = vmatpush.msra.mxu0 %v734
        %797 = vmatpush.msra.mxu0 %v731
        %798 = vmatpush.msra.mxu0 %v728
        %799 = vmatpush.msra.mxu0 %v725
        %800 = vmatpush.msra.mxu0 %v722
        %801 = vmatpush.msra.mxu0 %v719
        %802 = vmatpush.msra.mxu0 %v716
        %803 = vmatpush.msra.mxu0 %v713
        %804 = vmatmul.f32.gmra.mxu0 %v711
        %v805 = vpop.f32.mrf.mxu0
        %v806 = vadd.f32 %v763, %v805
        %807 = vdwg.mxu0
        %808 = vmatpush.msra.mxu0 %v759
        %809 = vmatpush.msra.mxu0 %v756
        %810 = vmatpush.msra.mxu0 %v753
        %811 = vmatpush.msra.mxu0 %v750
        %812 = vmatpush.msra.mxu0 %v747
        %813 = vmatpush.msra.mxu0 %v744
        %814 = vmatpush.msra.mxu0 %v741
        %815 = vmatpush.msra.mxu0 %v738
        %816 = vmatpush.msra.mxu0 %v735
        %817 = vmatpush.msra.mxu0 %v732
        %818 = vmatpush.msra.mxu0 %v729
        %819 = vmatpush.msra.mxu0 %v726
        %820 = vmatpush.msra.mxu0 %v723
        %821 = vmatpush.msra.mxu0 %v720
        %822 = vmatpush.msra.mxu0 %v717
        %823 = vmatpush.msra.mxu0 %v714
        %824 = vmatmul.f32.gmra.mxu0 %v711
        %v825 = vpop.f32.mrf.mxu0
        %v826 = vadd.f32 %v764, %v825
        %827 = vdwg.mxu0
        %vm828 = vcmask 261120
        %v830 = vsel %vm828, %v786, 0
        %v833 = vsel %vm828, %v806, 0
        %835 = vmatpush.xpose.msra.mxu0 0.0
        %836 = vmatpush.xpose.msra.mxu0 0.0
        %837 = vmatpush.xpose.msra.mxu0 0.0
        %838 = vmatpush.xpose.msra.mxu0 0.0
        %839 = vmatpush.xpose.msra.mxu0 0.0
        %840 = vmatpush.xpose.msra.mxu0 0.0
        %841 = vmatpush.xpose.msra.mxu0 0.0
        %842 = vmatpush.xpose.msra.mxu0 0.0
        %843 = vmatpush.xpose.msra.mxu0 0.0
        %844 = vmatpush.xpose.msra.mxu0 0.0
        %845 = vmatpush.xpose.msra.mxu0 0.0
        %846 = vmatpush.xpose.msra.mxu0 0.0
        %847 = vmatpush.xpose.msra.mxu0 0.0
        %848 = vmatpush.xpose.msra.mxu0 0.0
        %849 = vmatpush.xpose.msra.mxu0 0.0
        %850 = vmatpush.xpose.msra.mxu0 %v833
        %851 = vmatmul.f32.gmra.mxu0 %v830
        %v852 = vpop.f32.mrf.mxu0
        %v853 = vadd.f32 0.0, %v852
        %854 = vdwg.mxu0
        %v855 = vmul.f32 %v853, 0.17677669
        %vm856 = vcmask 64512
        %v857 = vsel %vm856, %v855, -inf
        %858 = vmax.xlane.f32.xlu0 %v857
        %v859 = vpop.xlane.xlu0 %858
        %v860 = vsub.f32 %v855, %v859
        %v861 = vmul.f32 %v860, 1.442695
        %v862 = vpow.pop %v861
        %v863 = vsel %vm856, %v862, 0.0
        %864 = vadd.xlane.f32.xlu0 %v863
        %v865 = vpop.xlane.xlu0 %864
        %v866 = vrcp.pop %v865
        %v867 = vmul.f32 %v865, %v866
        %v868 = vsub.f32 1.0, %v867
        %v869 = vmul.f32 %v866, %v868
        %v870 = vadd.f32 %v866, %v869
        %vm871 = vweird.f32 %v865
        %vm872 = vweird.f32 %v866
        %vm873 = vmor %vm871, %vm872
        %v874 = vsel %vm873, %v866, %v870
        %v875 = vand.u32 2147483647, %v865
        %vm876 = vcmp.eq.f32.partialorder %v875, 8.507059e+37
        %v877 = vand.u32 %v865, 2147483648
        %v878 = vor.u32 1.1754944e-38, %v877
        %v879 = vsel %vm876, %v878, %v874
        %v880 = vmul.f32 %v862, %v879
        %v882 = vsel %vm856, %v880, 0
        %884 = vmatpush.msra.mxu0 0.0
        %885 = vmatpush.msra.mxu0 0.0
        %886 = vmatpush.msra.mxu0 0.0
        %887 = vmatpush.msra.mxu0 0.0
        %888 = vmatpush.msra.mxu0 0.0
        %889 = vmatpush.msra.mxu0 0.0
        %890 = vmatpush.msra.mxu0 0.0
        %891 = vmatpush.msra.mxu0 0.0
        %892 = vmatpush.msra.mxu0 0.0
        %893 = vmatpush.msra.mxu0 0.0
        %894 = vmatpush.msra.mxu0 0.0
        %895 = vmatpush.msra.mxu0 0.0
        %896 = vmatpush.msra.mxu0 0.0
        %897 = vmatpush.msra.mxu0 0.0
        %898 = vmatpush.msra.mxu0 0.0
        %899 = vmatpush.msra.mxu0 %v826
        %900 = vmatmul.f32.gmra.mxu0 %v882
        %v901 = vpop.f32.mrf.mxu0
        %v902 = vadd.f32 0.0, %v901
        %903 = vdwg.mxu0
        %904 = vrot.lane.b32.xlu0 %v786, 96
        %v905 = vpop.permute.xlu0 %904
        %906 = vrot.lane.b32.xlu0 %v806, 96
        %v907 = vpop.permute.xlu0 %906
        %v908 = vsel %vm828, %v905, 0
        %v910 = vsel %vm828, %v907, 0
        %912 = vmatpush.xpose.msra.mxu0 0.0
        %913 = vmatpush.xpose.msra.mxu0 0.0
        %914 = vmatpush.xpose.msra.mxu0 0.0
        %915 = vmatpush.xpose.msra.mxu0 0.0
        %916 = vmatpush.xpose.msra.mxu0 0.0
        %917 = vmatpush.xpose.msra.mxu0 0.0
        %918 = vmatpush.xpose.msra.mxu0 0.0
        %919 = vmatpush.xpose.msra.mxu0 0.0
        %920 = vmatpush.xpose.msra.mxu0 0.0
        %921 = vmatpush.xpose.msra.mxu0 0.0
        %922 = vmatpush.xpose.msra.mxu0 0.0
        %923 = vmatpush.xpose.msra.mxu0 0.0
        %924 = vmatpush.xpose.msra.mxu0 0.0
        %925 = vmatpush.xpose.msra.mxu0 0.0
        %926 = vmatpush.xpose.msra.mxu0 0.0
        %927 = vmatpush.xpose.msra.mxu0 %v910
        %928 = vmatmul.f32.gmra.mxu0 %v908
        %v929 = vpop.f32.mrf.mxu0
        %v930 = vadd.f32 0.0, %v929
        %931 = vdwg.mxu0
        %v932 = vmul.f32 %v930, 0.17677669
        %v933 = vsel %vm856, %v932, -inf
        %934 = vmax.xlane.f32.xlu0 %v933
        %v935 = vpop.xlane.xlu0 %934
        %v936 = vsub.f32 %v932, %v935
        %v937 = vmul.f32 %v936, 1.442695
        %v938 = vpow.pop %v937
        %v939 = vsel %vm856, %v938, 0.0
        %940 = vadd.xlane.f32.xlu0 %v939
        %v941 = vpop.xlane.xlu0 %940
        %v942 = vrcp.pop %v941
        %v943 = vmul.f32 %v941, %v942
        %v944 = vsub.f32 1.0, %v943
        %v945 = vmul.f32 %v942, %v944
        %v946 = vadd.f32 %v942, %v945
        %vm947 = vweird.f32 %v941
        %vm948 = vweird.f32 %v942
        %vm949 = vmor %vm947, %vm948
        %v950 = vsel %vm949, %v942, %v946
        %v951 = vand.u32 2147483647, %v941
        %vm952 = vcmp.eq.f32.partialorder %v951, 8.507059e+37
        %v953 = vand.u32 %v941, 2147483648
        %v954 = vor.u32 1.1754944e-38, %v953
        %v955 = vsel %vm952, %v954, %v950
        %v956 = vmul.f32 %v938, %v955
        %958 = vrot.lane.b32.xlu0 %v826, 96
        %v959 = vpop.permute.xlu0 %958
        %v962 = vsel %vm856, %v956, 0
        %964 = vmatpush.msra.mxu0 0.0
        %965 = vmatpush.msra.mxu0 0.0
        %966 = vmatpush.msra.mxu0 0.0
        %967 = vmatpush.msra.mxu0 0.0
        %968 = vmatpush.msra.mxu0 0.0
        %969 = vmatpush.msra.mxu0 0.0
        %970 = vmatpush.msra.mxu0 0.0
        %971 = vmatpush.msra.mxu0 0.0
        %972 = vmatpush.msra.mxu0 0.0
        %973 = vmatpush.msra.mxu0 0.0
        %974 = vmatpush.msra.mxu0 0.0
        %975 = vmatpush.msra.mxu0 0.0
        %976 = vmatpush.msra.mxu0 0.0
        %977 = vmatpush.msra.mxu0 0.0
        %978 = vmatpush.msra.mxu0 0.0
        %979 = vmatpush.msra.mxu0 %v959
        %980 = vmatmul.f32.gmra.mxu0 %v962
        %v981 = vpop.f32.mrf.mxu0
        %v982 = vadd.f32 0.0, %v981
        %983 = vdwg.mxu0
        %984 = vrot.lane.b32.xlu0 %v786, 64
        %v985 = vpop.permute.xlu0 %984
        %986 = vrot.lane.b32.xlu0 %v806, 64
        %v987 = vpop.permute.xlu0 %986
        %v988 = vsel %vm828, %v985, 0
        %v990 = vsel %vm828, %v987, 0
        %992 = vmatpush.xpose.msra.mxu0 0.0
        %993 = vmatpush.xpose.msra.mxu0 0.0
        %994 = vmatpush.xpose.msra.mxu0 0.0
        %995 = vmatpush.xpose.msra.mxu0 0.0
        %996 = vmatpush.xpose.msra.mxu0 0.0
        %997 = vmatpush.xpose.msra.mxu0 0.0
        %998 = vmatpush.xpose.msra.mxu0 0.0
        %999 = vmatpush.xpose.msra.mxu0 0.0
        %1000 = vmatpush.xpose.msra.mxu0 0.0
        %1001 = vmatpush.xpose.msra.mxu0 0.0
        %1002 = vmatpush.xpose.msra.mxu0 0.0
        %1003 = vmatpush.xpose.msra.mxu0 0.0
        %1004 = vmatpush.xpose.msra.mxu0 0.0
        %1005 = vmatpush.xpose.msra.mxu0 0.0
        %1006 = vmatpush.xpose.msra.mxu0 0.0
        %1007 = vmatpush.xpose.msra.mxu0 %v990
        %1008 = vmatmul.f32.gmra.mxu0 %v988
        %v1009 = vpop.f32.mrf.mxu0
        %v1010 = vadd.f32 0.0, %v1009
        %1011 = vdwg.mxu0
        %v1012 = vmul.f32 %v1010, 0.17677669
        %v1013 = vsel %vm856, %v1012, -inf
        %1014 = vmax.xlane.f32.xlu0 %v1013
        %v1015 = vpop.xlane.xlu0 %1014
        %v1016 = vsub.f32 %v1012, %v1015
        %v1017 = vmul.f32 %v1016, 1.442695
        %v1018 = vpow.pop %v1017
        %v1019 = vsel %vm856, %v1018, 0.0
        %1020 = vadd.xlane.f32.xlu0 %v1019
        %v1021 = vpop.xlane.xlu0 %1020
        %v1022 = vrcp.pop %v1021
        %v1023 = vmul.f32 %v1021, %v1022
        %v1024 = vsub.f32 1.0, %v1023
        %v1025 = vmul.f32 %v1022, %v1024
        %v1026 = vadd.f32 %v1022, %v1025
        %vm1027 = vweird.f32 %v1021
        %vm1028 = vweird.f32 %v1022
        %vm1029 = vmor %vm1027, %vm1028
        %v1030 = vsel %vm1029, %v1022, %v1026
        %v1031 = vand.u32 2147483647, %v1021
        %vm1032 = vcmp.eq.f32.partialorder %v1031, 8.507059e+37
        %v1033 = vand.u32 %v1021, 2147483648
        %v1034 = vor.u32 1.1754944e-38, %v1033
        %v1035 = vsel %vm1032, %v1034, %v1030
        %v1036 = vmul.f32 %v1018, %v1035
        %1037 = vrot.lane.b32.xlu0 %v826, 64
        %v1038 = vpop.permute.xlu0 %1037
        %v1041 = vsel %vm856, %v1036, 0
        %1043 = vmatpush.msra.mxu0 0.0
        %1044 = vmatpush.msra.mxu0 0.0
        %1045 = vmatpush.msra.mxu0 0.0
        %1046 = vmatpush.msra.mxu0 0.0
        %1047 = vmatpush.msra.mxu0 0.0
        %1048 = vmatpush.msra.mxu0 0.0
        %1049 = vmatpush.msra.mxu0 0.0
        %1050 = vmatpush.msra.mxu0 0.0
        %1051 = vmatpush.msra.mxu0 0.0
        %1052 = vmatpush.msra.mxu0 0.0
        %1053 = vmatpush.msra.mxu0 0.0
        %1054 = vmatpush.msra.mxu0 0.0
        %1055 = vmatpush.msra.mxu0 0.0
        %1056 = vmatpush.msra.mxu0 0.0
        %1057 = vmatpush.msra.mxu0 0.0
        %1058 = vmatpush.msra.mxu0 %v1038
        %1059 = vmatmul.f32.gmra.mxu0 %v1041
        %v1060 = vpop.f32.mrf.mxu0
        %v1061 = vadd.f32 0.0, %v1060
        %1062 = vdwg.mxu0
        %1063 = vrot.lane.b32.xlu0 %v786, 32
        %v1064 = vpop.permute.xlu0 %1063
        %1065 = vrot.lane.b32.xlu0 %v806, 32
        %v1066 = vpop.permute.xlu0 %1065
        %v1067 = vsel %vm828, %v1064, 0
        %v1069 = vsel %vm828, %v1066, 0
        %1071 = vmatpush.xpose.msra.mxu0 0.0
        %1072 = vmatpush.xpose.msra.mxu0 0.0
        %1073 = vmatpush.xpose.msra.mxu0 0.0
        %1074 = vmatpush.xpose.msra.mxu0 0.0
        %1075 = vmatpush.xpose.msra.mxu0 0.0
        %1076 = vmatpush.xpose.msra.mxu0 0.0
        %1077 = vmatpush.xpose.msra.mxu0 0.0
        %1078 = vmatpush.xpose.msra.mxu0 0.0
        %1079 = vmatpush.xpose.msra.mxu0 0.0
        %1080 = vmatpush.xpose.msra.mxu0 0.0
        %1081 = vmatpush.xpose.msra.mxu0 0.0
        %1082 = vmatpush.xpose.msra.mxu0 0.0
        %1083 = vmatpush.xpose.msra.mxu0 0.0
        %1084 = vmatpush.xpose.msra.mxu0 0.0
        %1085 = vmatpush.xpose.msra.mxu0 0.0
        %1086 = vmatpush.xpose.msra.mxu0 %v1069
        %1087 = vmatmul.f32.gmra.mxu0 %v1067
        %v1088 = vpop.f32.mrf.mxu0
        %v1089 = vadd.f32 0.0, %v1088
        %1090 = vdwg.mxu0
        %v1091 = vmul.f32 %v1089, 0.17677669
        %v1092 = vsel %vm856, %v1091, -inf
        %1093 = vmax.xlane.f32.xlu0 %v1092
        %v1094 = vpop.xlane.xlu0 %1093
        %v1095 = vsub.f32 %v1091, %v1094
        %v1096 = vmul.f32 %v1095, 1.442695
        %v1097 = vpow.pop %v1096
        %v1098 = vsel %vm856, %v1097, 0.0
        %1099 = vadd.xlane.f32.xlu0 %v1098
        %v1100 = vpop.xlane.xlu0 %1099
        %v1101 = vrcp.pop %v1100
        %v1102 = vmul.f32 %v1100, %v1101
        %v1103 = vsub.f32 1.0, %v1102
        %v1104 = vmul.f32 %v1101, %v1103
        %v1105 = vadd.f32 %v1101, %v1104
        %vm1106 = vweird.f32 %v1100
        %vm1107 = vweird.f32 %v1101
        %vm1108 = vmor %vm1106, %vm1107
        %v1109 = vsel %vm1108, %v1101, %v1105
        %v1110 = vand.u32 2147483647, %v1100
        %vm1111 = vcmp.eq.f32.partialorder %v1110, 8.507059e+37
        %v1112 = vand.u32 %v1100, 2147483648
        %v1113 = vor.u32 1.1754944e-38, %v1112
        %v1114 = vsel %vm1111, %v1113, %v1109
        %v1115 = vmul.f32 %v1097, %v1114
        %1116 = vrot.lane.b32.xlu0 %v826, 32
        %v1117 = vpop.permute.xlu0 %1116
        %v1120 = vsel %vm856, %v1115, 0
        %1122 = vmatpush.msra.mxu0 0.0
        %1123 = vmatpush.msra.mxu0 0.0
        %1124 = vmatpush.msra.mxu0 0.0
        %1125 = vmatpush.msra.mxu0 0.0
        %1126 = vmatpush.msra.mxu0 0.0
        %1127 = vmatpush.msra.mxu0 0.0
        %1128 = vmatpush.msra.mxu0 0.0
        %1129 = vmatpush.msra.mxu0 0.0
        %1130 = vmatpush.msra.mxu0 0.0
        %1131 = vmatpush.msra.mxu0 0.0
        %1132 = vmatpush.msra.mxu0 0.0
        %1133 = vmatpush.msra.mxu0 0.0
        %1134 = vmatpush.msra.mxu0 0.0
        %1135 = vmatpush.msra.mxu0 0.0
        %1136 = vmatpush.msra.mxu0 0.0
        %1137 = vmatpush.msra.mxu0 %v1117
        %1138 = vmatmul.f32.gmra.mxu0 %v1120
        %v1139 = vpop.f32.mrf.mxu0
        %v1140 = vadd.f32 0.0, %v1139
        %1141 = vdwg.mxu0
        %1143 = vrot.lane.b32.xlu0 %v982, 32
        %v1144 = vpop.permute.xlu0 %1143
        %1147 = vrot.lane.b32.xlu0 %v1061, 64
        %v1148 = vpop.permute.xlu0 %1147
        %1151 = vrot.lane.b32.xlu0 %v1140, 96
        %v1152 = vpop.permute.xlu0 %1151
        %v1154 = vsel %vm828, %v902, %v1144
        %vm1155 = vcmask 523264
        %v1156 = vsel %vm1155, %v1154, %v1148
        %vm1157 = vcmask 785408
        %v1158 = vsel %vm1157, %v1156, %v1152
        %v1159 = vld [vmem:[#allocation5] sm:$0xff]
        %v1160 = vld [vmem:[#allocation5 + $0x8] sm:$0xff]
        %v1161 = vld [vmem:[#allocation5 + $0x10] sm:$0xff]
        %v1162 = vld [vmem:[#allocation5 + $0x18] sm:$0xff]
        %v1163 = vld [vmem:[#allocation5 + $0x20] sm:$0xff]
        %v1164 = vld [vmem:[#allocation5 + $0x28] sm:$0xff]
        %v1165 = vld [vmem:[#allocation5 + $0x30] sm:$0xff]
        %v1166 = vld [vmem:[#allocation5 + $0x38] sm:$0xff]
        %v1167 = vld [vmem:[#allocation5 + $0x40] sm:$0xff]
        %v1168 = vld [vmem:[#allocation5 + $0x48] sm:$0xff]
        %v1169 = vld [vmem:[#allocation5 + $0x50] sm:$0xff]
        %v1170 = vld [vmem:[#allocation5 + $0x58] sm:$0xff]
        %v1171 = vld [vmem:[#allocation5 + $0x60] sm:$0xff]
        %v1172 = vld [vmem:[#allocation5 + $0x68] sm:$0xff]
        %v1173 = vld [vmem:[#allocation5 + $0x70] sm:$0xff]
        %v1174 = vld [vmem:[#allocation5 + $0x78] sm:$0xff]
        %v1175 = vld [vmem:[%s7] sm:$0x1]
        %v1177 = vperm.slane %v1175, 0
        %1179 = vmatpush.msra.mxu0 %v1174
        %1180 = vmatpush.msra.mxu0 %v1173
        %1181 = vmatpush.msra.mxu0 %v1172
        %1182 = vmatpush.msra.mxu0 %v1171
        %1183 = vmatpush.msra.mxu0 %v1170
        %1184 = vmatpush.msra.mxu0 %v1169
        %1185 = vmatpush.msra.mxu0 %v1168
        %1186 = vmatpush.msra.mxu0 %v1167
        %1187 = vmatpush.msra.mxu0 %v1166
        %1188 = vmatpush.msra.mxu0 %v1165
        %1189 = vmatpush.msra.mxu0 %v1164
        %1190 = vmatpush.msra.mxu0 %v1163
        %1191 = vmatpush.msra.mxu0 %v1162
        %1192 = vmatpush.msra.mxu0 %v1161
        %1193 = vmatpush.msra.mxu0 %v1160
        %1194 = vmatpush.msra.mxu0 %v1159
        %1195 = vmatmul.f32.gmra.mxu0 %v1158
        %v1196 = vpop.f32.mrf.mxu0
        %v1197 = vadd.f32 %v1177, %v1196
        %1198 = vdwg.mxu0
        %v1199 = vadd.f32 %v711, %v1197
        %v1200 = vld [vmem:[%s8] sm:$0x1]
        %v1201 = vld [vmem:[%s9] sm:$0x1]
        %1202 = vadd.xlane.f32.xlu0 %v1199
        %v1203 = vpop.xlane.xlu0 %1202
        %v1204 = vmul.f32 %v1203, %v685
        %v1205 = vsub.f32 %v1199, %v1204
        %v1206 = vmul.f32 %v1205, %v1205
        %1207 = vadd.xlane.f32.xlu0 %v1206
        %v1208 = vpop.xlane.xlu0 %1207
        %v1209 = vmul.f32 %v1208, %v685
        %v1210 = vadd.f32 %v1209, 1e-12
        %v1211 = vrsqrt.pop %v1210
        %v1212 = vmul.f32 %v1211, %v1210
        %v1213 = vmul.f32 %v1212, %v1211
        %v1214 = vmul.f32 0.5, %v1213
        %v1215 = vsub.f32 1.5, %v1214
        %v1216 = vmul.f32 %v1211, %v1215
        %vm1217 = vweird.f32 %v1210
        %vm1218 = vweird.f32 %v1211
        %vm1219 = vmor %vm1217, %vm1218
        %v1220 = vsel %vm1219, %v1211, %v1216
        %v1221 = vmul.f32 %v1205, %v1220
        %v1223 = vperm.slane %v1200, 0
        %v1225 = vmul.f32 %v1221, %v1223
        %v1227 = vperm.slane %v1201, 0
        %v1229 = vadd.f32 %v1225, %v1227
        %v1230 = vld [vmem:[#allocation7] sm:$0xff]
        %v1231 = vld [vmem:[#allocation7 + $0x8] sm:$0xff]
        %v1232 = vld [vmem:[#allocation7 + $0x10] sm:$0xff]
        %v1233 = vld [vmem:[#allocation7 + $0x18] sm:$0xff]
        %v1234 = vld [vmem:[#allocation7 + $0x20] sm:$0xff]
        %v1235 = vld [vmem:[#allocation7 + $0x28] sm:$0xff]
        %v1236 = vld [vmem:[#allocation7 + $0x30] sm:$0xff]
        %v1237 = vld [vmem:[#allocation7 + $0x38] sm:$0xff]
        %v1238 = vld [vmem:[#allocation7 + $0x40] sm:$0xff]
        %v1239 = vld [vmem:[#allocation7 + $0x48] sm:$0xff]
        %v1240 = vld [vmem:[#allocation7 + $0x50] sm:$0xff]
        %v1241 = vld [vmem:[#allocation7 + $0x58] sm:$0xff]
        %v1242 = vld [vmem:[#allocation7 + $0x60] sm:$0xff]
        %v1243 = vld [vmem:[#allocation7 + $0x68] sm:$0xff]
        %v1244 = vld [vmem:[#allocation7 + $0x70] sm:$0xff]
        %v1245 = vld [vmem:[#allocation7 + $0x78] sm:$0xff]
        %v1246 = vld [vmem:[#allocation7 + $0x80] sm:$0xff]
        %v1247 = vld [vmem:[#allocation7 + $0x88] sm:$0xff]
        %v1248 = vld [vmem:[#allocation7 + $0x90] sm:$0xff]
        %v1249 = vld [vmem:[#allocation7 + $0x98] sm:$0xff]
        %v1250 = vld [vmem:[#allocation7 + $0xa0] sm:$0xff]
        %v1251 = vld [vmem:[#allocation7 + $0xa8] sm:$0xff]
        %v1252 = vld [vmem:[#allocation7 + $0xb0] sm:$0xff]
        %v1253 = vld [vmem:[#allocation7 + $0xb8] sm:$0xff]
        %v1254 = vld [vmem:[#allocation7 + $0xc0] sm:$0xff]
        %v1255 = vld [vmem:[#allocation7 + $0xc8] sm:$0xff]
        %v1256 = vld [vmem:[#allocation7 + $0xd0] sm:$0xff]
        %v1257 = vld [vmem:[#allocation7 + $0xd8] sm:$0xff]
        %v1258 = vld [vmem:[#allocation7 + $0xe0] sm:$0xff]
        %v1259 = vld [vmem:[#allocation7 + $0xe8] sm:$0xff]
        %v1260 = vld [vmem:[#allocation7 + $0xf0] sm:$0xff]
        %v1261 = vld [vmem:[#allocation7 + $0xf8] sm:$0xff]
        %v1262 = vld [vmem:[%s11] sm:$0x3]
        %v1264 = vperm.slane %v1262, 0
        %v1265 = vperm.slane %v1262, 1
        %1268 = vmatpush.msra.mxu0 %v1260
        %1269 = vmatpush.msra.mxu0 %v1258
        %1270 = vmatpush.msra.mxu0 %v1256
        %1271 = vmatpush.msra.mxu0 %v1254
        %1272 = vmatpush.msra.mxu0 %v1252
        %1273 = vmatpush.msra.mxu0 %v1250
        %1274 = vmatpush.msra.mxu0 %v1248
        %1275 = vmatpush.msra.mxu0 %v1246
        %1276 = vmatpush.msra.mxu0 %v1244
        %1277 = vmatpush.msra.mxu0 %v1242
        %1278 = vmatpush.msra.mxu0 %v1240
        %1279 = vmatpush.msra.mxu0 %v1238
        %1280 = vmatpush.msra.mxu0 %v1236
        %1281 = vmatpush.msra.mxu0 %v1234
        %1282 = vmatpush.msra.mxu0 %v1232
        %1283 = vmatpush.msra.mxu0 %v1230
        %1284 = vmatmul.f32.gmra.mxu0 %v1229
        %v1285 = vpop.f32.mrf.mxu0
        %v1286 = vadd.f32 %v1264, %v1285
        %1287 = vdwg.mxu0
        %1288 = vmatpush.msra.mxu0 %v1261
        %1289 = vmatpush.msra.mxu0 %v1259
        %1290 = vmatpush.msra.mxu0 %v1257
        %1291 = vmatpush.msra.mxu0 %v1255
        %1292 = vmatpush.msra.mxu0 %v1253
        %1293 = vmatpush.msra.mxu0 %v1251
        %1294 = vmatpush.msra.mxu0 %v1249
        %1295 = vmatpush.msra.mxu0 %v1247
        %1296 = vmatpush.msra.mxu0 %v1245
        %1297 = vmatpush.msra.mxu0 %v1243
        %1298 = vmatpush.msra.mxu0 %v1241
        %1299 = vmatpush.msra.mxu0 %v1239
        %1300 = vmatpush.msra.mxu0 %v1237
        %1301 = vmatpush.msra.mxu0 %v1235
        %1302 = vmatpush.msra.mxu0 %v1233
        %1303 = vmatpush.msra.mxu0 %v1231
        %1304 = vmatmul.f32.gmra.mxu0 %v1229
        %v1305 = vpop.f32.mrf.mxu0
        %v1306 = vadd.f32 %v1265, %v1305
        %1307 = vdwg.mxu0
        %v1308 = vmul.f32 %v1286, %v1286
        %v1309 = vmul.f32 %v1306, %v1306
        %v1310 = vmul.f32 %v1286, %v1308
        %v1311 = vmul.f32 %v1306, %v1309
        %v1312 = vmul.f32 %v1310, 0.044715
        %v1313 = vmul.f32 %v1311, 0.044715
        %v1314 = vadd.f32 %v1286, %v1312
        %v1315 = vadd.f32 %v1306, %v1313
        %v1316 = vmul.f32 %v1314, 0.7978846
        %v1317 = vmul.f32 %v1315, 0.7978846
        %v1318 = vtanh.pop %v1316
        %v1319 = vtanh.pop %v1317
        %v1320 = vadd.f32 %v1318, 1.0
        %v1321 = vadd.f32 %v1319, 1.0
        %v1322 = vmul.f32 %v1320, 0.5
        %v1323 = vmul.f32 %v1321, 0.5
        %v1324 = vmul.f32 %v1286, %v1322
        %v1325 = vmul.f32 %v1306, %v1323
        %v1326 = vld [vmem:[#allocation8] sm:$0xff]
        %v1327 = vld [vmem:[#allocation8 + $0x8] sm:$0xff]
        %v1328 = vld [vmem:[#allocation8 + $0x10] sm:$0xff]
        %v1329 = vld [vmem:[#allocation8 + $0x18] sm:$0xff]
        %v1330 = vld [vmem:[#allocation8 + $0x20] sm:$0xff]
        %v1331 = vld [vmem:[#allocation8 + $0x28] sm:$0xff]
        %v1332 = vld [vmem:[#allocation8 + $0x30] sm:$0xff]
        %v1333 = vld [vmem:[#allocation8 + $0x38] sm:$0xff]
        %v1334 = vld [vmem:[#allocation8 + $0x40] sm:$0xff]
        %v1335 = vld [vmem:[#allocation8 + $0x48] sm:$0xff]
        %v1336 = vld [vmem:[#allocation8 + $0x50] sm:$0xff]
        %v1337 = vld [vmem:[#allocation8 + $0x58] sm:$0xff]
        %v1338 = vld [vmem:[#allocation8 + $0x60] sm:$0xff]
        %v1339 = vld [vmem:[#allocation8 + $0x68] sm:$0xff]
        %v1340 = vld [vmem:[#allocation8 + $0x70] sm:$0xff]
        %v1341 = vld [vmem:[#allocation8 + $0x78] sm:$0xff]
        %v1342 = vld [vmem:[#allocation8 + $0x80] sm:$0xff]
        %v1343 = vld [vmem:[#allocation8 + $0x88] sm:$0xff]
        %v1344 = vld [vmem:[#allocation8 + $0x90] sm:$0xff]
        %v1345 = vld [vmem:[#allocation8 + $0x98] sm:$0xff]
        %v1346 = vld [vmem:[#allocation8 + $0xa0] sm:$0xff]
        %v1347 = vld [vmem:[#allocation8 + $0xa8] sm:$0xff]
        %v1348 = vld [vmem:[#allocation8 + $0xb0] sm:$0xff]
        %v1349 = vld [vmem:[#allocation8 + $0xb8] sm:$0xff]
        %v1350 = vld [vmem:[#allocation8 + $0xc0] sm:$0xff]
        %v1351 = vld [vmem:[#allocation8 + $0xc8] sm:$0xff]
        %v1352 = vld [vmem:[#allocation8 + $0xd0] sm:$0xff]
        %v1353 = vld [vmem:[#allocation8 + $0xd8] sm:$0xff]
        %v1354 = vld [vmem:[#allocation8 + $0xe0] sm:$0xff]
        %v1355 = vld [vmem:[#allocation8 + $0xe8] sm:$0xff]
        %v1356 = vld [vmem:[#allocation8 + $0xf0] sm:$0xff]
        %v1357 = vld [vmem:[#allocation8 + $0xf8] sm:$0xff]
        %v1358 = vld [vmem:[%s13] sm:$0x1]
        %v1360 = vperm.slane %v1358, 0
        %1362 = vmatpush.msra.mxu0 %v1341
        %1363 = vmatpush.msra.mxu0 %v1340
        %1364 = vmatpush.msra.mxu0 %v1339
        %1365 = vmatpush.msra.mxu0 %v1338
        %1366 = vmatpush.msra.mxu0 %v1337
        %1367 = vmatpush.msra.mxu0 %v1336
        %1368 = vmatpush.msra.mxu0 %v1335
        %1369 = vmatpush.msra.mxu0 %v1334
        %1370 = vmatpush.msra.mxu0 %v1333
        %1371 = vmatpush.msra.mxu0 %v1332
        %1372 = vmatpush.msra.mxu0 %v1331
        %1373 = vmatpush.msra.mxu0 %v1330
        %1374 = vmatpush.msra.mxu0 %v1329
        %1375 = vmatpush.msra.mxu0 %v1328
        %1376 = vmatpush.msra.mxu0 %v1327
        %1377 = vmatpush.msra.mxu0 %v1326
        %1378 = vmatmul.f32.gmra.mxu0 %v1324
        %v1379 = vpop.f32.mrf.mxu0
        %v1380 = vadd.f32 %v1360, %v1379
        %1381 = vdwg.mxu0
        %1382 = vmatpush.msra.mxu0 %v1357
        %1383 = vmatpush.msra.mxu0 %v1356
        %1384 = vmatpush.msra.mxu0 %v1355
        %1385 = vmatpush.msra.mxu0 %v1354
        %1386 = vmatpush.msra.mxu0 %v1353
        %1387 = vmatpush.msra.mxu0 %v1352
        %1388 = vmatpush.msra.mxu0 %v1351
        %1389 = vmatpush.msra.mxu0 %v1350
        %1390 = vmatpush.msra.mxu0 %v1349
        %1391 = vmatpush.msra.mxu0 %v1348
        %1392 = vmatpush.msra.mxu0 %v1347
        %1393 = vmatpush.msra.mxu0 %v1346
        %1394 = vmatpush.msra.mxu0 %v1345
        %1395 = vmatpush.msra.mxu0 %v1344
        %1396 = vmatpush.msra.mxu0 %v1343
        %1397 = vmatpush.msra.mxu0 %v1342
        %1398 = vmatmul.f32.gmra.mxu0 %v1325
        %v1399 = vpop.f32.mrf.mxu0
        %v1400 = vadd.f32 %v1380, %v1399
        %1401 = vdwg.mxu0
        %v1402 = vadd.f32 %v1229, %v1400
        %v1403 = vld [vmem:[%s14] sm:$0x1]
        %v1404 = vld [vmem:[%s15] sm:$0x1]
        %1405 = vadd.xlane.f32.xlu0 %v1402
        %v1406 = vpop.xlane.xlu0 %1405
        %v1407 = vmul.f32 %v1406, %v685
        %v1408 = vsub.f32 %v1402, %v1407
        %v1409 = vmul.f32 %v1408, %v1408
        %1410 = vadd.xlane.f32.xlu0 %v1409
        %v1411 = vpop.xlane.xlu0 %1410
        %v1412 = vmul.f32 %v1411, %v685
        %v1413 = vadd.f32 %v1412, 1e-12
        %v1414 = vrsqrt.pop %v1413
        %v1415 = vmul.f32 %v1414, %v1413
        %v1416 = vmul.f32 %v1415, %v1414
        %v1417 = vmul.f32 0.5, %v1416
        %v1418 = vsub.f32 1.5, %v1417
        %v1419 = vmul.f32 %v1414, %v1418
        %vm1420 = vweird.f32 %v1413
        %vm1421 = vweird.f32 %v1414
        %vm1422 = vmor %vm1420, %vm1421
        %v1423 = vsel %vm1422, %v1414, %v1419
        %v1424 = vmul.f32 %v1408, %v1423
        %v1426 = vperm.slane %v1403, 0
        %v1428 = vmul.f32 %v1424, %v1426
        %v1430 = vperm.slane %v1404, 0
        %v1432 = vadd.f32 %v1428, %v1430
        %s1433 = scalar_lea.vmem [#allocation2], 384
        %v1434 = vld [vmem:[%s1433] sm:$0xff]
        %v1435 = vld [vmem:[%s1433 + $0x8] sm:$0xff]
        %v1436 = vld [vmem:[%s1433 + $0x10] sm:$0xff]
        %v1437 = vld [vmem:[%s1433 + $0x18] sm:$0xff]
        %v1438 = vld [vmem:[%s1433 + $0x20] sm:$0xff]
        %v1439 = vld [vmem:[%s1433 + $0x28] sm:$0xff]
        %v1440 = vld [vmem:[%s1433 + $0x30] sm:$0xff]
        %v1441 = vld [vmem:[%s1433 + $0x38] sm:$0xff]
        %v1442 = vld [vmem:[%s1433 + $0x40] sm:$0xff]
        %v1443 = vld [vmem:[%s1433 + $0x48] sm:$0xff]
        %v1444 = vld [vmem:[%s1433 + $0x50] sm:$0xff]
        %v1445 = vld [vmem:[%s1433 + $0x58] sm:$0xff]
        %v1446 = vld [vmem:[%s1433 + $0x60] sm:$0xff]
        %v1447 = vld [vmem:[%s1433 + $0x68] sm:$0xff]
        %v1448 = vld [vmem:[%s1433 + $0x70] sm:$0xff]
        %v1449 = vld [vmem:[%s1433 + $0x78] sm:$0xff]
        %v1450 = vld [vmem:[%s1433 + $0x80] sm:$0xff]
        %v1451 = vld [vmem:[%s1433 + $0x88] sm:$0xff]
        %v1452 = vld [vmem:[%s1433 + $0x90] sm:$0xff]
        %v1453 = vld [vmem:[%s1433 + $0x98] sm:$0xff]
        %v1454 = vld [vmem:[%s1433 + $0xa0] sm:$0xff]
        %v1455 = vld [vmem:[%s1433 + $0xa8] sm:$0xff]
        %v1456 = vld [vmem:[%s1433 + $0xb0] sm:$0xff]
        %v1457 = vld [vmem:[%s1433 + $0xb8] sm:$0xff]
        %v1458 = vld [vmem:[%s1433 + $0xc0] sm:$0xff]
        %v1459 = vld [vmem:[%s1433 + $0xc8] sm:$0xff]
        %v1460 = vld [vmem:[%s1433 + $0xd0] sm:$0xff]
        %v1461 = vld [vmem:[%s1433 + $0xd8] sm:$0xff]
        %v1462 = vld [vmem:[%s1433 + $0xe0] sm:$0xff]
        %v1463 = vld [vmem:[%s1433 + $0xe8] sm:$0xff]
        %v1464 = vld [vmem:[%s1433 + $0xf0] sm:$0xff]
        %v1465 = vld [vmem:[%s1433 + $0xf8] sm:$0xff]
        %v1466 = vld [vmem:[%s1433 + $0x100] sm:$0xff]
        %v1467 = vld [vmem:[%s1433 + $0x108] sm:$0xff]
        %v1468 = vld [vmem:[%s1433 + $0x110] sm:$0xff]
        %v1469 = vld [vmem:[%s1433 + $0x118] sm:$0xff]
        %v1470 = vld [vmem:[%s1433 + $0x120] sm:$0xff]
        %v1471 = vld [vmem:[%s1433 + $0x128] sm:$0xff]
        %v1472 = vld [vmem:[%s1433 + $0x130] sm:$0xff]
        %v1473 = vld [vmem:[%s1433 + $0x138] sm:$0xff]
        %v1474 = vld [vmem:[%s1433 + $0x140] sm:$0xff]
        %v1475 = vld [vmem:[%s1433 + $0x148] sm:$0xff]
        %v1476 = vld [vmem:[%s1433 + $0x150] sm:$0xff]
        %v1477 = vld [vmem:[%s1433 + $0x158] sm:$0xff]
        %v1478 = vld [vmem:[%s1433 + $0x160] sm:$0xff]
        %v1479 = vld [vmem:[%s1433 + $0x168] sm:$0xff]
        %v1480 = vld [vmem:[%s1433 + $0x170] sm:$0xff]
        %v1481 = vld [vmem:[%s1433 + $0x178] sm:$0xff]
        %s1482 = scalar_lea.vmem %s5, 3
        %v1483 = vld [vmem:[%s1482] sm:$0x7]
        %v1485 = vperm.slane %v1483, 0
        %v1486 = vperm.slane %v1483, 1
        %v1487 = vperm.slane %v1483, 2
        %1491 = vmatpush.msra.mxu0 %v1479
        %1492 = vmatpush.msra.mxu0 %v1476
        %1493 = vmatpush.msra.mxu0 %v1473
        %1494 = vmatpush.msra.mxu0 %v1470
        %1495 = vmatpush.msra.mxu0 %v1467
        %1496 = vmatpush.msra.mxu0 %v1464
        %1497 = vmatpush.msra.mxu0 %v1461
        %1498 = vmatpush.msra.mxu0 %v1458
        %1499 = vmatpush.msra.mxu0 %v1455
        %1500 = vmatpush.msra.mxu0 %v1452
        %1501 = vmatpush.msra.mxu0 %v1449
        %1502 = vmatpush.msra.mxu0 %v1446
        %1503 = vmatpush.msra.mxu0 %v1443
        %1504 = vmatpush.msra.mxu0 %v1440
        %1505 = vmatpush.msra.mxu0 %v1437
        %1506 = vmatpush.msra.mxu0 %v1434
        %1507 = vmatmul.f32.gmra.mxu0 %v1432
        %v1508 = vpop.f32.mrf.mxu0
        %v1509 = vadd.f32 %v1485, %v1508
        %1510 = vdwg.mxu0
        %1511 = vmatpush.msra.mxu0 %v1480
        %1512 = vmatpush.msra.mxu0 %v1477
        %1513 = vmatpush.msra.mxu0 %v1474
        %1514 = vmatpush.msra.mxu0 %v1471
        %1515 = vmatpush.msra.mxu0 %v1468
        %1516 = vmatpush.msra.mxu0 %v1465
        %1517 = vmatpush.msra.mxu0 %v1462
        %1518 = vmatpush.msra.mxu0 %v1459
        %1519 = vmatpush.msra.mxu0 %v1456
        %1520 = vmatpush.msra.mxu0 %v1453
        %1521 = vmatpush.msra.mxu0 %v1450
        %1522 = vmatpush.msra.mxu0 %v1447
        %1523 = vmatpush.msra.mxu0 %v1444
        %1524 = vmatpush.msra.mxu0 %v1441
        %1525 = vmatpush.msra.mxu0 %v1438
        %1526 = vmatpush.msra.mxu0 %v1435
        %1527 = vmatmul.f32.gmra.mxu0 %v1432
        %v1528 = vpop.f32.mrf.mxu0
        %v1529 = vadd.f32 %v1486, %v1528
        %1530 = vdwg.mxu0
        %1531 = vmatpush.msra.mxu0 %v1481
        %1532 = vmatpush.msra.mxu0 %v1478
        %1533 = vmatpush.msra.mxu0 %v1475
        %1534 = vmatpush.msra.mxu0 %v1472
        %1535 = vmatpush.msra.mxu0 %v1469
        %1536 = vmatpush.msra.mxu0 %v1466
        %1537 = vmatpush.msra.mxu0 %v1463
        %1538 = vmatpush.msra.mxu0 %v1460
        %1539 = vmatpush.msra.mxu0 %v1457
        %1540 = vmatpush.msra.mxu0 %v1454
        %1541 = vmatpush.msra.mxu0 %v1451
        %1542 = vmatpush.msra.mxu0 %v1448
        %1543 = vmatpush.msra.mxu0 %v1445
        %1544 = vmatpush.msra.mxu0 %v1442
        %1545 = vmatpush.msra.mxu0 %v1439
        %1546 = vmatpush.msra.mxu0 %v1436
        %1547 = vmatmul.f32.gmra.mxu0 %v1432
        %v1548 = vpop.f32.mrf.mxu0
        %v1549 = vadd.f32 %v1487, %v1548
        %1550 = vdwg.mxu0
        %v1552 = vsel %vm828, %v1509, 0
        %v1555 = vsel %vm828, %v1529, 0
        %1557 = vmatpush.xpose.msra.mxu0 0.0
        %1558 = vmatpush.xpose.msra.mxu0 0.0
        %1559 = vmatpush.xpose.msra.mxu0 0.0
        %1560 = vmatpush.xpose.msra.mxu0 0.0
        %1561 = vmatpush.xpose.msra.mxu0 0.0
        %1562 = vmatpush.xpose.msra.mxu0 0.0
        %1563 = vmatpush.xpose.msra.mxu0 0.0
        %1564 = vmatpush.xpose.msra.mxu0 0.0
        %1565 = vmatpush.xpose.msra.mxu0 0.0
        %1566 = vmatpush.xpose.msra.mxu0 0.0
        %1567 = vmatpush.xpose.msra.mxu0 0.0
        %1568 = vmatpush.xpose.msra.mxu0 0.0
        %1569 = vmatpush.xpose.msra.mxu0 0.0
        %1570 = vmatpush.xpose.msra.mxu0 0.0
        %1571 = vmatpush.xpose.msra.mxu0 0.0
        %1572 = vmatpush.xpose.msra.mxu0 %v1555
        %1573 = vmatmul.f32.gmra.mxu0 %v1552
        %v1574 = vpop.f32.mrf.mxu0
        %v1575 = vadd.f32 0.0, %v1574
        %1576 = vdwg.mxu0
        %v1577 = vmul.f32 %v1575, 0.17677669
        %v1578 = vsel %vm856, %v1577, -inf
        %1579 = vmax.xlane.f32.xlu0 %v1578
        %v1580 = vpop.xlane.xlu0 %1579
        %v1581 = vsub.f32 %v1577, %v1580
        %v1582 = vmul.f32 %v1581, 1.442695
        %v1583 = vpow.pop %v1582
        %v1584 = vsel %vm856, %v1583, 0.0
        %1585 = vadd.xlane.f32.xlu0 %v1584
        %v1586 = vpop.xlane.xlu0 %1585
        %v1587 = vrcp.pop %v1586
        %v1588 = vmul.f32 %v1586, %v1587
        %v1589 = vsub.f32 1.0, %v1588
        %v1590 = vmul.f32 %v1587, %v1589
        %v1591 = vadd.f32 %v1587, %v1590
        %vm1592 = vweird.f32 %v1586
        %vm1593 = vweird.f32 %v1587
        %vm1594 = vmor %vm1592, %vm1593
        %v1595 = vsel %vm1594, %v1587, %v1591
        %v1596 = vand.u32 2147483647, %v1586
        %vm1597 = vcmp.eq.f32.partialorder %v1596, 8.507059e+37
        %v1598 = vand.u32 %v1586, 2147483648
        %v1599 = vor.u32 1.1754944e-38, %v1598
        %v1600 = vsel %vm1597, %v1599, %v1595
        %v1601 = vmul.f32 %v1583, %v1600
        %v1603 = vsel %vm856, %v1601, 0
        %1605 = vmatpush.msra.mxu0 0.0
        %1606 = vmatpush.msra.mxu0 0.0
        %1607 = vmatpush.msra.mxu0 0.0
        %1608 = vmatpush.msra.mxu0 0.0
        %1609 = vmatpush.msra.mxu0 0.0
        %1610 = vmatpush.msra.mxu0 0.0
        %1611 = vmatpush.msra.mxu0 0.0
        %1612 = vmatpush.msra.mxu0 0.0
        %1613 = vmatpush.msra.mxu0 0.0
        %1614 = vmatpush.msra.mxu0 0.0
        %1615 = vmatpush.msra.mxu0 0.0
        %1616 = vmatpush.msra.mxu0 0.0
        %1617 = vmatpush.msra.mxu0 0.0
        %1618 = vmatpush.msra.mxu0 0.0
        %1619 = vmatpush.msra.mxu0 0.0
        %1620 = vmatpush.msra.mxu0 %v1549
        %1621 = vmatmul.f32.gmra.mxu0 %v1603
        %v1622 = vpop.f32.mrf.mxu0
        %v1623 = vadd.f32 0.0, %v1622
        %1624 = vdwg.mxu0
        %1625 = vrot.lane.b32.xlu0 %v1509, 96
        %v1626 = vpop.permute.xlu0 %1625
        %1627 = vrot.lane.b32.xlu0 %v1529, 96
        %v1628 = vpop.permute.xlu0 %1627
        %v1629 = vsel %vm828, %v1626, 0
        %v1631 = vsel %vm828, %v1628, 0
        %1633 = vmatpush.xpose.msra.mxu0 0.0
        %1634 = vmatpush.xpose.msra.mxu0 0.0
        %1635 = vmatpush.xpose.msra.mxu0 0.0
        %1636 = vmatpush.xpose.msra.mxu0 0.0
        %1637 = vmatpush.xpose.msra.mxu0 0.0
        %1638 = vmatpush.xpose.msra.mxu0 0.0
        %1639 = vmatpush.xpose.msra.mxu0 0.0
        %1640 = vmatpush.xpose.msra.mxu0 0.0
        %1641 = vmatpush.xpose.msra.mxu0 0.0
        %1642 = vmatpush.xpose.msra.mxu0 0.0
        %1643 = vmatpush.xpose.msra.mxu0 0.0
        %1644 = vmatpush.xpose.msra.mxu0 0.0
        %1645 = vmatpush.xpose.msra.mxu0 0.0
        %1646 = vmatpush.xpose.msra.mxu0 0.0
        %1647 = vmatpush.xpose.msra.mxu0 0.0
        %1648 = vmatpush.xpose.msra.mxu0 %v1631
        %1649 = vmatmul.f32.gmra.mxu0 %v1629
        %v1650 = vpop.f32.mrf.mxu0
        %v1651 = vadd.f32 0.0, %v1650
        %1652 = vdwg.mxu0
        %v1653 = vmul.f32 %v1651, 0.17677669
        %v1654 = vsel %vm856, %v1653, -inf
        %1655 = vmax.xlane.f32.xlu0 %v1654
        %v1656 = vpop.xlane.xlu0 %1655
        %v1657 = vsub.f32 %v1653, %v1656
        %v1658 = vmul.f32 %v1657, 1.442695
        %v1659 = vpow.pop %v1658
        %v1660 = vsel %vm856, %v1659, 0.0
        %1661 = vadd.xlane.f32.xlu0 %v1660
        %v1662 = vpop.xlane.xlu0 %1661
        %v1663 = vrcp.pop %v1662
        %v1664 = vmul.f32 %v1662, %v1663
        %v1665 = vsub.f32 1.0, %v1664
        %v1666 = vmul.f32 %v1663, %v1665
        %v1667 = vadd.f32 %v1663, %v1666
        %vm1668 = vweird.f32 %v1662
        %vm1669 = vweird.f32 %v1663
        %vm1670 = vmor %vm1668, %vm1669
        %v1671 = vsel %vm1670, %v1663, %v1667
        %v1672 = vand.u32 2147483647, %v1662
        %vm1673 = vcmp.eq.f32.partialorder %v1672, 8.507059e+37
        %v1674 = vand.u32 %v1662, 2147483648
        %v1675 = vor.u32 1.1754944e-38, %v1674
        %v1676 = vsel %vm1673, %v1675, %v1671
        %v1677 = vmul.f32 %v1659, %v1676
        %1679 = vrot.lane.b32.xlu0 %v1549, 96
        %v1680 = vpop.permute.xlu0 %1679
        %v1683 = vsel %vm856, %v1677, 0
        %1685 = vmatpush.msra.mxu0 0.0
        %1686 = vmatpush.msra.mxu0 0.0
        %1687 = vmatpush.msra.mxu0 0.0
        %1688 = vmatpush.msra.mxu0 0.0
        %1689 = vmatpush.msra.mxu0 0.0
        %1690 = vmatpush.msra.mxu0 0.0
        %1691 = vmatpush.msra.mxu0 0.0
        %1692 = vmatpush.msra.mxu0 0.0
        %1693 = vmatpush.msra.mxu0 0.0
        %1694 = vmatpush.msra.mxu0 0.0
        %1695 = vmatpush.msra.mxu0 0.0
        %1696 = vmatpush.msra.mxu0 0.0
        %1697 = vmatpush.msra.mxu0 0.0
        %1698 = vmatpush.msra.mxu0 0.0
        %1699 = vmatpush.msra.mxu0 0.0
        %1700 = vmatpush.msra.mxu0 %v1680
        %1701 = vmatmul.f32.gmra.mxu0 %v1683
        %v1702 = vpop.f32.mrf.mxu0
        %v1703 = vadd.f32 0.0, %v1702
        %1704 = vdwg.mxu0
        %1705 = vrot.lane.b32.xlu0 %v1509, 64
        %v1706 = vpop.permute.xlu0 %1705
        %1707 = vrot.lane.b32.xlu0 %v1529, 64
        %v1708 = vpop.permute.xlu0 %1707
        %v1709 = vsel %vm828, %v1706, 0
        %v1711 = vsel %vm828, %v1708, 0
        %1713 = vmatpush.xpose.msra.mxu0 0.0
        %1714 = vmatpush.xpose.msra.mxu0 0.0
        %1715 = vmatpush.xpose.msra.mxu0 0.0
        %1716 = vmatpush.xpose.msra.mxu0 0.0
        %1717 = vmatpush.xpose.msra.mxu0 0.0
        %1718 = vmatpush.xpose.msra.mxu0 0.0
        %1719 = vmatpush.xpose.msra.mxu0 0.0
        %1720 = vmatpush.xpose.msra.mxu0 0.0
        %1721 = vmatpush.xpose.msra.mxu0 0.0
        %1722 = vmatpush.xpose.msra.mxu0 0.0
        %1723 = vmatpush.xpose.msra.mxu0 0.0
        %1724 = vmatpush.xpose.msra.mxu0 0.0
        %1725 = vmatpush.xpose.msra.mxu0 0.0
        %1726 = vmatpush.xpose.msra.mxu0 0.0
        %1727 = vmatpush.xpose.msra.mxu0 0.0
        %1728 = vmatpush.xpose.msra.mxu0 %v1711
        %1729 = vmatmul.f32.gmra.mxu0 %v1709
        %v1730 = vpop.f32.mrf.mxu0
        %v1731 = vadd.f32 0.0, %v1730
        %1732 = vdwg.mxu0
        %v1733 = vmul.f32 %v1731, 0.17677669
        %v1734 = vsel %vm856, %v1733, -inf
        %1735 = vmax.xlane.f32.xlu0 %v1734
        %v1736 = vpop.xlane.xlu0 %1735
        %v1737 = vsub.f32 %v1733, %v1736
        %v1738 = vmul.f32 %v1737, 1.442695
        %v1739 = vpow.pop %v1738
        %v1740 = vsel %vm856, %v1739, 0.0
        %1741 = vadd.xlane.f32.xlu0 %v1740
        %v1742 = vpop.xlane.xlu0 %1741
        %v1743 = vrcp.pop %v1742
        %v1744 = vmul.f32 %v1742, %v1743
        %v1745 = vsub.f32 1.0, %v1744
        %v1746 = vmul.f32 %v1743, %v1745
        %v1747 = vadd.f32 %v1743, %v1746
        %vm1748 = vweird.f32 %v1742
        %vm1749 = vweird.f32 %v1743
        %vm1750 = vmor %vm1748, %vm1749
        %v1751 = vsel %vm1750, %v1743, %v1747
        %v1752 = vand.u32 2147483647, %v1742
        %vm1753 = vcmp.eq.f32.partialorder %v1752, 8.507059e+37
        %v1754 = vand.u32 %v1742, 2147483648
        %v1755 = vor.u32 1.1754944e-38, %v1754
        %v1756 = vsel %vm1753, %v1755, %v1751
        %v1757 = vmul.f32 %v1739, %v1756
        %1758 = vrot.lane.b32.xlu0 %v1549, 64
        %v1759 = vpop.permute.xlu0 %1758
        %v1762 = vsel %vm856, %v1757, 0
        %1764 = vmatpush.msra.mxu0 0.0
        %1765 = vmatpush.msra.mxu0 0.0
        %1766 = vmatpush.msra.mxu0 0.0
        %1767 = vmatpush.msra.mxu0 0.0
        %1768 = vmatpush.msra.mxu0 0.0
        %1769 = vmatpush.msra.mxu0 0.0
        %1770 = vmatpush.msra.mxu0 0.0
        %1771 = vmatpush.msra.mxu0 0.0
        %1772 = vmatpush.msra.mxu0 0.0
        %1773 = vmatpush.msra.mxu0 0.0
        %1774 = vmatpush.msra.mxu0 0.0
        %1775 = vmatpush.msra.mxu0 0.0
        %1776 = vmatpush.msra.mxu0 0.0
        %1777 = vmatpush.msra.mxu0 0.0
        %1778 = vmatpush.msra.mxu0 0.0
        %1779 = vmatpush.msra.mxu0 %v1759
        %1780 = vmatmul.f32.gmra.mxu0 %v1762
        %v1781 = vpop.f32.mrf.mxu0
        %v1782 = vadd.f32 0.0, %v1781
        %1783 = vdwg.mxu0
        %1784 = vrot.lane.b32.xlu0 %v1509, 32
        %v1785 = vpop.permute.xlu0 %1784
        %1786 = vrot.lane.b32.xlu0 %v1529, 32
        %v1787 = vpop.permute.xlu0 %1786
        %v1788 = vsel %vm828, %v1785, 0
        %v1790 = vsel %vm828, %v1787, 0
        %1792 = vmatpush.xpose.msra.mxu0 0.0
        %1793 = vmatpush.xpose.msra.mxu0 0.0
        %1794 = vmatpush.xpose.msra.mxu0 0.0
        %1795 = vmatpush.xpose.msra.mxu0 0.0
        %1796 = vmatpush.xpose.msra.mxu0 0.0
        %1797 = vmatpush.xpose.msra.mxu0 0.0
        %1798 = vmatpush.xpose.msra.mxu0 0.0
        %1799 = vmatpush.xpose.msra.mxu0 0.0
        %1800 = vmatpush.xpose.msra.mxu0 0.0
        %1801 = vmatpush.xpose.msra.mxu0 0.0
        %1802 = vmatpush.xpose.msra.mxu0 0.0
        %1803 = vmatpush.xpose.msra.mxu0 0.0
        %1804 = vmatpush.xpose.msra.mxu0 0.0
        %1805 = vmatpush.xpose.msra.mxu0 0.0
        %1806 = vmatpush.xpose.msra.mxu0 0.0
        %1807 = vmatpush.xpose.msra.mxu0 %v1790
        %1808 = vmatmul.f32.gmra.mxu0 %v1788
        %v1809 = vpop.f32.mrf.mxu0
        %v1810 = vadd.f32 0.0, %v1809
        %1811 = vdwg.mxu0
        %v1812 = vmul.f32 %v1810, 0.17677669
        %v1813 = vsel %vm856, %v1812, -inf
        %1814 = vmax.xlane.f32.xlu0 %v1813
        %v1815 = vpop.xlane.xlu0 %1814
        %v1816 = vsub.f32 %v1812, %v1815
        %v1817 = vmul.f32 %v1816, 1.442695
        %v1818 = vpow.pop %v1817
        %v1819 = vsel %vm856, %v1818, 0.0
        %1820 = vadd.xlane.f32.xlu0 %v1819
        %v1821 = vpop.xlane.xlu0 %1820
        %v1822 = vrcp.pop %v1821
        %v1823 = vmul.f32 %v1821, %v1822
        %v1824 = vsub.f32 1.0, %v1823
        %v1825 = vmul.f32 %v1822, %v1824
        %v1826 = vadd.f32 %v1822, %v1825
        %vm1827 = vweird.f32 %v1821
        %vm1828 = vweird.f32 %v1822
        %vm1829 = vmor %vm1827, %vm1828
        %v1830 = vsel %vm1829, %v1822, %v1826
        %v1831 = vand.u32 2147483647, %v1821
        %vm1832 = vcmp.eq.f32.partialorder %v1831, 8.507059e+37
        %v1833 = vand.u32 %v1821, 2147483648
        %v1834 = vor.u32 1.1754944e-38, %v1833
        %v1835 = vsel %vm1832, %v1834, %v1830
        %v1836 = vmul.f32 %v1818, %v1835
        %1837 = vrot.lane.b32.xlu0 %v1549, 32
        %v1838 = vpop.permute.xlu0 %1837
        %v1841 = vsel %vm856, %v1836, 0
        %1843 = vmatpush.msra.mxu0 0.0
        %1844 = vmatpush.msra.mxu0 0.0
        %1845 = vmatpush.msra.mxu0 0.0
        %1846 = vmatpush.msra.mxu0 0.0
        %1847 = vmatpush.msra.mxu0 0.0
        %1848 = vmatpush.msra.mxu0 0.0
        %1849 = vmatpush.msra.mxu0 0.0
        %1850 = vmatpush.msra.mxu0 0.0
        %1851 = vmatpush.msra.mxu0 0.0
        %1852 = vmatpush.msra.mxu0 0.0
        %1853 = vmatpush.msra.mxu0 0.0
        %1854 = vmatpush.msra.mxu0 0.0
        %1855 = vmatpush.msra.mxu0 0.0
        %1856 = vmatpush.msra.mxu0 0.0
        %1857 = vmatpush.msra.mxu0 0.0
        %1858 = vmatpush.msra.mxu0 %v1838
        %1859 = vmatmul.f32.gmra.mxu0 %v1841
        %v1860 = vpop.f32.mrf.mxu0
        %v1861 = vadd.f32 0.0, %v1860
        %1862 = vdwg.mxu0
        %1864 = vrot.lane.b32.xlu0 %v1703, 32
        %v1865 = vpop.permute.xlu0 %1864
        %1868 = vrot.lane.b32.xlu0 %v1782, 64
        %v1869 = vpop.permute.xlu0 %1868
        %1872 = vrot.lane.b32.xlu0 %v1861, 96
        %v1873 = vpop.permute.xlu0 %1872
        %v1875 = vsel %vm828, %v1623, %v1865
        %v1876 = vsel %vm1155, %v1875, %v1869
        %v1877 = vsel %vm1157, %v1876, %v1873
        %s1878 = scalar_lea.vmem [#allocation5], 128
        %v1879 = vld [vmem:[%s1878] sm:$0xff]
        %v1880 = vld [vmem:[%s1878 + $0x8] sm:$0xff]
        %v1881 = vld [vmem:[%s1878 + $0x10] sm:$0xff]
        %v1882 = vld [vmem:[%s1878 + $0x18] sm:$0xff]
        %v1883 = vld [vmem:[%s1878 + $0x20] sm:$0xff]
        %v1884 = vld [vmem:[%s1878 + $0x28] sm:$0xff]
        %v1885 = vld [vmem:[%s1878 + $0x30] sm:$0xff]
        %v1886 = vld [vmem:[%s1878 + $0x38] sm:$0xff]
        %v1887 = vld [vmem:[%s1878 + $0x40] sm:$0xff]
        %v1888 = vld [vmem:[%s1878 + $0x48] sm:$0xff]
        %v1889 = vld [vmem:[%s1878 + $0x50] sm:$0xff]
        %v1890 = vld [vmem:[%s1878 + $0x58] sm:$0xff]
        %v1891 = vld [vmem:[%s1878 + $0x60] sm:$0xff]
        %v1892 = vld [vmem:[%s1878 + $0x68] sm:$0xff]
        %v1893 = vld [vmem:[%s1878 + $0x70] sm:$0xff]
        %v1894 = vld [vmem:[%s1878 + $0x78] sm:$0xff]
        %s1895 = scalar_lea.vmem %s7, 1
        %v1896 = vld [vmem:[%s1895] sm:$0x1]
        %v1898 = vperm.slane %v1896, 0
        %1900 = vmatpush.msra.mxu0 %v1894
        %1901 = vmatpush.msra.mxu0 %v1893
        %1902 = vmatpush.msra.mxu0 %v1892
        %1903 = vmatpush.msra.mxu0 %v1891
        %1904 = vmatpush.msra.mxu0 %v1890
        %1905 = vmatpush.msra.mxu0 %v1889
        %1906 = vmatpush.msra.mxu0 %v1888
        %1907 = vmatpush.msra.mxu0 %v1887
        %1908 = vmatpush.msra.mxu0 %v1886
        %1909 = vmatpush.msra.mxu0 %v1885
        %1910 = vmatpush.msra.mxu0 %v1884
        %1911 = vmatpush.msra.mxu0 %v1883
        %1912 = vmatpush.msra.mxu0 %v1882
        %1913 = vmatpush.msra.mxu0 %v1881
        %1914 = vmatpush.msra.mxu0 %v1880
        %1915 = vmatpush.msra.mxu0 %v1879
        %1916 = vmatmul.f32.gmra.mxu0 %v1877
        %v1917 = vpop.f32.mrf.mxu0
        %v1918 = vadd.f32 %v1898, %v1917
        %1919 = vdwg.mxu0
        %v1920 = vadd.f32 %v1432, %v1918
        %s1921 = scalar_lea.vmem %s8, 1
        %v1922 = vld [vmem:[%s1921] sm:$0x1]
        %s1923 = scalar_lea.vmem %s9, 1
        %v1924 = vld [vmem:[%s1923] sm:$0x1]
        %1925 = vadd.xlane.f32.xlu0 %v1920
        %v1926 = vpop.xlane.xlu0 %1925
        %v1927 = vmul.f32 %v1926, %v685
        %v1928 = vsub.f32 %v1920, %v1927
        %v1929 = vmul.f32 %v1928, %v1928
        %1930 = vadd.xlane.f32.xlu0 %v1929
        %v1931 = vpop.xlane.xlu0 %1930
        %v1932 = vmul.f32 %v1931, %v685
        %v1933 = vadd.f32 %v1932, 1e-12
        %v1934 = vrsqrt.pop %v1933
        %v1935 = vmul.f32 %v1934, %v1933
        %v1936 = vmul.f32 %v1935, %v1934
        %v1937 = vmul.f32 0.5, %v1936
        %v1938 = vsub.f32 1.5, %v1937
        %v1939 = vmul.f32 %v1934, %v1938
        %vm1940 = vweird.f32 %v1933
        %vm1941 = vweird.f32 %v1934
        %vm1942 = vmor %vm1940, %vm1941
        %v1943 = vsel %vm1942, %v1934, %v1939
        %v1944 = vmul.f32 %v1928, %v1943
        %v1946 = vperm.slane %v1922, 0
        %v1948 = vmul.f32 %v1944, %v1946
        %v1950 = vperm.slane %v1924, 0
        %v1952 = vadd.f32 %v1948, %v1950
        %s1953 = scalar_lea.vmem [#allocation7], 256
        %v1954 = vld [vmem:[%s1953] sm:$0xff]
        %v1955 = vld [vmem:[%s1953 + $0x8] sm:$0xff]
        %v1956 = vld [vmem:[%s1953 + $0x10] sm:$0xff]
        %v1957 = vld [vmem:[%s1953 + $0x18] sm:$0xff]
        %v1958 = vld [vmem:[%s1953 + $0x20] sm:$0xff]
        %v1959 = vld [vmem:[%s1953 + $0x28] sm:$0xff]
        %v1960 = vld [vmem:[%s1953 + $0x30] sm:$0xff]
        %v1961 = vld [vmem:[%s1953 + $0x38] sm:$0xff]
        %v1962 = vld [vmem:[%s1953 + $0x40] sm:$0xff]
        %v1963 = vld [vmem:[%s1953 + $0x48] sm:$0xff]
        %v1964 = vld [vmem:[%s1953 + $0x50] sm:$0xff]
        %v1965 = vld [vmem:[%s1953 + $0x58] sm:$0xff]
        %v1966 = vld [vmem:[%s1953 + $0x60] sm:$0xff]
        %v1967 = vld [vmem:[%s1953 + $0x68] sm:$0xff]
        %v1968 = vld [vmem:[%s1953 + $0x70] sm:$0xff]
        %v1969 = vld [vmem:[%s1953 + $0x78] sm:$0xff]
        %v1970 = vld [vmem:[%s1953 + $0x80] sm:$0xff]
        %v1971 = vld [vmem:[%s1953 + $0x88] sm:$0xff]
        %v1972 = vld [vmem:[%s1953 + $0x90] sm:$0xff]
        %v1973 = vld [vmem:[%s1953 + $0x98] sm:$0xff]
        %v1974 = vld [vmem:[%s1953 + $0xa0] sm:$0xff]
        %v1975 = vld [vmem:[%s1953 + $0xa8] sm:$0xff]
        %v1976 = vld [vmem:[%s1953 + $0xb0] sm:$0xff]
        %v1977 = vld [vmem:[%s1953 + $0xb8] sm:$0xff]
        %v1978 = vld [vmem:[%s1953 + $0xc0] sm:$0xff]
        %v1979 = vld [vmem:[%s1953 + $0xc8] sm:$0xff]
        %v1980 = vld [vmem:[%s1953 + $0xd0] sm:$0xff]
        %v1981 = vld [vmem:[%s1953 + $0xd8] sm:$0xff]
        %v1982 = vld [vmem:[%s1953 + $0xe0] sm:$0xff]
        %v1983 = vld [vmem:[%s1953 + $0xe8] sm:$0xff]
        %v1984 = vld [vmem:[%s1953 + $0xf0] sm:$0xff]
        %v1985 = vld [vmem:[%s1953 + $0xf8] sm:$0xff]
        %s1986 = scalar_lea.vmem %s11, 2
        %v1987 = vld [vmem:[%s1986] sm:$0x3]
        %v1989 = vperm.slane %v1987, 0
        %v1990 = vperm.slane %v1987, 1
        %1993 = vmatpush.msra.mxu0 %v1984
        %1994 = vmatpush.msra.mxu0 %v1982
        %1995 = vmatpush.msra.mxu0 %v1980
        %1996 = vmatpush.msra.mxu0 %v1978
        %1997 = vmatpush.msra.mxu0 %v1976
        %1998 = vmatpush.msra.mxu0 %v1974
        %1999 = vmatpush.msra.mxu0 %v1972
        %2000 = vmatpush.msra.mxu0 %v1970
        %2001 = vmatpush.msra.mxu0 %v1968
        %2002 = vmatpush.msra.mxu0 %v1966
        %2003 = vmatpush.msra.mxu0 %v1964
        %2004 = vmatpush.msra.mxu0 %v1962
        %2005 = vmatpush.msra.mxu0 %v1960
        %2006 = vmatpush.msra.mxu0 %v1958
        %2007 = vmatpush.msra.mxu0 %v1956
        %2008 = vmatpush.msra.mxu0 %v1954
        %2009 = vmatmul.f32.gmra.mxu0 %v1952
        %v2010 = vpop.f32.mrf.mxu0
        %v2011 = vadd.f32 %v1989, %v2010
        %2012 = vdwg.mxu0
        %2013 = vmatpush.msra.mxu0 %v1985
        %2014 = vmatpush.msra.mxu0 %v1983
        %2015 = vmatpush.msra.mxu0 %v1981
        %2016 = vmatpush.msra.mxu0 %v1979
        %2017 = vmatpush.msra.mxu0 %v1977
        %2018 = vmatpush.msra.mxu0 %v1975
        %2019 = vmatpush.msra.mxu0 %v1973
        %2020 = vmatpush.msra.mxu0 %v1971
        %2021 = vmatpush.msra.mxu0 %v1969
        %2022 = vmatpush.msra.mxu0 %v1967
        %2023 = vmatpush.msra.mxu0 %v1965
        %2024 = vmatpush.msra.mxu0 %v1963
        %2025 = vmatpush.msra.mxu0 %v1961
        %2026 = vmatpush.msra.mxu0 %v1959
        %2027 = vmatpush.msra.mxu0 %v1957
        %2028 = vmatpush.msra.mxu0 %v1955
        %2029 = vmatmul.f32.gmra.mxu0 %v1952
        %v2030 = vpop.f32.mrf.mxu0
        %v2031 = vadd.f32 %v1990, %v2030
        %2032 = vdwg.mxu0
        %v2033 = vmul.f32 %v2011, %v2011
        %v2034 = vmul.f32 %v2031, %v2031
        %v2035 = vmul.f32 %v2011, %v2033
        %v2036 = vmul.f32 %v2031, %v2034
        %v2037 = vmul.f32 %v2035, 0.044715
        %v2038 = vmul.f32 %v2036, 0.044715
        %v2039 = vadd.f32 %v2011, %v2037
        %v2040 = vadd.f32 %v2031, %v2038
        %v2041 = vmul.f32 %v2039, 0.7978846
        %v2042 = vmul.f32 %v2040, 0.7978846
        %v2043 = vtanh.pop %v2041
        %v2044 = vtanh.pop %v2042
        %v2045 = vadd.f32 %v2043, 1.0
        %v2046 = vadd.f32 %v2044, 1.0
        %v2047 = vmul.f32 %v2045, 0.5
        %v2048 = vmul.f32 %v2046, 0.5
        %v2049 = vmul.f32 %v2011, %v2047
        %v2050 = vmul.f32 %v2031, %v2048
        %s2051 = scalar_lea.vmem [#allocation8], 256
        %v2052 = vld [vmem:[%s2051] sm:$0xff]
        %v2053 = vld [vmem:[%s2051 + $0x8] sm:$0xff]
        %v2054 = vld [vmem:[%s2051 + $0x10] sm:$0xff]
        %v2055 = vld [vmem:[%s2051 + $0x18] sm:$0xff]
        %v2056 = vld [vmem:[%s2051 + $0x20] sm:$0xff]
        %v2057 = vld [vmem:[%s2051 + $0x28] sm:$0xff]
        %v2058 = vld [vmem:[%s2051 + $0x30] sm:$0xff]
        %v2059 = vld [vmem:[%s2051 + $0x38] sm:$0xff]
        %v2060 = vld [vmem:[%s2051 + $0x40] sm:$0xff]
        %v2061 = vld [vmem:[%s2051 + $0x48] sm:$0xff]
        %v2062 = vld [vmem:[%s2051 + $0x50] sm:$0xff]
        %v2063 = vld [vmem:[%s2051 + $0x58] sm:$0xff]
        %v2064 = vld [vmem:[%s2051 + $0x60] sm:$0xff]
        %v2065 = vld [vmem:[%s2051 + $0x68] sm:$0xff]
        %v2066 = vld [vmem:[%s2051 + $0x70] sm:$0xff]
        %v2067 = vld [vmem:[%s2051 + $0x78] sm:$0xff]
        %v2068 = vld [vmem:[%s2051 + $0x80] sm:$0xff]
        %v2069 = vld [vmem:[%s2051 + $0x88] sm:$0xff]
        %v2070 = vld [vmem:[%s2051 + $0x90] sm:$0xff]
        %v2071 = vld [vmem:[%s2051 + $0x98] sm:$0xff]
        %v2072 = vld [vmem:[%s2051 + $0xa0] sm:$0xff]
        %v2073 = vld [vmem:[%s2051 + $0xa8] sm:$0xff]
        %v2074 = vld [vmem:[%s2051 + $0xb0] sm:$0xff]
        %v2075 = vld [vmem:[%s2051 + $0xb8] sm:$0xff]
        %v2076 = vld [vmem:[%s2051 + $0xc0] sm:$0xff]
        %v2077 = vld [vmem:[%s2051 + $0xc8] sm:$0xff]
        %v2078 = vld [vmem:[%s2051 + $0xd0] sm:$0xff]
        %v2079 = vld [vmem:[%s2051 + $0xd8] sm:$0xff]
        %v2080 = vld [vmem:[%s2051 + $0xe0] sm:$0xff]
        %v2081 = vld [vmem:[%s2051 + $0xe8] sm:$0xff]
        %v2082 = vld [vmem:[%s2051 + $0xf0] sm:$0xff]
        %v2083 = vld [vmem:[%s2051 + $0xf8] sm:$0xff]
        %s2084 = scalar_lea.vmem %s13, 1
        %v2085 = vld [vmem:[%s2084] sm:$0x1]
        %v2087 = vperm.slane %v2085, 0
        %2089 = vmatpush.msra.mxu0 %v2067
        %2090 = vmatpush.msra.mxu0 %v2066
        %2091 = vmatpush.msra.mxu0 %v2065
        %2092 = vmatpush.msra.mxu0 %v2064
        %2093 = vmatpush.msra.mxu0 %v2063
        %2094 = vmatpush.msra.mxu0 %v2062
        %2095 = vmatpush.msra.mxu0 %v2061
        %2096 = vmatpush.msra.mxu0 %v2060
        %2097 = vmatpush.msra.mxu0 %v2059
        %2098 = vmatpush.msra.mxu0 %v2058
        %2099 = vmatpush.msra.mxu0 %v2057
        %2100 = vmatpush.msra.mxu0 %v2056
        %2101 = vmatpush.msra.mxu0 %v2055
        %2102 = vmatpush.msra.mxu0 %v2054
        %2103 = vmatpush.msra.mxu0 %v2053
        %2104 = vmatpush.msra.mxu0 %v2052
        %2105 = vmatmul.f32.gmra.mxu0 %v2049
        %v2106 = vpop.f32.mrf.mxu0
        %v2107 = vadd.f32 %v2087, %v2106
        %2108 = vdwg.mxu0
        %2109 = vmatpush.msra.mxu0 %v2083
        %2110 = vmatpush.msra.mxu0 %v2082
        %2111 = vmatpush.msra.mxu0 %v2081
        %2112 = vmatpush.msra.mxu0 %v2080
        %2113 = vmatpush.msra.mxu0 %v2079
        %2114 = vmatpush.msra.mxu0 %v2078
        %2115 = vmatpush.msra.mxu0 %v2077
        %2116 = vmatpush.msra.mxu0 %v2076
        %2117 = vmatpush.msra.mxu0 %v2075
        %2118 = vmatpush.msra.mxu0 %v2074
        %2119 = vmatpush.msra.mxu0 %v2073
        %2120 = vmatpush.msra.mxu0 %v2072
        %2121 = vmatpush.msra.mxu0 %v2071
        %2122 = vmatpush.msra.mxu0 %v2070
        %2123 = vmatpush.msra.mxu0 %v2069
        %2124 = vmatpush.msra.mxu0 %v2068
        %2125 = vmatmul.f32.gmra.mxu0 %v2050
        %v2126 = vpop.f32.mrf.mxu0
        %v2127 = vadd.f32 %v2107, %v2126
        %2128 = vdwg.mxu0
        %v2129 = vadd.f32 %v1952, %v2127
        %s2130 = scalar_lea.vmem %s14, 1
        %v2131 = vld [vmem:[%s2130] sm:$0x1]
        %s2132 = scalar_lea.vmem %s15, 1
        %v2133 = vld [vmem:[%s2132] sm:$0x1]
        %2134 = vadd.xlane.f32.xlu0 %v2129
        %v2135 = vpop.xlane.xlu0 %2134
        %v2136 = vmul.f32 %v2135, %v685
        %v2137 = vsub.f32 %v2129, %v2136
        %v2138 = vmul.f32 %v2137, %v2137
        %2139 = vadd.xlane.f32.xlu0 %v2138
        %v2140 = vpop.xlane.xlu0 %2139
        %v2141 = vmul.f32 %v2140, %v685
        %v2142 = vadd.f32 %v2141, 1e-12
        %v2143 = vrsqrt.pop %v2142
        %v2144 = vmul.f32 %v2143, %v2142
        %v2145 = vmul.f32 %v2144, %v2143
        %v2146 = vmul.f32 0.5, %v2145
        %v2147 = vsub.f32 1.5, %v2146
        %v2148 = vmul.f32 %v2143, %v2147
        %vm2149 = vweird.f32 %v2142
        %vm2150 = vweird.f32 %v2143
        %vm2151 = vmor %vm2149, %vm2150
        %v2152 = vsel %vm2151, %v2143, %v2148
        %v2153 = vmul.f32 %v2137, %v2152
        %v2155 = vperm.slane %v2131, 0
        %v2157 = vmul.f32 %v2153, %v2155
        %v2159 = vperm.slane %v2133, 0
        %v2161 = vadd.f32 %v2157, %v2159
        %v2162 = vld [vmem:[#allocation10] sm:$0xff]
        %v2163 = vld [vmem:[#allocation10 + $0x8] sm:$0xff]
        %v2164 = vld [vmem:[#allocation10 + $0x10] sm:$0xff]
        %v2165 = vld [vmem:[#allocation10 + $0x18] sm:$0xff]
        %v2166 = vld [vmem:[#allocation10 + $0x20] sm:$0xff]
        %v2167 = vld [vmem:[#allocation10 + $0x28] sm:$0xff]
        %v2168 = vld [vmem:[#allocation10 + $0x30] sm:$0xff]
        %v2169 = vld [vmem:[#allocation10 + $0x38] sm:$0xff]
        %v2170 = vld [vmem:[#allocation10 + $0x40] sm:$0xff]
        %v2171 = vld [vmem:[#allocation10 + $0x48] sm:$0xff]
        %v2172 = vld [vmem:[#allocation10 + $0x50] sm:$0xff]
        %v2173 = vld [vmem:[#allocation10 + $0x58] sm:$0xff]
        %v2174 = vld [vmem:[#allocation10 + $0x60] sm:$0xff]
        %v2175 = vld [vmem:[#allocation10 + $0x68] sm:$0xff]
        %v2176 = vld [vmem:[#allocation10 + $0x70] sm:$0xff]
        %v2177 = vld [vmem:[#allocation10 + $0x78] sm:$0xff]
        %v2178 = vld [vmem:[#allocation10 + $0x80] sm:$0xff]
        %v2179 = vld [vmem:[#allocation10 + $0x88] sm:$0xff]
        %v2180 = vld [vmem:[#allocation10 + $0x90] sm:$0xff]
        %v2181 = vld [vmem:[#allocation10 + $0x98] sm:$0xff]
        %v2182 = vld [vmem:[#allocation10 + $0xa0] sm:$0xff]
        %v2183 = vld [vmem:[#allocation10 + $0xa8] sm:$0xff]
        %v2184 = vld [vmem:[#allocation10 + $0xb0] sm:$0xff]
        %v2185 = vld [vmem:[#allocation10 + $0xb8] sm:$0xff]
        %v2186 = vld [vmem:[#allocation10 + $0xc0] sm:$0xff]
        %v2187 = vld [vmem:[#allocation10 + $0xc8] sm:$0xff]
        %v2188 = vld [vmem:[#allocation10 + $0xd0] sm:$0xff]
        %v2189 = vld [vmem:[#allocation10 + $0xd8] sm:$0xff]
        %v2190 = vld [vmem:[#allocation10 + $0xe0] sm:$0xff]
        %v2191 = vld [vmem:[#allocation10 + $0xe8] sm:$0xff]
        %v2192 = vld [vmem:[#allocation10 + $0xf0] sm:$0xff]
        %v2193 = vld [vmem:[#allocation10 + $0xf8] sm:$0xff]
        %v2194 = vld [vmem:[%s17] sm:$0x3]
        %v2196 = vperm.slane %v2194, 0
        %v2197 = vperm.slane %v2194, 1
        %2200 = vmatpush.msra.mxu0 %v2192
        %2201 = vmatpush.msra.mxu0 %v2190
        %2202 = vmatpush.msra.mxu0 %v2188
        %2203 = vmatpush.msra.mxu0 %v2186
        %2204 = vmatpush.msra.mxu0 %v2184
        %2205 = vmatpush.msra.mxu0 %v2182
        %2206 = vmatpush.msra.mxu0 %v2180
        %2207 = vmatpush.msra.mxu0 %v2178
        %2208 = vmatpush.msra.mxu0 %v2176
        %2209 = vmatpush.msra.mxu0 %v2174
        %2210 = vmatpush.msra.mxu0 %v2172
        %2211 = vmatpush.msra.mxu0 %v2170
        %2212 = vmatpush.msra.mxu0 %v2168
        %2213 = vmatpush.msra.mxu0 %v2166
        %2214 = vmatpush.msra.mxu0 %v2164
        %2215 = vmatpush.msra.mxu0 %v2162
        %2216 = vmatmul.f32.gmra.mxu0 %v2161
        %v2217 = vpop.f32.mrf.mxu0
        %v2218 = vadd.f32 %v2196, %v2217
        %2219 = vdwg.mxu0
        %2220 = vmatpush.msra.mxu0 %v2193
        %2221 = vmatpush.msra.mxu0 %v2191
        %2222 = vmatpush.msra.mxu0 %v2189
        %2223 = vmatpush.msra.mxu0 %v2187
        %2224 = vmatpush.msra.mxu0 %v2185
        %2225 = vmatpush.msra.mxu0 %v2183
        %2226 = vmatpush.msra.mxu0 %v2181
        %2227 = vmatpush.msra.mxu0 %v2179
        %2228 = vmatpush.msra.mxu0 %v2177
        %2229 = vmatpush.msra.mxu0 %v2175
        %2230 = vmatpush.msra.mxu0 %v2173
        %2231 = vmatpush.msra.mxu0 %v2171
        %2232 = vmatpush.msra.mxu0 %v2169
        %2233 = vmatpush.msra.mxu0 %v2167
        %2234 = vmatpush.msra.mxu0 %v2165
        %2235 = vmatpush.msra.mxu0 %v2163
        %2236 = vmatmul.f32.gmra.mxu0 %v2161
        %v2237 = vpop.f32.mrf.mxu0
        %v2238 = vadd.f32 %v2197, %v2237
        %2239 = vdwg.mxu0
        %v2240 = vmax.f32 %v2218, 0.0
        %v2241 = vmax.f32 %v2238, 0.0
        %v2242 = vld [vmem:[%s673] sm:$0xff]
        %v2243 = vld [vmem:[%s673 + $0x8] sm:$0xff]
        %v2244 = vadd.s32 %v2242, 2147483648
        %vm2246 = vcmp.ge.s32.totalorder %v2244, 2576980377
        %v2247 = vadd.s32 %v2243, 2147483648
        %vm2249 = vcmp.ge.s32.totalorder %v2247, 2576980377
        %v2250 = vmul.f32 %v2240, 1.1111112
        %v2251 = vmul.f32 %v2241, 1.1111112
        %v2252 = vsel %vm2246, %v2250, 0.0
        %v2253 = vsel %vm2249, %v2251, 0.0
        %2254 = vst [vmem:[%s664] sm:$0xff] %v2252
        %2255 = vst [vmem:[%s664 + $0x8] sm:$0xff] %v2253
        %s2256 = sand.u32 %s431, 1
        %s2257 = scalar_lea.sflag [#allocation4], %s2256
        %s2258 = sand.u32 %s431, 1
        %s2259 = smul.addr %s2258, 16
        %s2260 = scalar_lea.vmem [#allocation11], %s2259
        // Predicated region
        $region113: #{text_encoder_forward.1} parent=91 // pred_check
          %p2261 = pneg %p441
        $region114: #{text_encoder_forward.1} parent=91 // pred_check_branch
          %2263 = sbr.rel (%p2261) target = $region116
        $region115: #{text_encoder_forward.1} parent=91 // pred_region
          %2265 = vsyncadd %s2257, 0
          %s2266 = smul.addr %s35, 2
          %s2267 = smul.addr %s2266, 8
          %s2268 = scalar_lea.hbm %s18, %s2267
          %s2270 = sshll.u32 %s2260, 4
          %s2271 = int_to_ptr.vmem [resolvable:$true] %s2270
          %s2272 = sshll.u32 %s2268, 4
          %s2273 = int_to_ptr.hbm [resolvable:$true] %s2272
          %2275 = dma.vmem_to_hbm [thread:$0]  %s2271, 256, %s2273, %s2257
        $region116: #{text_encoder_forward.1} parent=91 // pred_fallthru
          _
      $region92: #{text_encoder_forward.1} parent=5 // pred_fallthru
        _
      %p2276 = scmp.le.s32.totalorder 2, %s30
      // Predicated region
      $region117: #{text_encoder_forward.1} parent=5 // pred_check
        %p2277 = pneg %p2276
      $region118: #{text_encoder_forward.1} parent=5 // pred_check_branch
        %2279 = sbr.rel (%p2277) target = $region120
      $region119: #{text_encoder_forward.1} parent=5 // pred_region
        %s2280 = ssub.s32 %s30, 2
        // Predicated region
        $region121: #{text_encoder_forward.1} parent=119 // pred_check
          %p2281 = pneg %p447
        $region122: #{text_encoder_forward.1} parent=119 // pred_check_branch
          %2283 = sbr.rel (%p2281) target = $region124
        $region123: #{text_encoder_forward.1} parent=119 // pred_region
          %s2284 = sand.u32 %s432, 1
          %s2285 = scalar_lea.sflag [#allocation4], %s2284
          %s2286 = sand.u32 %s432, 1
          %s2287 = smul.addr %s2286, 16
          %s2288 = scalar_lea.vmem [#allocation11], %s2287
          %2290 = dma.done %s2285, 256
        $region124: #{text_encoder_forward.1} parent=119 // pred_fallthru
          _
      $region120: #{text_encoder_forward.1} parent=5 // pred_fallthru
        _
    $region6: #{text_encoder_forward.1} parent=1 // loop_footer
      %s34 = sadd.s32 1, %s30
    $region7: #{text_encoder_forward.1} parent=1 // loop_footer_branch
      %29 = sbr.rel target = $region3
    $region8: #{text_encoder_forward.1} parent=1 // loop_exit
      _
    %2291 = vsyncpa [#allocation3], 1
    %s2292 = scalar_lea.sflag [#allocation3], 1
    %2293 = vsyncpa %s2292, 1
    %2294 = vsyncpa [#allocation6], 1
    %2295 = vsyncpa [#allocation9], 1
    %2296 = vsyncpa [#allocation4], 1
    %s2297 = scalar_lea.sflag [#allocation4], 1
    %2298 = vsyncpa %s2297, 1

</llo_original>
